<compile_context>
chip_gen: v5e
topology: v5e:2x2
jax: 0.10.0
libtpu: 0.0.40
codegen_flags: <defaults>
</compile_context>

<pallas_src>
import functools

import jax
import jax.numpy as jnp
from jax.experimental import pallas as pl
from jax.experimental.pallas import tpu as pltpu

LANE = 128  # TPU lane width; used for aligned block placement of the fused operands.


def gru_rollout_kernel(
    x_ref,                         # (seq_len, B, F)  time-major input, fully VMEM resident
    w0_ref, bgi0_ref, bghn0_ref,   # layer 0 (encoder folded): (2L,2L), (1,3H), (1,H)
    w1_ref, bgi1_ref, bghn1_ref,   # layer 1:                  (2L,2L), (1,3H), (1,H)
    wdec_ref, bdec_ref,            # decoder: (H,F), (1,F)
    out_ref,                       # (pred_len, B, F)
    cat0_scr, cat1_scr,            # (B, 2L) VMEM scratch: fused [input | hidden] operands
    *, seq_len, pred_len, hidden_size, feat,
):
    H = hidden_size
    F = feat
    B = x_ref.shape[1]

    # Hoist all weight/bias loads out of the unrolled time loop.
    w0, w1 = w0_ref[...], w1_ref[...]
    bgi0, bghn0 = bgi0_ref[...], bghn0_ref[...]
    bgi1, bghn1 = bgi1_ref[...], bghn1_ref[...]
    wdec, bdec = wdec_ref[...], bdec_ref[...]

    # Zero the fused-operand scratch once; afterwards only the [0,k_in) and [L,L+H)
    # column ranges are written, and every other column hits a zero weight row.
    cat0_scr[...] = jnp.zeros_like(cat0_scr)
    cat1_scr[...] = jnp.zeros_like(cat1_scr)

    def gru_cell(cat_scr, k_in, xin, h, w_fused, b_gi, b_ghn):
        # Single MXU pass computes both gi (= xin @ Wih) and gh (= h @ Whh):
        # cat = [xin | 0 | h | 0] with 128-aligned slots, w_fused block-placed to match.
        cat_scr[:, 0:k_in] = xin
        cat_scr[:, LANE:LANE + H] = h
        fused = jnp.dot(cat_scr[...], w_fused, preferred_element_type=jnp.float32)
        gi = fused[:, 0:3 * H] + b_gi            # r/z biases of Wih & Whh pre-merged
        gh = fused[:, LANE:LANE + 3 * H]
        r = jax.nn.sigmoid(gi[:, 0:H] + gh[:, 0:H])
        z = jax.nn.sigmoid(gi[:, H:2 * H] + gh[:, H:2 * H])
        n = jnp.tanh(gi[:, 2 * H:3 * H] + r * (gh[:, 2 * H:3 * H] + b_ghn))
        return (1.0 - z) * n + z * h

    h0 = jnp.zeros((B, H), jnp.float32)
    h1 = jnp.zeros((B, H), jnp.float32)
    prev = jnp.zeros((B, F), jnp.float32)

    # Statically unrolled recurrence: teacher forcing for t < seq_len, then autoregressive
    # feedback of the decoded output (semantics of GRU.train_pro).
    for t in range(seq_len + pred_len - 1):
        inp = x_ref[t] if t < seq_len else prev
        h0 = gru_cell(cat0_scr, F, inp, h0, w0, bgi0, bghn0)
        h1 = gru_cell(cat1_scr, H, h0, h1, w1, bgi1, bghn1)
        prev = jnp.dot(h1, wdec, preferred_element_type=jnp.float32) + bdec
        if t >= seq_len - 1:
            out_ref[t - (seq_len - 1)] = prev


def _prepare_fused_params(params):
    """Fold the encoder into layer-0 input weights and block-place each layer's (Wih, Whh)
    into a single (2*LANE, 2*LANE) fused matrix; pre-merge the r/z gate biases."""
    f32 = jnp.float32
    H = params["whh0_t"].shape[0]
    Fdim = params["wenc_t"].shape[0]
    assert max(Fdim, H) <= LANE and 3 * H <= LANE, "fused block placement assumes small dims"

    wenc, benc = params["wenc_t"].astype(f32), params["benc"].astype(f32)
    wih0, whh0 = params["wih0_t"].astype(f32), params["whh0_t"].astype(f32)
    bih0, bhh0 = params["bih0"].astype(f32), params["bhh0"].astype(f32)
    wih1, whh1 = params["wih1_t"].astype(f32), params["whh1_t"].astype(f32)
    bih1, bhh1 = params["bih1"].astype(f32), params["bhh1"].astype(f32)

    # Encoder Linear folded into the layer-0 input path (exact: no nonlinearity between).
    w0x = wenc @ wih0                       # (F, 3H)
    b0x = benc @ wih0 + bih0                # (1, 3H)

    def fused_weight(w_in, w_h):
        w = jnp.zeros((2 * LANE, 2 * LANE), f32)
        w = w.at[0:w_in.shape[0], 0:3 * H].set(w_in)           # gi block
        w = w.at[LANE:LANE + H, LANE:LANE + 3 * H].set(w_h)    # gh block
        return w

    def gi_bias(b_i, b_h):  # pre-merge r/z biases; n-gate biases stay separate (r * gh_n)
        return jnp.concatenate([b_i[:, :2 * H] + b_h[:, :2 * H], b_i[:, 2 * H:]], axis=1)

    return [
        fused_weight(w0x, whh0), gi_bias(b0x, bhh0), bhh0[:, 2 * H:],
        fused_weight(wih1, whh1), gi_bias(bih1, bhh1), bhh1[:, 2 * H:],
        params["wdec_t"].astype(f32), params["bdec"].astype(f32),
    ]


def gru_forward_pallas(x, params, pred_len):
    """x: (B, seq_len, F) float32 -> (B, pred_len, F) float32."""
    B, seq_len, Fdim = x.shape
    H = params["whh0_t"].shape[0]

    x_tm = jnp.transpose(x, (1, 0, 2)).astype(jnp.float32)     # (seq_len, B, F) time-major
    args = [x_tm] + _prepare_fused_params(params)

    vmem = pl.BlockSpec(memory_space=pltpu.MemorySpace.VMEM)    # full array, VMEM resident
    out = pl.pallas_call(
        functools.partial(gru_rollout_kernel, seq_len=seq_len, pred_len=pred_len,
                          hidden_size=H, feat=Fdim),
        out_shape=jax.ShapeDtypeStruct((pred_len, B, Fdim), jnp.float32),
        in_specs=[vmem] * len(args),
        out_specs=vmem,
        scratch_shapes=[
            pltpu.VMEM((B, 2 * LANE), jnp.float32),   # layer-0 fused [input | hidden]
            pltpu.VMEM((B, 2 * LANE), jnp.float32),   # layer-1 fused [input | hidden]
        ],
    )(*args)
    return jnp.transpose(out, (1, 0, 2))              # (B, pred_len, F)


# ----------------------- pure-JAX reference (for verification) -----------------------
def gru_forward_ref(x, params, pred_len):
    B, seq_len, F = x.shape
    H = params["whh0_t"].shape[0]

    def cell(x_in, h, wih_t, whh_t, bih, bhh):
        gi = x_in @ wih_t + bih
        gh = h @ whh_t + bhh
        i_r, i_z, i_n = gi[:, :H], gi[:, H:2 * H], gi[:, 2 * H:]
        h_r, h_z, h_n = gh[:, :H], gh[:, H:2 * H], gh[:, 2 * H:]
        r = jax.nn.sigmoid(i_r + h_r)
        z = jax.nn.sigmoid(i_z + h_z)
        n = jnp.tanh(i_n + r * h_n)
        return (1.0 - z) * n + z * h

    h0 = jnp.zeros((B, H), jnp.float32)
    h1 = jnp.zeros((B, H), jnp.float32)
    prev_out = jnp.zeros((B, F), jnp.float32)
    outs = []
    for t in range(seq_len + pred_len - 1):
        inp = x[:, t, :] if t < seq_len else prev_out
        enc = inp @ params["wenc_t"] + params["benc"]
        h0 = cell(enc, h0, params["wih0_t"], params["whh0_t"], params["bih0"], params["bhh0"])
        h1 = cell(h0, h1, params["wih1_t"], params["whh1_t"], params["bih1"], params["bhh1"])
        prev_out = h1 @ params["wdec_t"] + params["bdec"]
        if t >= seq_len - 1:
            outs.append(prev_out)
    return jnp.stack(outs, axis=1)                    # (B, pred_len, F)


def init_params(key, features, input_size, hidden_size):
    ks = jax.random.split(key, 12)
    u = lambda k, shape, scale: jax.random.uniform(k, shape, jnp.float32, -scale, scale)
    H = hidden_size
    return {
        # encoder Linear(features -> input_size), stored transposed
        "wenc_t": u(ks[0], (features, input_size), 1.0 / features ** 0.5),
        "benc":   u(ks[1], (1, input_size), 1.0 / features ** 0.5),
        # GRU layer 0
        "wih0_t": u(ks[2], (input_size, 3 * H), 1.0 / H ** 0.5),
        "whh0_t": u(ks[3], (H, 3 * H), 1.0 / H ** 0.5),
        "bih0":   u(ks[4], (1, 3 * H), 1.0 / H ** 0.5),
        "bhh0":   u(ks[5], (1, 3 * H), 1.0 / H ** 0.5),
        # GRU layer 1
        "wih1_t": u(ks[6], (H, 3 * H), 1.0 / H ** 0.5),
        "whh1_t": u(ks[7], (H, 3 * H), 1.0 / H ** 0.5),
        "bih1":   u(ks[8], (1, 3 * H), 1.0 / H ** 0.5),
        "bhh1":   u(ks[9], (1, 3 * H), 1.0 / H ** 0.5),
        # decoder Linear(hidden_size -> features), stored transposed
        "wdec_t": u(ks[10], (H, features), 1.0 / H ** 0.5),
        "bdec":   u(ks[11], (1, features), 1.0 / H ** 0.5),
    }


if __name__ == "__main__":
    features, input_size, hidden_size = 4, 16, 32
    B, seq_len, pred_len = 2, 8, 4

    key = jax.random.PRNGKey(0)
    kx, kp = jax.random.split(key)
    x = jax.random.normal(kx, (B, seq_len, features), jnp.float32)
    params = init_params(kp, features, input_size, hidden_size)

    out = gru_forward_pallas(x, params, pred_len)
    out = jax.block_until_ready(out)

    ref = gru_forward_ref(x, params, pred_len)
    assert out.shape == (B, pred_len, features), out.shape
    assert jnp.allclose(out, ref, atol=1e-4, rtol=1e-4), float(jnp.max(jnp.abs(out - ref)))

    print("KERNEL_OK")
</pallas_src>

<mosaic_0001>
module attributes {stable_mosaic.version = 11 : i64} {
  func.func @gru_rollout_kernel(%arg0: memref<8x2x4xf32, #tpu.memory_space<vmem>>, %arg1: memref<256x256xf32, #tpu.memory_space<vmem>>, %arg2: memref<1x96xf32, #tpu.memory_space<vmem>>, %arg3: memref<1x32xf32, #tpu.memory_space<vmem>>, %arg4: memref<256x256xf32, #tpu.memory_space<vmem>>, %arg5: memref<1x96xf32, #tpu.memory_space<vmem>>, %arg6: memref<1x32xf32, #tpu.memory_space<vmem>>, %arg7: memref<32x4xf32, #tpu.memory_space<vmem>>, %arg8: memref<1x4xf32, #tpu.memory_space<vmem>>, %arg9: memref<4x2x4xf32, #tpu.memory_space<vmem>>, %arg10: memref<2x256xf32, #tpu.memory_space<vmem>>, %arg11: memref<2x256xf32, #tpu.memory_space<vmem>>) attributes {dimension_semantics = [], scalar_prefetch = 0 : i64, scratch_operands = 2 : i64, tpu.core_type = #tpu.core_type<tc>} {
    %c0 = arith.constant 0 : index
    %c0_0 = arith.constant 0 : index
    %0 = vector.load %arg1[%c0, %c0_0] : memref<256x256xf32, #tpu.memory_space<vmem>>, vector<256x256xf32>
    %c0_1 = arith.constant 0 : index
    %c0_2 = arith.constant 0 : index
    %1 = vector.load %arg4[%c0_1, %c0_2] : memref<256x256xf32, #tpu.memory_space<vmem>>, vector<256x256xf32>
    %c0_3 = arith.constant 0 : index
    %c0_4 = arith.constant 0 : index
    %2 = vector.load %arg2[%c0_3, %c0_4] : memref<1x96xf32, #tpu.memory_space<vmem>>, vector<1x96xf32>
    %c0_5 = arith.constant 0 : index
    %c0_6 = arith.constant 0 : index
    %3 = vector.load %arg3[%c0_5, %c0_6] : memref<1x32xf32, #tpu.memory_space<vmem>>, vector<1x32xf32>
    %c0_7 = arith.constant 0 : index
    %c0_8 = arith.constant 0 : index
    %4 = vector.load %arg5[%c0_7, %c0_8] : memref<1x96xf32, #tpu.memory_space<vmem>>, vector<1x96xf32>
    %c0_9 = arith.constant 0 : index
    %c0_10 = arith.constant 0 : index
    %5 = vector.load %arg6[%c0_9, %c0_10] : memref<1x32xf32, #tpu.memory_space<vmem>>, vector<1x32xf32>
    %c0_11 = arith.constant 0 : index
    %c0_12 = arith.constant 0 : index
    %6 = vector.load %arg7[%c0_11, %c0_12] : memref<32x4xf32, #tpu.memory_space<vmem>>, vector<32x4xf32>
    %c0_13 = arith.constant 0 : index
    %c0_14 = arith.constant 0 : index
    %7 = vector.load %arg8[%c0_13, %c0_14] : memref<1x4xf32, #tpu.memory_space<vmem>>, vector<1x4xf32>
    %cst = arith.constant 0.000000e+00 : f32
    %8 = vector.broadcast %cst : f32 to vector<2x256xf32>
    %c0_15 = arith.constant 0 : index
    %c0_16 = arith.constant 0 : index
    %9 = vector.load %arg10[%c0_15, %c0_16] : memref<2x256xf32, #tpu.memory_space<vmem>>, vector<2x256xf32>
    tpu.vector_store %arg10[%c0_15, %c0_16], %8 {strides = array<i32>} : memref<2x256xf32, #tpu.memory_space<vmem>>, vector<2x256xf32>,
    %cst_17 = arith.constant 0.000000e+00 : f32
    %10 = vector.broadcast %cst_17 : f32 to vector<2x256xf32>
    %c0_18 = arith.constant 0 : index
    %c0_19 = arith.constant 0 : index
    %11 = vector.load %arg11[%c0_18, %c0_19] : memref<2x256xf32, #tpu.memory_space<vmem>>, vector<2x256xf32>
    tpu.vector_store %arg11[%c0_18, %c0_19], %10 {strides = array<i32>} : memref<2x256xf32, #tpu.memory_space<vmem>>, vector<2x256xf32>,
    %cst_20 = arith.constant 0.000000e+00 : f32
    %12 = vector.broadcast %cst_20 : f32 to vector<2x32xf32>
    %cst_21 = arith.constant 0.000000e+00 : f32
    %13 = vector.broadcast %cst_21 : f32 to vector<2x32xf32>
    %c0_22 = arith.constant 0 : index
    %c0_23 = arith.constant 0 : index
    %c0_24 = arith.constant 0 : index
    %14 = vector.load %arg0[%c0_22, %c0_23, %c0_24] : memref<8x2x4xf32, #tpu.memory_space<vmem>>, vector<1x2x4xf32>
    %15 = vector.shape_cast %14 : vector<1x2x4xf32> to vector<2x4xf32>
    %c0_25 = arith.constant 0 : index
    %c0_26 = arith.constant 0 : index
    %16 = vector.load %arg10[%c0_25, %c0_26] : memref<2x256xf32, #tpu.memory_space<vmem>>, vector<2x4xf32>
    tpu.vector_store %arg10[%c0_25, %c0_26], %15 {strides = array<i32>} : memref<2x256xf32, #tpu.memory_space<vmem>>, vector<2x4xf32>,
    %c0_27 = arith.constant 0 : index
    %c128 = arith.constant 128 : index
    %17 = vector.load %arg10[%c0_27, %c128] : memref<2x256xf32, #tpu.memory_space<vmem>>, vector<2x32xf32>
    tpu.vector_store %arg10[%c0_27, %c128], %12 {strides = array<i32>} : memref<2x256xf32, #tpu.memory_space<vmem>>, vector<2x32xf32>,
    %c0_28 = arith.constant 0 : index
    %c0_29 = arith.constant 0 : index
    %18 = vector.load %arg10[%c0_28, %c0_29] : memref<2x256xf32, #tpu.memory_space<vmem>>, vector<2x256xf32>
    %cst_30 = arith.constant dense<0.000000e+00> : vector<2x256xf32>
    %19 = tpu.matmul %18, %0, %cst_30 {dimension_numbers = #tpu.dot_dimension_numbers<[1], [0], [0], [1], [0, 0, 1, 1], [], []>} : vector<2x256xf32>, vector<256x256xf32>, vector<2x256xf32> -> vector<2x256xf32>
    %20 = vector.extract_strided_slice %19 {offsets = [0, 0], sizes = [2, 96], strides = [1, 1]} : vector<2x256xf32> to vector<2x96xf32>
    %21 = vector.broadcast %2 : vector<1x96xf32> to vector<2x96xf32>
    %22 = arith.addf %20, %21 : vector<2x96xf32>
    %23 = vector.extract_strided_slice %19 {offsets = [0, 128], sizes = [2, 96], strides = [1, 1]} : vector<2x256xf32> to vector<2x96xf32>
    %24 = vector.extract_strided_slice %22 {offsets = [0, 0], sizes = [2, 32], strides = [1, 1]} : vector<2x96xf32> to vector<2x32xf32>
    %25 = vector.extract_strided_slice %23 {offsets = [0, 0], sizes = [2, 32], strides = [1, 1]} : vector<2x96xf32> to vector<2x32xf32>
    %26 = arith.addf %24, %25 : vector<2x32xf32>
    %27 = arith.negf %26 : vector<2x32xf32>
    %28 = math.exp %27 : vector<2x32xf32>
    %cst_31 = arith.constant 1.000000e+00 : f32
    %29 = vector.broadcast %cst_31 : f32 to vector<2x32xf32>
    %30 = arith.addf %29, %28 : vector<2x32xf32>
    %31 = arith.divf %29, %30 : vector<2x32xf32>
    %32 = vector.extract_strided_slice %22 {offsets = [0, 32], sizes = [2, 32], strides = [1, 1]} : vector<2x96xf32> to vector<2x32xf32>
    %33 = vector.extract_strided_slice %23 {offsets = [0, 32], sizes = [2, 32], strides = [1, 1]} : vector<2x96xf32> to vector<2x32xf32>
    %34 = arith.addf %32, %33 : vector<2x32xf32>
    %35 = arith.negf %34 : vector<2x32xf32>
    %36 = math.exp %35 : vector<2x32xf32>
    %cst_32 = arith.constant 1.000000e+00 : f32
    %37 = vector.broadcast %cst_32 : f32 to vector<2x32xf32>
    %38 = arith.addf %37, %36 : vector<2x32xf32>
    %39 = arith.divf %37, %38 : vector<2x32xf32>
    %40 = vector.extract_strided_slice %22 {offsets = [0, 64], sizes = [2, 32], strides = [1, 1]} : vector<2x96xf32> to vector<2x32xf32>
    %41 = vector.extract_strided_slice %23 {offsets = [0, 64], sizes = [2, 32], strides = [1, 1]} : vector<2x96xf32> to vector<2x32xf32>
    %42 = vector.broadcast %3 : vector<1x32xf32> to vector<2x32xf32>
    %43 = arith.addf %41, %42 : vector<2x32xf32>
    %44 = arith.mulf %31, %43 : vector<2x32xf32>
    %45 = arith.addf %40, %44 : vector<2x32xf32>
    %46 = math.tanh %45 : vector<2x32xf32>
    %cst_33 = arith.constant 1.000000e+00 : f32
    %47 = vector.broadcast %cst_33 : f32 to vector<2x32xf32>
    %48 = arith.subf %47, %39 : vector<2x32xf32>
    %49 = arith.mulf %48, %46 : vector<2x32xf32>
    %50 = arith.mulf %39, %12 : vector<2x32xf32>
    %51 = arith.addf %49, %50 : vector<2x32xf32>
    %c0_34 = arith.constant 0 : index
    %c0_35 = arith.constant 0 : index
    %52 = vector.load %arg11[%c0_34, %c0_35] : memref<2x256xf32, #tpu.memory_space<vmem>>, vector<2x32xf32>
    tpu.vector_store %arg11[%c0_34, %c0_35], %51 {strides = array<i32>} : memref<2x256xf32, #tpu.memory_space<vmem>>, vector<2x32xf32>,
    %c0_36 = arith.constant 0 : index
    %c128_37 = arith.constant 128 : index
    %53 = vector.load %arg11[%c0_36, %c128_37] : memref<2x256xf32, #tpu.memory_space<vmem>>, vector<2x32xf32>
    tpu.vector_store %arg11[%c0_36, %c128_37], %13 {strides = array<i32>} : memref<2x256xf32, #tpu.memory_space<vmem>>, vector<2x32xf32>,
    %c0_38 = arith.constant 0 : index
    %c0_39 = arith.constant 0 : index
    %54 = vector.load %arg11[%c0_38, %c0_39] : memref<2x256xf32, #tpu.memory_space<vmem>>, vector<2x256xf32>
    %cst_40 = arith.constant dense<0.000000e+00> : vector<2x256xf32>
    %55 = tpu.matmul %54, %1, %cst_40 {dimension_numbers = #tpu.dot_dimension_numbers<[1], [0], [0], [1], [0, 0, 1, 1], [], []>} : vector<2x256xf32>, vector<256x256xf32>, vector<2x256xf32> -> vector<2x256xf32>
    %56 = vector.extract_strided_slice %55 {offsets = [0, 0], sizes = [2, 96], strides = [1, 1]} : vector<2x256xf32> to vector<2x96xf32>
    %57 = vector.broadcast %4 : vector<1x96xf32> to vector<2x96xf32>
    %58 = arith.addf %56, %57 : vector<2x96xf32>
    %59 = vector.extract_strided_slice %55 {offsets = [0, 128], sizes = [2, 96], strides = [1, 1]} : vector<2x256xf32> to vector<2x96xf32>
    %60 = vector.extract_strided_slice %58 {offsets = [0, 0], sizes = [2, 32], strides = [1, 1]} : vector<2x96xf32> to vector<2x32xf32>
    %61 = vector.extract_strided_slice %59 {offsets = [0, 0], sizes = [2, 32], strides = [1, 1]} : vector<2x96xf32> to vector<2x32xf32>
    %62 = arith.addf %60, %61 : vector<2x32xf32>
    %63 = arith.negf %62 : vector<2x32xf32>
    %64 = math.exp %63 : vector<2x32xf32>
    %cst_41 = arith.constant 1.000000e+00 : f32
    %65 = vector.broadcast %cst_41 : f32 to vector<2x32xf32>
    %66 = arith.addf %65, %64 : vector<2x32xf32>
    %67 = arith.divf %65, %66 : vector<2x32xf32>
    %68 = vector.extract_strided_slice %58 {offsets = [0, 32], sizes = [2, 32], strides = [1, 1]} : vector<2x96xf32> to vector<2x32xf32>
    %69 = vector.extract_strided_slice %59 {offsets = [0, 32], sizes = [2, 32], strides = [1, 1]} : vector<2x96xf32> to vector<2x32xf32>
    %70 = arith.addf %68, %69 : vector<2x32xf32>
    %71 = arith.negf %70 : vector<2x32xf32>
    %72 = math.exp %71 : vector<2x32xf32>
    %cst_42 = arith.constant 1.000000e+00 : f32
    %73 = vector.broadcast %cst_42 : f32 to vector<2x32xf32>
    %74 = arith.addf %73, %72 : vector<2x32xf32>
    %75 = arith.divf %73, %74 : vector<2x32xf32>
    %76 = vector.extract_strided_slice %58 {offsets = [0, 64], sizes = [2, 32], strides = [1, 1]} : vector<2x96xf32> to vector<2x32xf32>
    %77 = vector.extract_strided_slice %59 {offsets = [0, 64], sizes = [2, 32], strides = [1, 1]} : vector<2x96xf32> to vector<2x32xf32>
    %78 = vector.broadcast %5 : vector<1x32xf32> to vector<2x32xf32>
    %79 = arith.addf %77, %78 : vector<2x32xf32>
    %80 = arith.mulf %67, %79 : vector<2x32xf32>
    %81 = arith.addf %76, %80 : vector<2x32xf32>
    %82 = math.tanh %81 : vector<2x32xf32>
    %cst_43 = arith.constant 1.000000e+00 : f32
    %83 = vector.broadcast %cst_43 : f32 to vector<2x32xf32>
    %84 = arith.subf %83, %75 : vector<2x32xf32>
    %85 = arith.mulf %84, %82 : vector<2x32xf32>
    %86 = arith.mulf %75, %13 : vector<2x32xf32>
    %87 = arith.addf %85, %86 : vector<2x32xf32>
    %c1 = arith.constant 1 : index
    %c0_44 = arith.constant 0 : index
    %c0_45 = arith.constant 0 : index
    %88 = vector.load %arg0[%c1, %c0_44, %c0_45] : memref<8x2x4xf32, #tpu.memory_space<vmem>>, vector<1x2x4xf32>
    %89 = vector.shape_cast %88 : vector<1x2x4xf32> to vector<2x4xf32>
    %c0_46 = arith.constant 0 : index
    %c0_47 = arith.constant 0 : index
    %90 = vector.load %arg10[%c0_46, %c0_47] : memref<2x256xf32, #tpu.memory_space<vmem>>, vector<2x4xf32>
    tpu.vector_store %arg10[%c0_46, %c0_47], %89 {strides = array<i32>} : memref<2x256xf32, #tpu.memory_space<vmem>>, vector<2x4xf32>,
    %c0_48 = arith.constant 0 : index
    %c128_49 = arith.constant 128 : index
    %91 = vector.load %arg10[%c0_48, %c128_49] : memref<2x256xf32, #tpu.memory_space<vmem>>, vector<2x32xf32>
    tpu.vector_store %arg10[%c0_48, %c128_49], %51 {strides = array<i32>} : memref<2x256xf32, #tpu.memory_space<vmem>>, vector<2x32xf32>,
    %c0_50 = arith.constant 0 : index
    %c0_51 = arith.constant 0 : index
    %92 = vector.load %arg10[%c0_50, %c0_51] : memref<2x256xf32, #tpu.memory_space<vmem>>, vector<2x256xf32>
    %cst_52 = arith.constant dense<0.000000e+00> : vector<2x256xf32>
    %93 = tpu.matmul %92, %0, %cst_52 {dimension_numbers = #tpu.dot_dimension_numbers<[1], [0], [0], [1], [0, 0, 1, 1], [], []>} : vector<2x256xf32>, vector<256x256xf32>, vector<2x256xf32> -> vector<2x256xf32>
    %94 = vector.extract_strided_slice %93 {offsets = [0, 0], sizes = [2, 96], strides = [1, 1]} : vector<2x256xf32> to vector<2x96xf32>
    %95 = vector.broadcast %2 : vector<1x96xf32> to vector<2x96xf32>
    %96 = arith.addf %94, %95 : vector<2x96xf32>
    %97 = vector.extract_strided_slice %93 {offsets = [0, 128], sizes = [2, 96], strides = [1, 1]} : vector<2x256xf32> to vector<2x96xf32>
    %98 = vector.extract_strided_slice %96 {offsets = [0, 0], sizes = [2, 32], strides = [1, 1]} : vector<2x96xf32> to vector<2x32xf32>
    %99 = vector.extract_strided_slice %97 {offsets = [0, 0], sizes = [2, 32], strides = [1, 1]} : vector<2x96xf32> to vector<2x32xf32>
    %100 = arith.addf %98, %99 : vector<2x32xf32>
    %101 = arith.negf %100 : vector<2x32xf32>
    %102 = math.exp %101 : vector<2x32xf32>
    %cst_53 = arith.constant 1.000000e+00 : f32
    %103 = vector.broadcast %cst_53 : f32 to vector<2x32xf32>
    %104 = arith.addf %103, %102 : vector<2x32xf32>
    %105 = arith.divf %103, %104 : vector<2x32xf32>
    %106 = vector.extract_strided_slice %96 {offsets = [0, 32], sizes = [2, 32], strides = [1, 1]} : vector<2x96xf32> to vector<2x32xf32>
    %107 = vector.extract_strided_slice %97 {offsets = [0, 32], sizes = [2, 32], strides = [1, 1]} : vector<2x96xf32> to vector<2x32xf32>
    %108 = arith.addf %106, %107 : vector<2x32xf32>
    %109 = arith.negf %108 : vector<2x32xf32>
    %110 = math.exp %109 : vector<2x32xf32>
    %cst_54 = arith.constant 1.000000e+00 : f32
    %111 = vector.broadcast %cst_54 : f32 to vector<2x32xf32>
    %112 = arith.addf %111, %110 : vector<2x32xf32>
    %113 = arith.divf %111, %112 : vector<2x32xf32>
    %114 = vector.extract_strided_slice %96 {offsets = [0, 64], sizes = [2, 32], strides = [1, 1]} : vector<2x96xf32> to vector<2x32xf32>
    %115 = vector.extract_strided_slice %97 {offsets = [0, 64], sizes = [2, 32], strides = [1, 1]} : vector<2x96xf32> to vector<2x32xf32>
    %116 = vector.broadcast %3 : vector<1x32xf32> to vector<2x32xf32>
    %117 = arith.addf %115, %116 : vector<2x32xf32>
    %118 = arith.mulf %105, %117 : vector<2x32xf32>
    %119 = arith.addf %114, %118 : vector<2x32xf32>
    %120 = math.tanh %119 : vector<2x32xf32>
    %cst_55 = arith.constant 1.000000e+00 : f32
    %121 = vector.broadcast %cst_55 : f32 to vector<2x32xf32>
    %122 = arith.subf %121, %113 : vector<2x32xf32>
    %123 = arith.mulf %122, %120 : vector<2x32xf32>
    %124 = arith.mulf %113, %51 : vector<2x32xf32>
    %125 = arith.addf %123, %124 : vector<2x32xf32>
    %c0_56 = arith.constant 0 : index
    %c0_57 = arith.constant 0 : index
    %126 = vector.load %arg11[%c0_56, %c0_57] : memref<2x256xf32, #tpu.memory_space<vmem>>, vector<2x32xf32>
    tpu.vector_store %arg11[%c0_56, %c0_57], %125 {strides = array<i32>} : memref<2x256xf32, #tpu.memory_space<vmem>>, vector<2x32xf32>,
    %c0_58 = arith.constant 0 : index
    %c128_59 = arith.constant 128 : index
    %127 = vector.load %arg11[%c0_58, %c128_59] : memref<2x256xf32, #tpu.memory_space<vmem>>, vector<2x32xf32>
    tpu.vector_store %arg11[%c0_58, %c128_59], %87 {strides = array<i32>} : memref<2x256xf32, #tpu.memory_space<vmem>>, vector<2x32xf32>,
    %c0_60 = arith.constant 0 : index
    %c0_61 = arith.constant 0 : index
    %128 = vector.load %arg11[%c0_60, %c0_61] : memref<2x256xf32, #tpu.memory_space<vmem>>, vector<2x256xf32>
    %cst_62 = arith.constant dense<0.000000e+00> : vector<2x256xf32>
    %129 = tpu.matmul %128, %1, %cst_62 {dimension_numbers = #tpu.dot_dimension_numbers<[1], [0], [0], [1], [0, 0, 1, 1], [], []>} : vector<2x256xf32>, vector<256x256xf32>, vector<2x256xf32> -> vector<2x256xf32>
    %130 = vector.extract_strided_slice %129 {offsets = [0, 0], sizes = [2, 96], strides = [1, 1]} : vector<2x256xf32> to vector<2x96xf32>
    %131 = vector.broadcast %4 : vector<1x96xf32> to vector<2x96xf32>
    %132 = arith.addf %130, %131 : vector<2x96xf32>
    %133 = vector.extract_strided_slice %129 {offsets = [0, 128], sizes = [2, 96], strides = [1, 1]} : vector<2x256xf32> to vector<2x96xf32>
    %134 = vector.extract_strided_slice %132 {offsets = [0, 0], sizes = [2, 32], strides = [1, 1]} : vector<2x96xf32> to vector<2x32xf32>
    %135 = vector.extract_strided_slice %133 {offsets = [0, 0], sizes = [2, 32], strides = [1, 1]} : vector<2x96xf32> to vector<2x32xf32>
    %136 = arith.addf %134, %135 : vector<2x32xf32>
    %137 = arith.negf %136 : vector<2x32xf32>
    %138 = math.exp %137 : vector<2x32xf32>
    %cst_63 = arith.constant 1.000000e+00 : f32
    %139 = vector.broadcast %cst_63 : f32 to vector<2x32xf32>
    %140 = arith.addf %139, %138 : vector<2x32xf32>
    %141 = arith.divf %139, %140 : vector<2x32xf32>
    %142 = vector.extract_strided_slice %132 {offsets = [0, 32], sizes = [2, 32], strides = [1, 1]} : vector<2x96xf32> to vector<2x32xf32>
    %143 = vector.extract_strided_slice %133 {offsets = [0, 32], sizes = [2, 32], strides = [1, 1]} : vector<2x96xf32> to vector<2x32xf32>
    %144 = arith.addf %142, %143 : vector<2x32xf32>
    %145 = arith.negf %144 : vector<2x32xf32>
    %146 = math.exp %145 : vector<2x32xf32>
    %cst_64 = arith.constant 1.000000e+00 : f32
    %147 = vector.broadcast %cst_64 : f32 to vector<2x32xf32>
    %148 = arith.addf %147, %146 : vector<2x32xf32>
    %149 = arith.divf %147, %148 : vector<2x32xf32>
    %150 = vector.extract_strided_slice %132 {offsets = [0, 64], sizes = [2, 32], strides = [1, 1]} : vector<2x96xf32> to vector<2x32xf32>
    %151 = vector.extract_strided_slice %133 {offsets = [0, 64], sizes = [2, 32], strides = [1, 1]} : vector<2x96xf32> to vector<2x32xf32>
    %152 = vector.broadcast %5 : vector<1x32xf32> to vector<2x32xf32>
    %153 = arith.addf %151, %152 : vector<2x32xf32>
    %154 = arith.mulf %141, %153 : vector<2x32xf32>
    %155 = arith.addf %150, %154 : vector<2x32xf32>
    %156 = math.tanh %155 : vector<2x32xf32>
    %cst_65 = arith.constant 1.000000e+00 : f32
    %157 = vector.broadcast %cst_65 : f32 to vector<2x32xf32>
    %158 = arith.subf %157, %149 : vector<2x32xf32>
    %159 = arith.mulf %158, %156 : vector<2x32xf32>
    %160 = arith.mulf %149, %87 : vector<2x32xf32>
    %161 = arith.addf %159, %160 : vector<2x32xf32>
    %c2 = arith.constant 2 : index
    %c0_66 = arith.constant 0 : index
    %c0_67 = arith.constant 0 : index
    %162 = vector.load %arg0[%c2, %c0_66, %c0_67] : memref<8x2x4xf32, #tpu.memory_space<vmem>>, vector<1x2x4xf32>
    %163 = vector.shape_cast %162 : vector<1x2x4xf32> to vector<2x4xf32>
    %c0_68 = arith.constant 0 : index
    %c0_69 = arith.constant 0 : index
    %164 = vector.load %arg10[%c0_68, %c0_69] : memref<2x256xf32, #tpu.memory_space<vmem>>, vector<2x4xf32>
    tpu.vector_store %arg10[%c0_68, %c0_69], %163 {strides = array<i32>} : memref<2x256xf32, #tpu.memory_space<vmem>>, vector<2x4xf32>,
    %c0_70 = arith.constant 0 : index
    %c128_71 = arith.constant 128 : index
    %165 = vector.load %arg10[%c0_70, %c128_71] : memref<2x256xf32, #tpu.memory_space<vmem>>, vector<2x32xf32>
    tpu.vector_store %arg10[%c0_70, %c128_71], %125 {strides = array<i32>} : memref<2x256xf32, #tpu.memory_space<vmem>>, vector<2x32xf32>,
    %c0_72 = arith.constant 0 : index
    %c0_73 = arith.constant 0 : index
    %166 = vector.load %arg10[%c0_72, %c0_73] : memref<2x256xf32, #tpu.memory_space<vmem>>, vector<2x256xf32>
    %cst_74 = arith.constant dense<0.000000e+00> : vector<2x256xf32>
    %167 = tpu.matmul %166, %0, %cst_74 {dimension_numbers = #tpu.dot_dimension_numbers<[1], [0], [0], [1], [0, 0, 1, 1], [], []>} : vector<2x256xf32>, vector<256x256xf32>, vector<2x256xf32> -> vector<2x256xf32>
    %168 = vector.extract_strided_slice %167 {offsets = [0, 0], sizes = [2, 96], strides = [1, 1]} : vector<2x256xf32> to vector<2x96xf32>
    %169 = vector.broadcast %2 : vector<1x96xf32> to vector<2x96xf32>
    %170 = arith.addf %168, %169 : vector<2x96xf32>
    %171 = vector.extract_strided_slice %167 {offsets = [0, 128], sizes = [2, 96], strides = [1, 1]} : vector<2x256xf32> to vector<2x96xf32>
    %172 = vector.extract_strided_slice %170 {offsets = [0, 0], sizes = [2, 32], strides = [1, 1]} : vector<2x96xf32> to vector<2x32xf32>
    %173 = vector.extract_strided_slice %171 {offsets = [0, 0], sizes = [2, 32], strides = [1, 1]} : vector<2x96xf32> to vector<2x32xf32>
    %174 = arith.addf %172, %173 : vector<2x32xf32>
    %175 = arith.negf %174 : vector<2x32xf32>
    %176 = math.exp %175 : vector<2x32xf32>
    %cst_75 = arith.constant 1.000000e+00 : f32
    %177 = vector.broadcast %cst_75 : f32 to vector<2x32xf32>
    %178 = arith.addf %177, %176 : vector<2x32xf32>
    %179 = arith.divf %177, %178 : vector<2x32xf32>
    %180 = vector.extract_strided_slice %170 {offsets = [0, 32], sizes = [2, 32], strides = [1, 1]} : vector<2x96xf32> to vector<2x32xf32>
    %181 = vector.extract_strided_slice %171 {offsets = [0, 32], sizes = [2, 32], strides = [1, 1]} : vector<2x96xf32> to vector<2x32xf32>
    %182 = arith.addf %180, %181 : vector<2x32xf32>
    %183 = arith.negf %182 : vector<2x32xf32>
    %184 = math.exp %183 : vector<2x32xf32>
    %cst_76 = arith.constant 1.000000e+00 : f32
    %185 = vector.broadcast %cst_76 : f32 to vector<2x32xf32>
    %186 = arith.addf %185, %184 : vector<2x32xf32>
    %187 = arith.divf %185, %186 : vector<2x32xf32>
    %188 = vector.extract_strided_slice %170 {offsets = [0, 64], sizes = [2, 32], strides = [1, 1]} : vector<2x96xf32> to vector<2x32xf32>
    %189 = vector.extract_strided_slice %171 {offsets = [0, 64], sizes = [2, 32], strides = [1, 1]} : vector<2x96xf32> to vector<2x32xf32>
    %190 = vector.broadcast %3 : vector<1x32xf32> to vector<2x32xf32>
    %191 = arith.addf %189, %190 : vector<2x32xf32>
    %192 = arith.mulf %179, %191 : vector<2x32xf32>
    %193 = arith.addf %188, %192 : vector<2x32xf32>
    %194 = math.tanh %193 : vector<2x32xf32>
    %cst_77 = arith.constant 1.000000e+00 : f32
    %195 = vector.broadcast %cst_77 : f32 to vector<2x32xf32>
    %196 = arith.subf %195, %187 : vector<2x32xf32>
    %197 = arith.mulf %196, %194 : vector<2x32xf32>
    %198 = arith.mulf %187, %125 : vector<2x32xf32>
    %199 = arith.addf %197, %198 : vector<2x32xf32>
    %c0_78 = arith.constant 0 : index
    %c0_79 = arith.constant 0 : index
    %200 = vector.load %arg11[%c0_78, %c0_79] : memref<2x256xf32, #tpu.memory_space<vmem>>, vector<2x32xf32>
    tpu.vector_store %arg11[%c0_78, %c0_79], %199 {strides = array<i32>} : memref<2x256xf32, #tpu.memory_space<vmem>>, vector<2x32xf32>,
    %c0_80 = arith.constant 0 : index
    %c128_81 = arith.constant 128 : index
    %201 = vector.load %arg11[%c0_80, %c128_81] : memref<2x256xf32, #tpu.memory_space<vmem>>, vector<2x32xf32>
    tpu.vector_store %arg11[%c0_80, %c128_81], %161 {strides = array<i32>} : memref<2x256xf32, #tpu.memory_space<vmem>>, vector<2x32xf32>,
    %c0_82 = arith.constant 0 : index
    %c0_83 = arith.constant 0 : index
    %202 = vector.load %arg11[%c0_82, %c0_83] : memref<2x256xf32, #tpu.memory_space<vmem>>, vector<2x256xf32>
    %cst_84 = arith.constant dense<0.000000e+00> : vector<2x256xf32>
    %203 = tpu.matmul %202, %1, %cst_84 {dimension_numbers = #tpu.dot_dimension_numbers<[1], [0], [0], [1], [0, 0, 1, 1], [], []>} : vector<2x256xf32>, vector<256x256xf32>, vector<2x256xf32> -> vector<2x256xf32>
    %204 = vector.extract_strided_slice %203 {offsets = [0, 0], sizes = [2, 96], strides = [1, 1]} : vector<2x256xf32> to vector<2x96xf32>
    %205 = vector.broadcast %4 : vector<1x96xf32> to vector<2x96xf32>
    %206 = arith.addf %204, %205 : vector<2x96xf32>
    %207 = vector.extract_strided_slice %203 {offsets = [0, 128], sizes = [2, 96], strides = [1, 1]} : vector<2x256xf32> to vector<2x96xf32>
    %208 = vector.extract_strided_slice %206 {offsets = [0, 0], sizes = [2, 32], strides = [1, 1]} : vector<2x96xf32> to vector<2x32xf32>
    %209 = vector.extract_strided_slice %207 {offsets = [0, 0], sizes = [2, 32], strides = [1, 1]} : vector<2x96xf32> to vector<2x32xf32>
    %210 = arith.addf %208, %209 : vector<2x32xf32>
    %211 = arith.negf %210 : vector<2x32xf32>
    %212 = math.exp %211 : vector<2x32xf32>
    %cst_85 = arith.constant 1.000000e+00 : f32
    %213 = vector.broadcast %cst_85 : f32 to vector<2x32xf32>
    %214 = arith.addf %213, %212 : vector<2x32xf32>
    %215 = arith.divf %213, %214 : vector<2x32xf32>
    %216 = vector.extract_strided_slice %206 {offsets = [0, 32], sizes = [2, 32], strides = [1, 1]} : vector<2x96xf32> to vector<2x32xf32>
    %217 = vector.extract_strided_slice %207 {offsets = [0, 32], sizes = [2, 32], strides = [1, 1]} : vector<2x96xf32> to vector<2x32xf32>
    %218 = arith.addf %216, %217 : vector<2x32xf32>
    %219 = arith.negf %218 : vector<2x32xf32>
    %220 = math.exp %219 : vector<2x32xf32>
    %cst_86 = arith.constant 1.000000e+00 : f32
    %221 = vector.broadcast %cst_86 : f32 to vector<2x32xf32>
    %222 = arith.addf %221, %220 : vector<2x32xf32>
    %223 = arith.divf %221, %222 : vector<2x32xf32>
    %224 = vector.extract_strided_slice %206 {offsets = [0, 64], sizes = [2, 32], strides = [1, 1]} : vector<2x96xf32> to vector<2x32xf32>
    %225 = vector.extract_strided_slice %207 {offsets = [0, 64], sizes = [2, 32], strides = [1, 1]} : vector<2x96xf32> to vector<2x32xf32>
    %226 = vector.broadcast %5 : vector<1x32xf32> to vector<2x32xf32>
    %227 = arith.addf %225, %226 : vector<2x32xf32>
    %228 = arith.mulf %215, %227 : vector<2x32xf32>
    %229 = arith.addf %224, %228 : vector<2x32xf32>
    %230 = math.tanh %229 : vector<2x32xf32>
    %cst_87 = arith.constant 1.000000e+00 : f32
    %231 = vector.broadcast %cst_87 : f32 to vector<2x32xf32>
    %232 = arith.subf %231, %223 : vector<2x32xf32>
    %233 = arith.mulf %232, %230 : vector<2x32xf32>
    %234 = arith.mulf %223, %161 : vector<2x32xf32>
    %235 = arith.addf %233, %234 : vector<2x32xf32>
    %c3 = arith.constant 3 : index
    %c0_88 = arith.constant 0 : index
    %c0_89 = arith.constant 0 : index
    %236 = vector.load %arg0[%c3, %c0_88, %c0_89] : memref<8x2x4xf32, #tpu.memory_space<vmem>>, vector<1x2x4xf32>
    %237 = vector.shape_cast %236 : vector<1x2x4xf32> to vector<2x4xf32>
    %c0_90 = arith.constant 0 : index
    %c0_91 = arith.constant 0 : index
    %238 = vector.load %arg10[%c0_90, %c0_91] : memref<2x256xf32, #tpu.memory_space<vmem>>, vector<2x4xf32>
    tpu.vector_store %arg10[%c0_90, %c0_91], %237 {strides = array<i32>} : memref<2x256xf32, #tpu.memory_space<vmem>>, vector<2x4xf32>,
    %c0_92 = arith.constant 0 : index
    %c128_93 = arith.constant 128 : index
    %239 = vector.load %arg10[%c0_92, %c128_93] : memref<2x256xf32, #tpu.memory_space<vmem>>, vector<2x32xf32>
    tpu.vector_store %arg10[%c0_92, %c128_93], %199 {strides = array<i32>} : memref<2x256xf32, #tpu.memory_space<vmem>>, vector<2x32xf32>,
    %c0_94 = arith.constant 0 : index
    %c0_95 = arith.constant 0 : index
    %240 = vector.load %arg10[%c0_94, %c0_95] : memref<2x256xf32, #tpu.memory_space<vmem>>, vector<2x256xf32>
    %cst_96 = arith.constant dense<0.000000e+00> : vector<2x256xf32>
    %241 = tpu.matmul %240, %0, %cst_96 {dimension_numbers = #tpu.dot_dimension_numbers<[1], [0], [0], [1], [0, 0, 1, 1], [], []>} : vector<2x256xf32>, vector<256x256xf32>, vector<2x256xf32> -> vector<2x256xf32>
    %242 = vector.extract_strided_slice %241 {offsets = [0, 0], sizes = [2, 96], strides = [1, 1]} : vector<2x256xf32> to vector<2x96xf32>
    %243 = vector.broadcast %2 : vector<1x96xf32> to vector<2x96xf32>
    %244 = arith.addf %242, %243 : vector<2x96xf32>
    %245 = vector.extract_strided_slice %241 {offsets = [0, 128], sizes = [2, 96], strides = [1, 1]} : vector<2x256xf32> to vector<2x96xf32>
    %246 = vector.extract_strided_slice %244 {offsets = [0, 0], sizes = [2, 32], strides = [1, 1]} : vector<2x96xf32> to vector<2x32xf32>
    %247 = vector.extract_strided_slice %245 {offsets = [0, 0], sizes = [2, 32], strides = [1, 1]} : vector<2x96xf32> to vector<2x32xf32>
    %248 = arith.addf %246, %247 : vector<2x32xf32>
    %249 = arith.negf %248 : vector<2x32xf32>
    %250 = math.exp %249 : vector<2x32xf32>
    %cst_97 = arith.constant 1.000000e+00 : f32
    %251 = vector.broadcast %cst_97 : f32 to vector<2x32xf32>
    %252 = arith.addf %251, %250 : vector<2x32xf32>
    %253 = arith.divf %251, %252 : vector<2x32xf32>
    %254 = vector.extract_strided_slice %244 {offsets = [0, 32], sizes = [2, 32], strides = [1, 1]} : vector<2x96xf32> to vector<2x32xf32>
    %255 = vector.extract_strided_slice %245 {offsets = [0, 32], sizes = [2, 32], strides = [1, 1]} : vector<2x96xf32> to vector<2x32xf32>
    %256 = arith.addf %254, %255 : vector<2x32xf32>
    %257 = arith.negf %256 : vector<2x32xf32>
    %258 = math.exp %257 : vector<2x32xf32>
    %cst_98 = arith.constant 1.000000e+00 : f32
    %259 = vector.broadcast %cst_98 : f32 to vector<2x32xf32>
    %260 = arith.addf %259, %258 : vector<2x32xf32>
    %261 = arith.divf %259, %260 : vector<2x32xf32>
    %262 = vector.extract_strided_slice %244 {offsets = [0, 64], sizes = [2, 32], strides = [1, 1]} : vector<2x96xf32> to vector<2x32xf32>
    %263 = vector.extract_strided_slice %245 {offsets = [0, 64], sizes = [2, 32], strides = [1, 1]} : vector<2x96xf32> to vector<2x32xf32>
    %264 = vector.broadcast %3 : vector<1x32xf32> to vector<2x32xf32>
    %265 = arith.addf %263, %264 : vector<2x32xf32>
    %266 = arith.mulf %253, %265 : vector<2x32xf32>
    %267 = arith.addf %262, %266 : vector<2x32xf32>
    %268 = math.tanh %267 : vector<2x32xf32>
    %cst_99 = arith.constant 1.000000e+00 : f32
    %269 = vector.broadcast %cst_99 : f32 to vector<2x32xf32>
    %270 = arith.subf %269, %261 : vector<2x32xf32>
    %271 = arith.mulf %270, %268 : vector<2x32xf32>
    %272 = arith.mulf %261, %199 : vector<2x32xf32>
    %273 = arith.addf %271, %272 : vector<2x32xf32>
    %c0_100 = arith.constant 0 : index
    %c0_101 = arith.constant 0 : index
    %274 = vector.load %arg11[%c0_100, %c0_101] : memref<2x256xf32, #tpu.memory_space<vmem>>, vector<2x32xf32>
    tpu.vector_store %arg11[%c0_100, %c0_101], %273 {strides = array<i32>} : memref<2x256xf32, #tpu.memory_space<vmem>>, vector<2x32xf32>,
    %c0_102 = arith.constant 0 : index
    %c128_103 = arith.constant 128 : index
    %275 = vector.load %arg11[%c0_102, %c128_103] : memref<2x256xf32, #tpu.memory_space<vmem>>, vector<2x32xf32>
    tpu.vector_store %arg11[%c0_102, %c128_103], %235 {strides = array<i32>} : memref<2x256xf32, #tpu.memory_space<vmem>>, vector<2x32xf32>,
    %c0_104 = arith.constant 0 : index
    %c0_105 = arith.constant 0 : index
    %276 = vector.load %arg11[%c0_104, %c0_105] : memref<2x256xf32, #tpu.memory_space<vmem>>, vector<2x256xf32>
    %cst_106 = arith.constant dense<0.000000e+00> : vector<2x256xf32>
    %277 = tpu.matmul %276, %1, %cst_106 {dimension_numbers = #tpu.dot_dimension_numbers<[1], [0], [0], [1], [0, 0, 1, 1], [], []>} : vector<2x256xf32>, vector<256x256xf32>, vector<2x256xf32> -> vector<2x256xf32>
    %278 = vector.extract_strided_slice %277 {offsets = [0, 0], sizes = [2, 96], strides = [1, 1]} : vector<2x256xf32> to vector<2x96xf32>
    %279 = vector.broadcast %4 : vector<1x96xf32> to vector<2x96xf32>
    %280 = arith.addf %278, %279 : vector<2x96xf32>
    %281 = vector.extract_strided_slice %277 {offsets = [0, 128], sizes = [2, 96], strides = [1, 1]} : vector<2x256xf32> to vector<2x96xf32>
    %282 = vector.extract_strided_slice %280 {offsets = [0, 0], sizes = [2, 32], strides = [1, 1]} : vector<2x96xf32> to vector<2x32xf32>
    %283 = vector.extract_strided_slice %281 {offsets = [0, 0], sizes = [2, 32], strides = [1, 1]} : vector<2x96xf32> to vector<2x32xf32>
    %284 = arith.addf %282, %283 : vector<2x32xf32>
    %285 = arith.negf %284 : vector<2x32xf32>
    %286 = math.exp %285 : vector<2x32xf32>
    %cst_107 = arith.constant 1.000000e+00 : f32
    %287 = vector.broadcast %cst_107 : f32 to vector<2x32xf32>
    %288 = arith.addf %287, %286 : vector<2x32xf32>
    %289 = arith.divf %287, %288 : vector<2x32xf32>
    %290 = vector.extract_strided_slice %280 {offsets = [0, 32], sizes = [2, 32], strides = [1, 1]} : vector<2x96xf32> to vector<2x32xf32>
    %291 = vector.extract_strided_slice %281 {offsets = [0, 32], sizes = [2, 32], strides = [1, 1]} : vector<2x96xf32> to vector<2x32xf32>
    %292 = arith.addf %290, %291 : vector<2x32xf32>
    %293 = arith.negf %292 : vector<2x32xf32>
    %294 = math.exp %293 : vector<2x32xf32>
    %cst_108 = arith.constant 1.000000e+00 : f32
    %295 = vector.broadcast %cst_108 : f32 to vector<2x32xf32>
    %296 = arith.addf %295, %294 : vector<2x32xf32>
    %297 = arith.divf %295, %296 : vector<2x32xf32>
    %298 = vector.extract_strided_slice %280 {offsets = [0, 64], sizes = [2, 32], strides = [1, 1]} : vector<2x96xf32> to vector<2x32xf32>
    %299 = vector.extract_strided_slice %281 {offsets = [0, 64], sizes = [2, 32], strides = [1, 1]} : vector<2x96xf32> to vector<2x32xf32>
    %300 = vector.broadcast %5 : vector<1x32xf32> to vector<2x32xf32>
    %301 = arith.addf %299, %300 : vector<2x32xf32>
    %302 = arith.mulf %289, %301 : vector<2x32xf32>
    %303 = arith.addf %298, %302 : vector<2x32xf32>
    %304 = math.tanh %303 : vector<2x32xf32>
    %cst_109 = arith.constant 1.000000e+00 : f32
    %305 = vector.broadcast %cst_109 : f32 to vector<2x32xf32>
    %306 = arith.subf %305, %297 : vector<2x32xf32>
    %307 = arith.mulf %306, %304 : vector<2x32xf32>
    %308 = arith.mulf %297, %235 : vector<2x32xf32>
    %309 = arith.addf %307, %308 : vector<2x32xf32>
    %c4 = arith.constant 4 : index
    %c0_110 = arith.constant 0 : index
    %c0_111 = arith.constant 0 : index
    %310 = vector.load %arg0[%c4, %c0_110, %c0_111] : memref<8x2x4xf32, #tpu.memory_space<vmem>>, vector<1x2x4xf32>
    %311 = vector.shape_cast %310 : vector<1x2x4xf32> to vector<2x4xf32>
    %c0_112 = arith.constant 0 : index
    %c0_113 = arith.constant 0 : index
    %312 = vector.load %arg10[%c0_112, %c0_113] : memref<2x256xf32, #tpu.memory_space<vmem>>, vector<2x4xf32>
    tpu.vector_store %arg10[%c0_112, %c0_113], %311 {strides = array<i32>} : memref<2x256xf32, #tpu.memory_space<vmem>>, vector<2x4xf32>,
    %c0_114 = arith.constant 0 : index
    %c128_115 = arith.constant 128 : index
    %313 = vector.load %arg10[%c0_114, %c128_115] : memref<2x256xf32, #tpu.memory_space<vmem>>, vector<2x32xf32>
    tpu.vector_store %arg10[%c0_114, %c128_115], %273 {strides = array<i32>} : memref<2x256xf32, #tpu.memory_space<vmem>>, vector<2x32xf32>,
    %c0_116 = arith.constant 0 : index
    %c0_117 = arith.constant 0 : index
    %314 = vector.load %arg10[%c0_116, %c0_117] : memref<2x256xf32, #tpu.memory_space<vmem>>, vector<2x256xf32>
    %cst_118 = arith.constant dense<0.000000e+00> : vector<2x256xf32>
    %315 = tpu.matmul %314, %0, %cst_118 {dimension_numbers = #tpu.dot_dimension_numbers<[1], [0], [0], [1], [0, 0, 1, 1], [], []>} : vector<2x256xf32>, vector<256x256xf32>, vector<2x256xf32> -> vector<2x256xf32>
    %316 = vector.extract_strided_slice %315 {offsets = [0, 0], sizes = [2, 96], strides = [1, 1]} : vector<2x256xf32> to vector<2x96xf32>
    %317 = vector.broadcast %2 : vector<1x96xf32> to vector<2x96xf32>
    %318 = arith.addf %316, %317 : vector<2x96xf32>
    %319 = vector.extract_strided_slice %315 {offsets = [0, 128], sizes = [2, 96], strides = [1, 1]} : vector<2x256xf32> to vector<2x96xf32>
    %320 = vector.extract_strided_slice %318 {offsets = [0, 0], sizes = [2, 32], strides = [1, 1]} : vector<2x96xf32> to vector<2x32xf32>
    %321 = vector.extract_strided_slice %319 {offsets = [0, 0], sizes = [2, 32], strides = [1, 1]} : vector<2x96xf32> to vector<2x32xf32>
    %322 = arith.addf %320, %321 : vector<2x32xf32>
    %323 = arith.negf %322 : vector<2x32xf32>
    %324 = math.exp %323 : vector<2x32xf32>
    %cst_119 = arith.constant 1.000000e+00 : f32
    %325 = vector.broadcast %cst_119 : f32 to vector<2x32xf32>
    %326 = arith.addf %325, %324 : vector<2x32xf32>
    %327 = arith.divf %325, %326 : vector<2x32xf32>
    %328 = vector.extract_strided_slice %318 {offsets = [0, 32], sizes = [2, 32], strides = [1, 1]} : vector<2x96xf32> to vector<2x32xf32>
    %329 = vector.extract_strided_slice %319 {offsets = [0, 32], sizes = [2, 32], strides = [1, 1]} : vector<2x96xf32> to vector<2x32xf32>
    %330 = arith.addf %328, %329 : vector<2x32xf32>
    %331 = arith.negf %330 : vector<2x32xf32>
    %332 = math.exp %331 : vector<2x32xf32>
    %cst_120 = arith.constant 1.000000e+00 : f32
    %333 = vector.broadcast %cst_120 : f32 to vector<2x32xf32>
    %334 = arith.addf %333, %332 : vector<2x32xf32>
    %335 = arith.divf %333, %334 : vector<2x32xf32>
    %336 = vector.extract_strided_slice %318 {offsets = [0, 64], sizes = [2, 32], strides = [1, 1]} : vector<2x96xf32> to vector<2x32xf32>
    %337 = vector.extract_strided_slice %319 {offsets = [0, 64], sizes = [2, 32], strides = [1, 1]} : vector<2x96xf32> to vector<2x32xf32>
    %338 = vector.broadcast %3 : vector<1x32xf32> to vector<2x32xf32>
    %339 = arith.addf %337, %338 : vector<2x32xf32>
    %340 = arith.mulf %327, %339 : vector<2x32xf32>
    %341 = arith.addf %336, %340 : vector<2x32xf32>
    %342 = math.tanh %341 : vector<2x32xf32>
    %cst_121 = arith.constant 1.000000e+00 : f32
    %343 = vector.broadcast %cst_121 : f32 to vector<2x32xf32>
    %344 = arith.subf %343, %335 : vector<2x32xf32>
    %345 = arith.mulf %344, %342 : vector<2x32xf32>
    %346 = arith.mulf %335, %273 : vector<2x32xf32>
    %347 = arith.addf %345, %346 : vector<2x32xf32>
    %c0_122 = arith.constant 0 : index
    %c0_123 = arith.constant 0 : index
    %348 = vector.load %arg11[%c0_122, %c0_123] : memref<2x256xf32, #tpu.memory_space<vmem>>, vector<2x32xf32>
    tpu.vector_store %arg11[%c0_122, %c0_123], %347 {strides = array<i32>} : memref<2x256xf32, #tpu.memory_space<vmem>>, vector<2x32xf32>,
    %c0_124 = arith.constant 0 : index
    %c128_125 = arith.constant 128 : index
    %349 = vector.load %arg11[%c0_124, %c128_125] : memref<2x256xf32, #tpu.memory_space<vmem>>, vector<2x32xf32>
    tpu.vector_store %arg11[%c0_124, %c128_125], %309 {strides = array<i32>} : memref<2x256xf32, #tpu.memory_space<vmem>>, vector<2x32xf32>,
    %c0_126 = arith.constant 0 : index
    %c0_127 = arith.constant 0 : index
    %350 = vector.load %arg11[%c0_126, %c0_127] : memref<2x256xf32, #tpu.memory_space<vmem>>, vector<2x256xf32>
    %cst_128 = arith.constant dense<0.000000e+00> : vector<2x256xf32>
    %351 = tpu.matmul %350, %1, %cst_128 {dimension_numbers = #tpu.dot_dimension_numbers<[1], [0], [0], [1], [0, 0, 1, 1], [], []>} : vector<2x256xf32>, vector<256x256xf32>, vector<2x256xf32> -> vector<2x256xf32>
    %352 = vector.extract_strided_slice %351 {offsets = [0, 0], sizes = [2, 96], strides = [1, 1]} : vector<2x256xf32> to vector<2x96xf32>
    %353 = vector.broadcast %4 : vector<1x96xf32> to vector<2x96xf32>
    %354 = arith.addf %352, %353 : vector<2x96xf32>
    %355 = vector.extract_strided_slice %351 {offsets = [0, 128], sizes = [2, 96], strides = [1, 1]} : vector<2x256xf32> to vector<2x96xf32>
    %356 = vector.extract_strided_slice %354 {offsets = [0, 0], sizes = [2, 32], strides = [1, 1]} : vector<2x96xf32> to vector<2x32xf32>
    %357 = vector.extract_strided_slice %355 {offsets = [0, 0], sizes = [2, 32], strides = [1, 1]} : vector<2x96xf32> to vector<2x32xf32>
    %358 = arith.addf %356, %357 : vector<2x32xf32>
    %359 = arith.negf %358 : vector<2x32xf32>
    %360 = math.exp %359 : vector<2x32xf32>
    %cst_129 = arith.constant 1.000000e+00 : f32
    %361 = vector.broadcast %cst_129 : f32 to vector<2x32xf32>
    %362 = arith.addf %361, %360 : vector<2x32xf32>
    %363 = arith.divf %361, %362 : vector<2x32xf32>
    %364 = vector.extract_strided_slice %354 {offsets = [0, 32], sizes = [2, 32], strides = [1, 1]} : vector<2x96xf32> to vector<2x32xf32>
    %365 = vector.extract_strided_slice %355 {offsets = [0, 32], sizes = [2, 32], strides = [1, 1]} : vector<2x96xf32> to vector<2x32xf32>
    %366 = arith.addf %364, %365 : vector<2x32xf32>
    %367 = arith.negf %366 : vector<2x32xf32>
    %368 = math.exp %367 : vector<2x32xf32>
    %cst_130 = arith.constant 1.000000e+00 : f32
    %369 = vector.broadcast %cst_130 : f32 to vector<2x32xf32>
    %370 = arith.addf %369, %368 : vector<2x32xf32>
    %371 = arith.divf %369, %370 : vector<2x32xf32>
    %372 = vector.extract_strided_slice %354 {offsets = [0, 64], sizes = [2, 32], strides = [1, 1]} : vector<2x96xf32> to vector<2x32xf32>
    %373 = vector.extract_strided_slice %355 {offsets = [0, 64], sizes = [2, 32], strides = [1, 1]} : vector<2x96xf32> to vector<2x32xf32>
    %374 = vector.broadcast %5 : vector<1x32xf32> to vector<2x32xf32>
    %375 = arith.addf %373, %374 : vector<2x32xf32>
    %376 = arith.mulf %363, %375 : vector<2x32xf32>
    %377 = arith.addf %372, %376 : vector<2x32xf32>
    %378 = math.tanh %377 : vector<2x32xf32>
    %cst_131 = arith.constant 1.000000e+00 : f32
    %379 = vector.broadcast %cst_131 : f32 to vector<2x32xf32>
    %380 = arith.subf %379, %371 : vector<2x32xf32>
    %381 = arith.mulf %380, %378 : vector<2x32xf32>
    %382 = arith.mulf %371, %309 : vector<2x32xf32>
    %383 = arith.addf %381, %382 : vector<2x32xf32>
    %c5 = arith.constant 5 : index
    %c0_132 = arith.constant 0 : index
    %c0_133 = arith.constant 0 : index
    %384 = vector.load %arg0[%c5, %c0_132, %c0_133] : memref<8x2x4xf32, #tpu.memory_space<vmem>>, vector<1x2x4xf32>
    %385 = vector.shape_cast %384 : vector<1x2x4xf32> to vector<2x4xf32>
    %c0_134 = arith.constant 0 : index
    %c0_135 = arith.constant 0 : index
    %386 = vector.load %arg10[%c0_134, %c0_135] : memref<2x256xf32, #tpu.memory_space<vmem>>, vector<2x4xf32>
    tpu.vector_store %arg10[%c0_134, %c0_135], %385 {strides = array<i32>} : memref<2x256xf32, #tpu.memory_space<vmem>>, vector<2x4xf32>,
    %c0_136 = arith.constant 0 : index
    %c128_137 = arith.constant 128 : index
    %387 = vector.load %arg10[%c0_136, %c128_137] : memref<2x256xf32, #tpu.memory_space<vmem>>, vector<2x32xf32>
    tpu.vector_store %arg10[%c0_136, %c128_137], %347 {strides = array<i32>} : memref<2x256xf32, #tpu.memory_space<vmem>>, vector<2x32xf32>,
    %c0_138 = arith.constant 0 : index
    %c0_139 = arith.constant 0 : index
    %388 = vector.load %arg10[%c0_138, %c0_139] : memref<2x256xf32, #tpu.memory_space<vmem>>, vector<2x256xf32>
    %cst_140 = arith.constant dense<0.000000e+00> : vector<2x256xf32>
    %389 = tpu.matmul %388, %0, %cst_140 {dimension_numbers = #tpu.dot_dimension_numbers<[1], [0], [0], [1], [0, 0, 1, 1], [], []>} : vector<2x256xf32>, vector<256x256xf32>, vector<2x256xf32> -> vector<2x256xf32>
    %390 = vector.extract_strided_slice %389 {offsets = [0, 0], sizes = [2, 96], strides = [1, 1]} : vector<2x256xf32> to vector<2x96xf32>
    %391 = vector.broadcast %2 : vector<1x96xf32> to vector<2x96xf32>
    %392 = arith.addf %390, %391 : vector<2x96xf32>
    %393 = vector.extract_strided_slice %389 {offsets = [0, 128], sizes = [2, 96], strides = [1, 1]} : vector<2x256xf32> to vector<2x96xf32>
    %394 = vector.extract_strided_slice %392 {offsets = [0, 0], sizes = [2, 32], strides = [1, 1]} : vector<2x96xf32> to vector<2x32xf32>
    %395 = vector.extract_strided_slice %393 {offsets = [0, 0], sizes = [2, 32], strides = [1, 1]} : vector<2x96xf32> to vector<2x32xf32>
    %396 = arith.addf %394, %395 : vector<2x32xf32>
    %397 = arith.negf %396 : vector<2x32xf32>
    %398 = math.exp %397 : vector<2x32xf32>
    %cst_141 = arith.constant 1.000000e+00 : f32
    %399 = vector.broadcast %cst_141 : f32 to vector<2x32xf32>
    %400 = arith.addf %399, %398 : vector<2x32xf32>
    %401 = arith.divf %399, %400 : vector<2x32xf32>
    %402 = vector.extract_strided_slice %392 {offsets = [0, 32], sizes = [2, 32], strides = [1, 1]} : vector<2x96xf32> to vector<2x32xf32>
    %403 = vector.extract_strided_slice %393 {offsets = [0, 32], sizes = [2, 32], strides = [1, 1]} : vector<2x96xf32> to vector<2x32xf32>
    %404 = arith.addf %402, %403 : vector<2x32xf32>
    %405 = arith.negf %404 : vector<2x32xf32>
    %406 = math.exp %405 : vector<2x32xf32>
    %cst_142 = arith.constant 1.000000e+00 : f32
    %407 = vector.broadcast %cst_142 : f32 to vector<2x32xf32>
    %408 = arith.addf %407, %406 : vector<2x32xf32>
    %409 = arith.divf %407, %408 : vector<2x32xf32>
    %410 = vector.extract_strided_slice %392 {offsets = [0, 64], sizes = [2, 32], strides = [1, 1]} : vector<2x96xf32> to vector<2x32xf32>
    %411 = vector.extract_strided_slice %393 {offsets = [0, 64], sizes = [2, 32], strides = [1, 1]} : vector<2x96xf32> to vector<2x32xf32>
    %412 = vector.broadcast %3 : vector<1x32xf32> to vector<2x32xf32>
    %413 = arith.addf %411, %412 : vector<2x32xf32>
    %414 = arith.mulf %401, %413 : vector<2x32xf32>
    %415 = arith.addf %410, %414 : vector<2x32xf32>
    %416 = math.tanh %415 : vector<2x32xf32>
    %cst_143 = arith.constant 1.000000e+00 : f32
    %417 = vector.broadcast %cst_143 : f32 to vector<2x32xf32>
    %418 = arith.subf %417, %409 : vector<2x32xf32>
    %419 = arith.mulf %418, %416 : vector<2x32xf32>
    %420 = arith.mulf %409, %347 : vector<2x32xf32>
    %421 = arith.addf %419, %420 : vector<2x32xf32>
    %c0_144 = arith.constant 0 : index
    %c0_145 = arith.constant 0 : index
    %422 = vector.load %arg11[%c0_144, %c0_145] : memref<2x256xf32, #tpu.memory_space<vmem>>, vector<2x32xf32>
    tpu.vector_store %arg11[%c0_144, %c0_145], %421 {strides = array<i32>} : memref<2x256xf32, #tpu.memory_space<vmem>>, vector<2x32xf32>,
    %c0_146 = arith.constant 0 : index
    %c128_147 = arith.constant 128 : index
    %423 = vector.load %arg11[%c0_146, %c128_147] : memref<2x256xf32, #tpu.memory_space<vmem>>, vector<2x32xf32>
    tpu.vector_store %arg11[%c0_146, %c128_147], %383 {strides = array<i32>} : memref<2x256xf32, #tpu.memory_space<vmem>>, vector<2x32xf32>,
    %c0_148 = arith.constant 0 : index
    %c0_149 = arith.constant 0 : index
    %424 = vector.load %arg11[%c0_148, %c0_149] : memref<2x256xf32, #tpu.memory_space<vmem>>, vector<2x256xf32>
    %cst_150 = arith.constant dense<0.000000e+00> : vector<2x256xf32>
    %425 = tpu.matmul %424, %1, %cst_150 {dimension_numbers = #tpu.dot_dimension_numbers<[1], [0], [0], [1], [0, 0, 1, 1], [], []>} : vector<2x256xf32>, vector<256x256xf32>, vector<2x256xf32> -> vector<2x256xf32>
    %426 = vector.extract_strided_slice %425 {offsets = [0, 0], sizes = [2, 96], strides = [1, 1]} : vector<2x256xf32> to vector<2x96xf32>
    %427 = vector.broadcast %4 : vector<1x96xf32> to vector<2x96xf32>
    %428 = arith.addf %426, %427 : vector<2x96xf32>
    %429 = vector.extract_strided_slice %425 {offsets = [0, 128], sizes = [2, 96], strides = [1, 1]} : vector<2x256xf32> to vector<2x96xf32>
    %430 = vector.extract_strided_slice %428 {offsets = [0, 0], sizes = [2, 32], strides = [1, 1]} : vector<2x96xf32> to vector<2x32xf32>
    %431 = vector.extract_strided_slice %429 {offsets = [0, 0], sizes = [2, 32], strides = [1, 1]} : vector<2x96xf32> to vector<2x32xf32>
    %432 = arith.addf %430, %431 : vector<2x32xf32>
    %433 = arith.negf %432 : vector<2x32xf32>
    %434 = math.exp %433 : vector<2x32xf32>
    %cst_151 = arith.constant 1.000000e+00 : f32
    %435 = vector.broadcast %cst_151 : f32 to vector<2x32xf32>
    %436 = arith.addf %435, %434 : vector<2x32xf32>
    %437 = arith.divf %435, %436 : vector<2x32xf32>
    %438 = vector.extract_strided_slice %428 {offsets = [0, 32], sizes = [2, 32], strides = [1, 1]} : vector<2x96xf32> to vector<2x32xf32>
    %439 = vector.extract_strided_slice %429 {offsets = [0, 32], sizes = [2, 32], strides = [1, 1]} : vector<2x96xf32> to vector<2x32xf32>
    %440 = arith.addf %438, %439 : vector<2x32xf32>
    %441 = arith.negf %440 : vector<2x32xf32>
    %442 = math.exp %441 : vector<2x32xf32>
    %cst_152 = arith.constant 1.000000e+00 : f32
    %443 = vector.broadcast %cst_152 : f32 to vector<2x32xf32>
    %444 = arith.addf %443, %442 : vector<2x32xf32>
    %445 = arith.divf %443, %444 : vector<2x32xf32>
    %446 = vector.extract_strided_slice %428 {offsets = [0, 64], sizes = [2, 32], strides = [1, 1]} : vector<2x96xf32> to vector<2x32xf32>
    %447 = vector.extract_strided_slice %429 {offsets = [0, 64], sizes = [2, 32], strides = [1, 1]} : vector<2x96xf32> to vector<2x32xf32>
    %448 = vector.broadcast %5 : vector<1x32xf32> to vector<2x32xf32>
    %449 = arith.addf %447, %448 : vector<2x32xf32>
    %450 = arith.mulf %437, %449 : vector<2x32xf32>
    %451 = arith.addf %446, %450 : vector<2x32xf32>
    %452 = math.tanh %451 : vector<2x32xf32>
    %cst_153 = arith.constant 1.000000e+00 : f32
    %453 = vector.broadcast %cst_153 : f32 to vector<2x32xf32>
    %454 = arith.subf %453, %445 : vector<2x32xf32>
    %455 = arith.mulf %454, %452 : vector<2x32xf32>
    %456 = arith.mulf %445, %383 : vector<2x32xf32>
    %457 = arith.addf %455, %456 : vector<2x32xf32>
    %c6 = arith.constant 6 : index
    %c0_154 = arith.constant 0 : index
    %c0_155 = arith.constant 0 : index
    %458 = vector.load %arg0[%c6, %c0_154, %c0_155] : memref<8x2x4xf32, #tpu.memory_space<vmem>>, vector<1x2x4xf32>
    %459 = vector.shape_cast %458 : vector<1x2x4xf32> to vector<2x4xf32>
    %c0_156 = arith.constant 0 : index
    %c0_157 = arith.constant 0 : index
    %460 = vector.load %arg10[%c0_156, %c0_157] : memref<2x256xf32, #tpu.memory_space<vmem>>, vector<2x4xf32>
    tpu.vector_store %arg10[%c0_156, %c0_157], %459 {strides = array<i32>} : memref<2x256xf32, #tpu.memory_space<vmem>>, vector<2x4xf32>,
    %c0_158 = arith.constant 0 : index
    %c128_159 = arith.constant 128 : index
    %461 = vector.load %arg10[%c0_158, %c128_159] : memref<2x256xf32, #tpu.memory_space<vmem>>, vector<2x32xf32>
    tpu.vector_store %arg10[%c0_158, %c128_159], %421 {strides = array<i32>} : memref<2x256xf32, #tpu.memory_space<vmem>>, vector<2x32xf32>,
    %c0_160 = arith.constant 0 : index
    %c0_161 = arith.constant 0 : index
    %462 = vector.load %arg10[%c0_160, %c0_161] : memref<2x256xf32, #tpu.memory_space<vmem>>, vector<2x256xf32>
    %cst_162 = arith.constant dense<0.000000e+00> : vector<2x256xf32>
    %463 = tpu.matmul %462, %0, %cst_162 {dimension_numbers = #tpu.dot_dimension_numbers<[1], [0], [0], [1], [0, 0, 1, 1], [], []>} : vector<2x256xf32>, vector<256x256xf32>, vector<2x256xf32> -> vector<2x256xf32>
    %464 = vector.extract_strided_slice %463 {offsets = [0, 0], sizes = [2, 96], strides = [1, 1]} : vector<2x256xf32> to vector<2x96xf32>
    %465 = vector.broadcast %2 : vector<1x96xf32> to vector<2x96xf32>
    %466 = arith.addf %464, %465 : vector<2x96xf32>
    %467 = vector.extract_strided_slice %463 {offsets = [0, 128], sizes = [2, 96], strides = [1, 1]} : vector<2x256xf32> to vector<2x96xf32>
    %468 = vector.extract_strided_slice %466 {offsets = [0, 0], sizes = [2, 32], strides = [1, 1]} : vector<2x96xf32> to vector<2x32xf32>
    %469 = vector.extract_strided_slice %467 {offsets = [0, 0], sizes = [2, 32], strides = [1, 1]} : vector<2x96xf32> to vector<2x32xf32>
    %470 = arith.addf %468, %469 : vector<2x32xf32>
    %471 = arith.negf %470 : vector<2x32xf32>
    %472 = math.exp %471 : vector<2x32xf32>
    %cst_163 = arith.constant 1.000000e+00 : f32
    %473 = vector.broadcast %cst_163 : f32 to vector<2x32xf32>
    %474 = arith.addf %473, %472 : vector<2x32xf32>
    %475 = arith.divf %473, %474 : vector<2x32xf32>
    %476 = vector.extract_strided_slice %466 {offsets = [0, 32], sizes = [2, 32], strides = [1, 1]} : vector<2x96xf32> to vector<2x32xf32>
    %477 = vector.extract_strided_slice %467 {offsets = [0, 32], sizes = [2, 32], strides = [1, 1]} : vector<2x96xf32> to vector<2x32xf32>
    %478 = arith.addf %476, %477 : vector<2x32xf32>
    %479 = arith.negf %478 : vector<2x32xf32>
    %480 = math.exp %479 : vector<2x32xf32>
    %cst_164 = arith.constant 1.000000e+00 : f32
    %481 = vector.broadcast %cst_164 : f32 to vector<2x32xf32>
    %482 = arith.addf %481, %480 : vector<2x32xf32>
    %483 = arith.divf %481, %482 : vector<2x32xf32>
    %484 = vector.extract_strided_slice %466 {offsets = [0, 64], sizes = [2, 32], strides = [1, 1]} : vector<2x96xf32> to vector<2x32xf32>
    %485 = vector.extract_strided_slice %467 {offsets = [0, 64], sizes = [2, 32], strides = [1, 1]} : vector<2x96xf32> to vector<2x32xf32>
    %486 = vector.broadcast %3 : vector<1x32xf32> to vector<2x32xf32>
    %487 = arith.addf %485, %486 : vector<2x32xf32>
    %488 = arith.mulf %475, %487 : vector<2x32xf32>
    %489 = arith.addf %484, %488 : vector<2x32xf32>
    %490 = math.tanh %489 : vector<2x32xf32>
    %cst_165 = arith.constant 1.000000e+00 : f32
    %491 = vector.broadcast %cst_165 : f32 to vector<2x32xf32>
    %492 = arith.subf %491, %483 : vector<2x32xf32>
    %493 = arith.mulf %492, %490 : vector<2x32xf32>
    %494 = arith.mulf %483, %421 : vector<2x32xf32>
    %495 = arith.addf %493, %494 : vector<2x32xf32>
    %c0_166 = arith.constant 0 : index
    %c0_167 = arith.constant 0 : index
    %496 = vector.load %arg11[%c0_166, %c0_167] : memref<2x256xf32, #tpu.memory_space<vmem>>, vector<2x32xf32>
    tpu.vector_store %arg11[%c0_166, %c0_167], %495 {strides = array<i32>} : memref<2x256xf32, #tpu.memory_space<vmem>>, vector<2x32xf32>,
    %c0_168 = arith.constant 0 : index
    %c128_169 = arith.constant 128 : index
    %497 = vector.load %arg11[%c0_168, %c128_169] : memref<2x256xf32, #tpu.memory_space<vmem>>, vector<2x32xf32>
    tpu.vector_store %arg11[%c0_168, %c128_169], %457 {strides = array<i32>} : memref<2x256xf32, #tpu.memory_space<vmem>>, vector<2x32xf32>,
    %c0_170 = arith.constant 0 : index
    %c0_171 = arith.constant 0 : index
    %498 = vector.load %arg11[%c0_170, %c0_171] : memref<2x256xf32, #tpu.memory_space<vmem>>, vector<2x256xf32>
    %cst_172 = arith.constant dense<0.000000e+00> : vector<2x256xf32>
    %499 = tpu.matmul %498, %1, %cst_172 {dimension_numbers = #tpu.dot_dimension_numbers<[1], [0], [0], [1], [0, 0, 1, 1], [], []>} : vector<2x256xf32>, vector<256x256xf32>, vector<2x256xf32> -> vector<2x256xf32>
    %500 = vector.extract_strided_slice %499 {offsets = [0, 0], sizes = [2, 96], strides = [1, 1]} : vector<2x256xf32> to vector<2x96xf32>
    %501 = vector.broadcast %4 : vector<1x96xf32> to vector<2x96xf32>
    %502 = arith.addf %500, %501 : vector<2x96xf32>
    %503 = vector.extract_strided_slice %499 {offsets = [0, 128], sizes = [2, 96], strides = [1, 1]} : vector<2x256xf32> to vector<2x96xf32>
    %504 = vector.extract_strided_slice %502 {offsets = [0, 0], sizes = [2, 32], strides = [1, 1]} : vector<2x96xf32> to vector<2x32xf32>
    %505 = vector.extract_strided_slice %503 {offsets = [0, 0], sizes = [2, 32], strides = [1, 1]} : vector<2x96xf32> to vector<2x32xf32>
    %506 = arith.addf %504, %505 : vector<2x32xf32>
    %507 = arith.negf %506 : vector<2x32xf32>
    %508 = math.exp %507 : vector<2x32xf32>
    %cst_173 = arith.constant 1.000000e+00 : f32
    %509 = vector.broadcast %cst_173 : f32 to vector<2x32xf32>
    %510 = arith.addf %509, %508 : vector<2x32xf32>
    %511 = arith.divf %509, %510 : vector<2x32xf32>
    %512 = vector.extract_strided_slice %502 {offsets = [0, 32], sizes = [2, 32], strides = [1, 1]} : vector<2x96xf32> to vector<2x32xf32>
    %513 = vector.extract_strided_slice %503 {offsets = [0, 32], sizes = [2, 32], strides = [1, 1]} : vector<2x96xf32> to vector<2x32xf32>
    %514 = arith.addf %512, %513 : vector<2x32xf32>
    %515 = arith.negf %514 : vector<2x32xf32>
    %516 = math.exp %515 : vector<2x32xf32>
    %cst_174 = arith.constant 1.000000e+00 : f32
    %517 = vector.broadcast %cst_174 : f32 to vector<2x32xf32>
    %518 = arith.addf %517, %516 : vector<2x32xf32>
    %519 = arith.divf %517, %518 : vector<2x32xf32>
    %520 = vector.extract_strided_slice %502 {offsets = [0, 64], sizes = [2, 32], strides = [1, 1]} : vector<2x96xf32> to vector<2x32xf32>
    %521 = vector.extract_strided_slice %503 {offsets = [0, 64], sizes = [2, 32], strides = [1, 1]} : vector<2x96xf32> to vector<2x32xf32>
    %522 = vector.broadcast %5 : vector<1x32xf32> to vector<2x32xf32>
    %523 = arith.addf %521, %522 : vector<2x32xf32>
    %524 = arith.mulf %511, %523 : vector<2x32xf32>
    %525 = arith.addf %520, %524 : vector<2x32xf32>
    %526 = math.tanh %525 : vector<2x32xf32>
    %cst_175 = arith.constant 1.000000e+00 : f32
    %527 = vector.broadcast %cst_175 : f32 to vector<2x32xf32>
    %528 = arith.subf %527, %519 : vector<2x32xf32>
    %529 = arith.mulf %528, %526 : vector<2x32xf32>
    %530 = arith.mulf %519, %457 : vector<2x32xf32>
    %531 = arith.addf %529, %530 : vector<2x32xf32>
    %c7 = arith.constant 7 : index
    %c0_176 = arith.constant 0 : index
    %c0_177 = arith.constant 0 : index
    %532 = vector.load %arg0[%c7, %c0_176, %c0_177] : memref<8x2x4xf32, #tpu.memory_space<vmem>>, vector<1x2x4xf32>
    %533 = vector.shape_cast %532 : vector<1x2x4xf32> to vector<2x4xf32>
    %c0_178 = arith.constant 0 : index
    %c0_179 = arith.constant 0 : index
    %534 = vector.load %arg10[%c0_178, %c0_179] : memref<2x256xf32, #tpu.memory_space<vmem>>, vector<2x4xf32>
    tpu.vector_store %arg10[%c0_178, %c0_179], %533 {strides = array<i32>} : memref<2x256xf32, #tpu.memory_space<vmem>>, vector<2x4xf32>,
    %c0_180 = arith.constant 0 : index
    %c128_181 = arith.constant 128 : index
    %535 = vector.load %arg10[%c0_180, %c128_181] : memref<2x256xf32, #tpu.memory_space<vmem>>, vector<2x32xf32>
    tpu.vector_store %arg10[%c0_180, %c128_181], %495 {strides = array<i32>} : memref<2x256xf32, #tpu.memory_space<vmem>>, vector<2x32xf32>,
    %c0_182 = arith.constant 0 : index
    %c0_183 = arith.constant 0 : index
    %536 = vector.load %arg10[%c0_182, %c0_183] : memref<2x256xf32, #tpu.memory_space<vmem>>, vector<2x256xf32>
    %cst_184 = arith.constant dense<0.000000e+00> : vector<2x256xf32>
    %537 = tpu.matmul %536, %0, %cst_184 {dimension_numbers = #tpu.dot_dimension_numbers<[1], [0], [0], [1], [0, 0, 1, 1], [], []>} : vector<2x256xf32>, vector<256x256xf32>, vector<2x256xf32> -> vector<2x256xf32>
    %538 = vector.extract_strided_slice %537 {offsets = [0, 0], sizes = [2, 96], strides = [1, 1]} : vector<2x256xf32> to vector<2x96xf32>
    %539 = vector.broadcast %2 : vector<1x96xf32> to vector<2x96xf32>
    %540 = arith.addf %538, %539 : vector<2x96xf32>
    %541 = vector.extract_strided_slice %537 {offsets = [0, 128], sizes = [2, 96], strides = [1, 1]} : vector<2x256xf32> to vector<2x96xf32>
    %542 = vector.extract_strided_slice %540 {offsets = [0, 0], sizes = [2, 32], strides = [1, 1]} : vector<2x96xf32> to vector<2x32xf32>
    %543 = vector.extract_strided_slice %541 {offsets = [0, 0], sizes = [2, 32], strides = [1, 1]} : vector<2x96xf32> to vector<2x32xf32>
    %544 = arith.addf %542, %543 : vector<2x32xf32>
    %545 = arith.negf %544 : vector<2x32xf32>
    %546 = math.exp %545 : vector<2x32xf32>
    %cst_185 = arith.constant 1.000000e+00 : f32
    %547 = vector.broadcast %cst_185 : f32 to vector<2x32xf32>
    %548 = arith.addf %547, %546 : vector<2x32xf32>
    %549 = arith.divf %547, %548 : vector<2x32xf32>
    %550 = vector.extract_strided_slice %540 {offsets = [0, 32], sizes = [2, 32], strides = [1, 1]} : vector<2x96xf32> to vector<2x32xf32>
    %551 = vector.extract_strided_slice %541 {offsets = [0, 32], sizes = [2, 32], strides = [1, 1]} : vector<2x96xf32> to vector<2x32xf32>
    %552 = arith.addf %550, %551 : vector<2x32xf32>
    %553 = arith.negf %552 : vector<2x32xf32>
    %554 = math.exp %553 : vector<2x32xf32>
    %cst_186 = arith.constant 1.000000e+00 : f32
    %555 = vector.broadcast %cst_186 : f32 to vector<2x32xf32>
    %556 = arith.addf %555, %554 : vector<2x32xf32>
    %557 = arith.divf %555, %556 : vector<2x32xf32>
    %558 = vector.extract_strided_slice %540 {offsets = [0, 64], sizes = [2, 32], strides = [1, 1]} : vector<2x96xf32> to vector<2x32xf32>
    %559 = vector.extract_strided_slice %541 {offsets = [0, 64], sizes = [2, 32], strides = [1, 1]} : vector<2x96xf32> to vector<2x32xf32>
    %560 = vector.broadcast %3 : vector<1x32xf32> to vector<2x32xf32>
    %561 = arith.addf %559, %560 : vector<2x32xf32>
    %562 = arith.mulf %549, %561 : vector<2x32xf32>
    %563 = arith.addf %558, %562 : vector<2x32xf32>
    %564 = math.tanh %563 : vector<2x32xf32>
    %cst_187 = arith.constant 1.000000e+00 : f32
    %565 = vector.broadcast %cst_187 : f32 to vector<2x32xf32>
    %566 = arith.subf %565, %557 : vector<2x32xf32>
    %567 = arith.mulf %566, %564 : vector<2x32xf32>
    %568 = arith.mulf %557, %495 : vector<2x32xf32>
    %569 = arith.addf %567, %568 : vector<2x32xf32>
    %c0_188 = arith.constant 0 : index
    %c0_189 = arith.constant 0 : index
    %570 = vector.load %arg11[%c0_188, %c0_189] : memref<2x256xf32, #tpu.memory_space<vmem>>, vector<2x32xf32>
    tpu.vector_store %arg11[%c0_188, %c0_189], %569 {strides = array<i32>} : memref<2x256xf32, #tpu.memory_space<vmem>>, vector<2x32xf32>,
    %c0_190 = arith.constant 0 : index
    %c128_191 = arith.constant 128 : index
    %571 = vector.load %arg11[%c0_190, %c128_191] : memref<2x256xf32, #tpu.memory_space<vmem>>, vector<2x32xf32>
    tpu.vector_store %arg11[%c0_190, %c128_191], %531 {strides = array<i32>} : memref<2x256xf32, #tpu.memory_space<vmem>>, vector<2x32xf32>,
    %c0_192 = arith.constant 0 : index
    %c0_193 = arith.constant 0 : index
    %572 = vector.load %arg11[%c0_192, %c0_193] : memref<2x256xf32, #tpu.memory_space<vmem>>, vector<2x256xf32>
    %cst_194 = arith.constant dense<0.000000e+00> : vector<2x256xf32>
    %573 = tpu.matmul %572, %1, %cst_194 {dimension_numbers = #tpu.dot_dimension_numbers<[1], [0], [0], [1], [0, 0, 1, 1], [], []>} : vector<2x256xf32>, vector<256x256xf32>, vector<2x256xf32> -> vector<2x256xf32>
    %574 = vector.extract_strided_slice %573 {offsets = [0, 0], sizes = [2, 96], strides = [1, 1]} : vector<2x256xf32> to vector<2x96xf32>
    %575 = vector.broadcast %4 : vector<1x96xf32> to vector<2x96xf32>
    %576 = arith.addf %574, %575 : vector<2x96xf32>
    %577 = vector.extract_strided_slice %573 {offsets = [0, 128], sizes = [2, 96], strides = [1, 1]} : vector<2x256xf32> to vector<2x96xf32>
    %578 = vector.extract_strided_slice %576 {offsets = [0, 0], sizes = [2, 32], strides = [1, 1]} : vector<2x96xf32> to vector<2x32xf32>
    %579 = vector.extract_strided_slice %577 {offsets = [0, 0], sizes = [2, 32], strides = [1, 1]} : vector<2x96xf32> to vector<2x32xf32>
    %580 = arith.addf %578, %579 : vector<2x32xf32>
    %581 = arith.negf %580 : vector<2x32xf32>
    %582 = math.exp %581 : vector<2x32xf32>
    %cst_195 = arith.constant 1.000000e+00 : f32
    %583 = vector.broadcast %cst_195 : f32 to vector<2x32xf32>
    %584 = arith.addf %583, %582 : vector<2x32xf32>
    %585 = arith.divf %583, %584 : vector<2x32xf32>
    %586 = vector.extract_strided_slice %576 {offsets = [0, 32], sizes = [2, 32], strides = [1, 1]} : vector<2x96xf32> to vector<2x32xf32>
    %587 = vector.extract_strided_slice %577 {offsets = [0, 32], sizes = [2, 32], strides = [1, 1]} : vector<2x96xf32> to vector<2x32xf32>
    %588 = arith.addf %586, %587 : vector<2x32xf32>
    %589 = arith.negf %588 : vector<2x32xf32>
    %590 = math.exp %589 : vector<2x32xf32>
    %cst_196 = arith.constant 1.000000e+00 : f32
    %591 = vector.broadcast %cst_196 : f32 to vector<2x32xf32>
    %592 = arith.addf %591, %590 : vector<2x32xf32>
    %593 = arith.divf %591, %592 : vector<2x32xf32>
    %594 = vector.extract_strided_slice %576 {offsets = [0, 64], sizes = [2, 32], strides = [1, 1]} : vector<2x96xf32> to vector<2x32xf32>
    %595 = vector.extract_strided_slice %577 {offsets = [0, 64], sizes = [2, 32], strides = [1, 1]} : vector<2x96xf32> to vector<2x32xf32>
    %596 = vector.broadcast %5 : vector<1x32xf32> to vector<2x32xf32>
    %597 = arith.addf %595, %596 : vector<2x32xf32>
    %598 = arith.mulf %585, %597 : vector<2x32xf32>
    %599 = arith.addf %594, %598 : vector<2x32xf32>
    %600 = math.tanh %599 : vector<2x32xf32>
    %cst_197 = arith.constant 1.000000e+00 : f32
    %601 = vector.broadcast %cst_197 : f32 to vector<2x32xf32>
    %602 = arith.subf %601, %593 : vector<2x32xf32>
    %603 = arith.mulf %602, %600 : vector<2x32xf32>
    %604 = arith.mulf %593, %531 : vector<2x32xf32>
    %605 = arith.addf %603, %604 : vector<2x32xf32>
    %cst_198 = arith.constant dense<0.000000e+00> : vector<2x4xf32>
    %606 = tpu.matmul %605, %6, %cst_198 {dimension_numbers = #tpu.dot_dimension_numbers<[1], [0], [0], [1], [0, 0, 1, 1], [], []>} : vector<2x32xf32>, vector<32x4xf32>, vector<2x4xf32> -> vector<2x4xf32>
    %607 = vector.broadcast %7 : vector<1x4xf32> to vector<2x4xf32>
    %608 = arith.addf %606, %607 : vector<2x4xf32>
    %c0_199 = arith.constant 0 : index
    %c0_200 = arith.constant 0 : index
    %c0_201 = arith.constant 0 : index
    %609 = vector.load %arg9[%c0_199, %c0_200, %c0_201] : memref<4x2x4xf32, #tpu.memory_space<vmem>>, vector<1x2x4xf32>
    %610 = vector.shape_cast %609 : vector<1x2x4xf32> to vector<2x4xf32>
    %611 = vector.shape_cast %608 : vector<2x4xf32> to vector<1x2x4xf32>
    tpu.vector_store %arg9[%c0_199, %c0_200, %c0_201], %611 {strides = array<i32>} : memref<4x2x4xf32, #tpu.memory_space<vmem>>, vector<1x2x4xf32>,
    %c0_202 = arith.constant 0 : index
    %c0_203 = arith.constant 0 : index
    %612 = vector.load %arg10[%c0_202, %c0_203] : memref<2x256xf32, #tpu.memory_space<vmem>>, vector<2x4xf32>
    tpu.vector_store %arg10[%c0_202, %c0_203], %608 {strides = array<i32>} : memref<2x256xf32, #tpu.memory_space<vmem>>, vector<2x4xf32>,
    %c0_204 = arith.constant 0 : index
    %c128_205 = arith.constant 128 : index
    %613 = vector.load %arg10[%c0_204, %c128_205] : memref<2x256xf32, #tpu.memory_space<vmem>>, vector<2x32xf32>
    tpu.vector_store %arg10[%c0_204, %c128_205], %569 {strides = array<i32>} : memref<2x256xf32, #tpu.memory_space<vmem>>, vector<2x32xf32>,
    %c0_206 = arith.constant 0 : index
    %c0_207 = arith.constant 0 : index
    %614 = vector.load %arg10[%c0_206, %c0_207] : memref<2x256xf32, #tpu.memory_space<vmem>>, vector<2x256xf32>
    %cst_208 = arith.constant dense<0.000000e+00> : vector<2x256xf32>
    %615 = tpu.matmul %614, %0, %cst_208 {dimension_numbers = #tpu.dot_dimension_numbers<[1], [0], [0], [1], [0, 0, 1, 1], [], []>} : vector<2x256xf32>, vector<256x256xf32>, vector<2x256xf32> -> vector<2x256xf32>
    %616 = vector.extract_strided_slice %615 {offsets = [0, 0], sizes = [2, 96], strides = [1, 1]} : vector<2x256xf32> to vector<2x96xf32>
    %617 = vector.broadcast %2 : vector<1x96xf32> to vector<2x96xf32>
    %618 = arith.addf %616, %617 : vector<2x96xf32>
    %619 = vector.extract_strided_slice %615 {offsets = [0, 128], sizes = [2, 96], strides = [1, 1]} : vector<2x256xf32> to vector<2x96xf32>
    %620 = vector.extract_strided_slice %618 {offsets = [0, 0], sizes = [2, 32], strides = [1, 1]} : vector<2x96xf32> to vector<2x32xf32>
    %621 = vector.extract_strided_slice %619 {offsets = [0, 0], sizes = [2, 32], strides = [1, 1]} : vector<2x96xf32> to vector<2x32xf32>
    %622 = arith.addf %620, %621 : vector<2x32xf32>
    %623 = arith.negf %622 : vector<2x32xf32>
    %624 = math.exp %623 : vector<2x32xf32>
    %cst_209 = arith.constant 1.000000e+00 : f32
    %625 = vector.broadcast %cst_209 : f32 to vector<2x32xf32>
    %626 = arith.addf %625, %624 : vector<2x32xf32>
    %627 = arith.divf %625, %626 : vector<2x32xf32>
    %628 = vector.extract_strided_slice %618 {offsets = [0, 32], sizes = [2, 32], strides = [1, 1]} : vector<2x96xf32> to vector<2x32xf32>
    %629 = vector.extract_strided_slice %619 {offsets = [0, 32], sizes = [2, 32], strides = [1, 1]} : vector<2x96xf32> to vector<2x32xf32>
    %630 = arith.addf %628, %629 : vector<2x32xf32>
    %631 = arith.negf %630 : vector<2x32xf32>
    %632 = math.exp %631 : vector<2x32xf32>
    %cst_210 = arith.constant 1.000000e+00 : f32
    %633 = vector.broadcast %cst_210 : f32 to vector<2x32xf32>
    %634 = arith.addf %633, %632 : vector<2x32xf32>
    %635 = arith.divf %633, %634 : vector<2x32xf32>
    %636 = vector.extract_strided_slice %618 {offsets = [0, 64], sizes = [2, 32], strides = [1, 1]} : vector<2x96xf32> to vector<2x32xf32>
    %637 = vector.extract_strided_slice %619 {offsets = [0, 64], sizes = [2, 32], strides = [1, 1]} : vector<2x96xf32> to vector<2x32xf32>
    %638 = vector.broadcast %3 : vector<1x32xf32> to vector<2x32xf32>
    %639 = arith.addf %637, %638 : vector<2x32xf32>
    %640 = arith.mulf %627, %639 : vector<2x32xf32>
    %641 = arith.addf %636, %640 : vector<2x32xf32>
    %642 = math.tanh %641 : vector<2x32xf32>
    %cst_211 = arith.constant 1.000000e+00 : f32
    %643 = vector.broadcast %cst_211 : f32 to vector<2x32xf32>
    %644 = arith.subf %643, %635 : vector<2x32xf32>
    %645 = arith.mulf %644, %642 : vector<2x32xf32>
    %646 = arith.mulf %635, %569 : vector<2x32xf32>
    %647 = arith.addf %645, %646 : vector<2x32xf32>
    %c0_212 = arith.constant 0 : index
    %c0_213 = arith.constant 0 : index
    %648 = vector.load %arg11[%c0_212, %c0_213] : memref<2x256xf32, #tpu.memory_space<vmem>>, vector<2x32xf32>
    tpu.vector_store %arg11[%c0_212, %c0_213], %647 {strides = array<i32>} : memref<2x256xf32, #tpu.memory_space<vmem>>, vector<2x32xf32>,
    %c0_214 = arith.constant 0 : index
    %c128_215 = arith.constant 128 : index
    %649 = vector.load %arg11[%c0_214, %c128_215] : memref<2x256xf32, #tpu.memory_space<vmem>>, vector<2x32xf32>
    tpu.vector_store %arg11[%c0_214, %c128_215], %605 {strides = array<i32>} : memref<2x256xf32, #tpu.memory_space<vmem>>, vector<2x32xf32>,
    %c0_216 = arith.constant 0 : index
    %c0_217 = arith.constant 0 : index
    %650 = vector.load %arg11[%c0_216, %c0_217] : memref<2x256xf32, #tpu.memory_space<vmem>>, vector<2x256xf32>
    %cst_218 = arith.constant dense<0.000000e+00> : vector<2x256xf32>
    %651 = tpu.matmul %650, %1, %cst_218 {dimension_numbers = #tpu.dot_dimension_numbers<[1], [0], [0], [1], [0, 0, 1, 1], [], []>} : vector<2x256xf32>, vector<256x256xf32>, vector<2x256xf32> -> vector<2x256xf32>
    %652 = vector.extract_strided_slice %651 {offsets = [0, 0], sizes = [2, 96], strides = [1, 1]} : vector<2x256xf32> to vector<2x96xf32>
    %653 = vector.broadcast %4 : vector<1x96xf32> to vector<2x96xf32>
    %654 = arith.addf %652, %653 : vector<2x96xf32>
    %655 = vector.extract_strided_slice %651 {offsets = [0, 128], sizes = [2, 96], strides = [1, 1]} : vector<2x256xf32> to vector<2x96xf32>
    %656 = vector.extract_strided_slice %654 {offsets = [0, 0], sizes = [2, 32], strides = [1, 1]} : vector<2x96xf32> to vector<2x32xf32>
    %657 = vector.extract_strided_slice %655 {offsets = [0, 0], sizes = [2, 32], strides = [1, 1]} : vector<2x96xf32> to vector<2x32xf32>
    %658 = arith.addf %656, %657 : vector<2x32xf32>
    %659 = arith.negf %658 : vector<2x32xf32>
    %660 = math.exp %659 : vector<2x32xf32>
    %cst_219 = arith.constant 1.000000e+00 : f32
    %661 = vector.broadcast %cst_219 : f32 to vector<2x32xf32>
    %662 = arith.addf %661, %660 : vector<2x32xf32>
    %663 = arith.divf %661, %662 : vector<2x32xf32>
    %664 = vector.extract_strided_slice %654 {offsets = [0, 32], sizes = [2, 32], strides = [1, 1]} : vector<2x96xf32> to vector<2x32xf32>
    %665 = vector.extract_strided_slice %655 {offsets = [0, 32], sizes = [2, 32], strides = [1, 1]} : vector<2x96xf32> to vector<2x32xf32>
    %666 = arith.addf %664, %665 : vector<2x32xf32>
    %667 = arith.negf %666 : vector<2x32xf32>
    %668 = math.exp %667 : vector<2x32xf32>
    %cst_220 = arith.constant 1.000000e+00 : f32
    %669 = vector.broadcast %cst_220 : f32 to vector<2x32xf32>
    %670 = arith.addf %669, %668 : vector<2x32xf32>
    %671 = arith.divf %669, %670 : vector<2x32xf32>
    %672 = vector.extract_strided_slice %654 {offsets = [0, 64], sizes = [2, 32], strides = [1, 1]} : vector<2x96xf32> to vector<2x32xf32>
    %673 = vector.extract_strided_slice %655 {offsets = [0, 64], sizes = [2, 32], strides = [1, 1]} : vector<2x96xf32> to vector<2x32xf32>
    %674 = vector.broadcast %5 : vector<1x32xf32> to vector<2x32xf32>
    %675 = arith.addf %673, %674 : vector<2x32xf32>
    %676 = arith.mulf %663, %675 : vector<2x32xf32>
    %677 = arith.addf %672, %676 : vector<2x32xf32>
    %678 = math.tanh %677 : vector<2x32xf32>
    %cst_221 = arith.constant 1.000000e+00 : f32
    %679 = vector.broadcast %cst_221 : f32 to vector<2x32xf32>
    %680 = arith.subf %679, %671 : vector<2x32xf32>
    %681 = arith.mulf %680, %678 : vector<2x32xf32>
    %682 = arith.mulf %671, %605 : vector<2x32xf32>
    %683 = arith.addf %681, %682 : vector<2x32xf32>
    %cst_222 = arith.constant dense<0.000000e+00> : vector<2x4xf32>
    %684 = tpu.matmul %683, %6, %cst_222 {dimension_numbers = #tpu.dot_dimension_numbers<[1], [0], [0], [1], [0, 0, 1, 1], [], []>} : vector<2x32xf32>, vector<32x4xf32>, vector<2x4xf32> -> vector<2x4xf32>
    %685 = vector.broadcast %7 : vector<1x4xf32> to vector<2x4xf32>
    %686 = arith.addf %684, %685 : vector<2x4xf32>
    %c1_223 = arith.constant 1 : index
    %c0_224 = arith.constant 0 : index
    %c0_225 = arith.constant 0 : index
    %687 = vector.load %arg9[%c1_223, %c0_224, %c0_225] : memref<4x2x4xf32, #tpu.memory_space<vmem>>, vector<1x2x4xf32>
    %688 = vector.shape_cast %687 : vector<1x2x4xf32> to vector<2x4xf32>
    %689 = vector.shape_cast %686 : vector<2x4xf32> to vector<1x2x4xf32>
    tpu.vector_store %arg9[%c1_223, %c0_224, %c0_225], %689 {strides = array<i32>} : memref<4x2x4xf32, #tpu.memory_space<vmem>>, vector<1x2x4xf32>,
    %c0_226 = arith.constant 0 : index
    %c0_227 = arith.constant 0 : index
    %690 = vector.load %arg10[%c0_226, %c0_227] : memref<2x256xf32, #tpu.memory_space<vmem>>, vector<2x4xf32>
    tpu.vector_store %arg10[%c0_226, %c0_227], %686 {strides = array<i32>} : memref<2x256xf32, #tpu.memory_space<vmem>>, vector<2x4xf32>,
    %c0_228 = arith.constant 0 : index
    %c128_229 = arith.constant 128 : index
    %691 = vector.load %arg10[%c0_228, %c128_229] : memref<2x256xf32, #tpu.memory_space<vmem>>, vector<2x32xf32>
    tpu.vector_store %arg10[%c0_228, %c128_229], %647 {strides = array<i32>} : memref<2x256xf32, #tpu.memory_space<vmem>>, vector<2x32xf32>,
    %c0_230 = arith.constant 0 : index
    %c0_231 = arith.constant 0 : index
    %692 = vector.load %arg10[%c0_230, %c0_231] : memref<2x256xf32, #tpu.memory_space<vmem>>, vector<2x256xf32>
    %cst_232 = arith.constant dense<0.000000e+00> : vector<2x256xf32>
    %693 = tpu.matmul %692, %0, %cst_232 {dimension_numbers = #tpu.dot_dimension_numbers<[1], [0], [0], [1], [0, 0, 1, 1], [], []>} : vector<2x256xf32>, vector<256x256xf32>, vector<2x256xf32> -> vector<2x256xf32>
    %694 = vector.extract_strided_slice %693 {offsets = [0, 0], sizes = [2, 96], strides = [1, 1]} : vector<2x256xf32> to vector<2x96xf32>
    %695 = vector.broadcast %2 : vector<1x96xf32> to vector<2x96xf32>
    %696 = arith.addf %694, %695 : vector<2x96xf32>
    %697 = vector.extract_strided_slice %693 {offsets = [0, 128], sizes = [2, 96], strides = [1, 1]} : vector<2x256xf32> to vector<2x96xf32>
    %698 = vector.extract_strided_slice %696 {offsets = [0, 0], sizes = [2, 32], strides = [1, 1]} : vector<2x96xf32> to vector<2x32xf32>
    %699 = vector.extract_strided_slice %697 {offsets = [0, 0], sizes = [2, 32], strides = [1, 1]} : vector<2x96xf32> to vector<2x32xf32>
    %700 = arith.addf %698, %699 : vector<2x32xf32>
    %701 = arith.negf %700 : vector<2x32xf32>
    %702 = math.exp %701 : vector<2x32xf32>
    %cst_233 = arith.constant 1.000000e+00 : f32
    %703 = vector.broadcast %cst_233 : f32 to vector<2x32xf32>
    %704 = arith.addf %703, %702 : vector<2x32xf32>
    %705 = arith.divf %703, %704 : vector<2x32xf32>
    %706 = vector.extract_strided_slice %696 {offsets = [0, 32], sizes = [2, 32], strides = [1, 1]} : vector<2x96xf32> to vector<2x32xf32>
    %707 = vector.extract_strided_slice %697 {offsets = [0, 32], sizes = [2, 32], strides = [1, 1]} : vector<2x96xf32> to vector<2x32xf32>
    %708 = arith.addf %706, %707 : vector<2x32xf32>
    %709 = arith.negf %708 : vector<2x32xf32>
    %710 = math.exp %709 : vector<2x32xf32>
    %cst_234 = arith.constant 1.000000e+00 : f32
    %711 = vector.broadcast %cst_234 : f32 to vector<2x32xf32>
    %712 = arith.addf %711, %710 : vector<2x32xf32>
    %713 = arith.divf %711, %712 : vector<2x32xf32>
    %714 = vector.extract_strided_slice %696 {offsets = [0, 64], sizes = [2, 32], strides = [1, 1]} : vector<2x96xf32> to vector<2x32xf32>
    %715 = vector.extract_strided_slice %697 {offsets = [0, 64], sizes = [2, 32], strides = [1, 1]} : vector<2x96xf32> to vector<2x32xf32>
    %716 = vector.broadcast %3 : vector<1x32xf32> to vector<2x32xf32>
    %717 = arith.addf %715, %716 : vector<2x32xf32>
    %718 = arith.mulf %705, %717 : vector<2x32xf32>
    %719 = arith.addf %714, %718 : vector<2x32xf32>
    %720 = math.tanh %719 : vector<2x32xf32>
    %cst_235 = arith.constant 1.000000e+00 : f32
    %721 = vector.broadcast %cst_235 : f32 to vector<2x32xf32>
    %722 = arith.subf %721, %713 : vector<2x32xf32>
    %723 = arith.mulf %722, %720 : vector<2x32xf32>
    %724 = arith.mulf %713, %647 : vector<2x32xf32>
    %725 = arith.addf %723, %724 : vector<2x32xf32>
    %c0_236 = arith.constant 0 : index
    %c0_237 = arith.constant 0 : index
    %726 = vector.load %arg11[%c0_236, %c0_237] : memref<2x256xf32, #tpu.memory_space<vmem>>, vector<2x32xf32>
    tpu.vector_store %arg11[%c0_236, %c0_237], %725 {strides = array<i32>} : memref<2x256xf32, #tpu.memory_space<vmem>>, vector<2x32xf32>,
    %c0_238 = arith.constant 0 : index
    %c128_239 = arith.constant 128 : index
    %727 = vector.load %arg11[%c0_238, %c128_239] : memref<2x256xf32, #tpu.memory_space<vmem>>, vector<2x32xf32>
    tpu.vector_store %arg11[%c0_238, %c128_239], %683 {strides = array<i32>} : memref<2x256xf32, #tpu.memory_space<vmem>>, vector<2x32xf32>,
    %c0_240 = arith.constant 0 : index
    %c0_241 = arith.constant 0 : index
    %728 = vector.load %arg11[%c0_240, %c0_241] : memref<2x256xf32, #tpu.memory_space<vmem>>, vector<2x256xf32>
    %cst_242 = arith.constant dense<0.000000e+00> : vector<2x256xf32>
    %729 = tpu.matmul %728, %1, %cst_242 {dimension_numbers = #tpu.dot_dimension_numbers<[1], [0], [0], [1], [0, 0, 1, 1], [], []>} : vector<2x256xf32>, vector<256x256xf32>, vector<2x256xf32> -> vector<2x256xf32>
    %730 = vector.extract_strided_slice %729 {offsets = [0, 0], sizes = [2, 96], strides = [1, 1]} : vector<2x256xf32> to vector<2x96xf32>
    %731 = vector.broadcast %4 : vector<1x96xf32> to vector<2x96xf32>
    %732 = arith.addf %730, %731 : vector<2x96xf32>
    %733 = vector.extract_strided_slice %729 {offsets = [0, 128], sizes = [2, 96], strides = [1, 1]} : vector<2x256xf32> to vector<2x96xf32>
    %734 = vector.extract_strided_slice %732 {offsets = [0, 0], sizes = [2, 32], strides = [1, 1]} : vector<2x96xf32> to vector<2x32xf32>
    %735 = vector.extract_strided_slice %733 {offsets = [0, 0], sizes = [2, 32], strides = [1, 1]} : vector<2x96xf32> to vector<2x32xf32>
    %736 = arith.addf %734, %735 : vector<2x32xf32>
    %737 = arith.negf %736 : vector<2x32xf32>
    %738 = math.exp %737 : vector<2x32xf32>
    %cst_243 = arith.constant 1.000000e+00 : f32
    %739 = vector.broadcast %cst_243 : f32 to vector<2x32xf32>
    %740 = arith.addf %739, %738 : vector<2x32xf32>
    %741 = arith.divf %739, %740 : vector<2x32xf32>
    %742 = vector.extract_strided_slice %732 {offsets = [0, 32], sizes = [2, 32], strides = [1, 1]} : vector<2x96xf32> to vector<2x32xf32>
    %743 = vector.extract_strided_slice %733 {offsets = [0, 32], sizes = [2, 32], strides = [1, 1]} : vector<2x96xf32> to vector<2x32xf32>
    %744 = arith.addf %742, %743 : vector<2x32xf32>
    %745 = arith.negf %744 : vector<2x32xf32>
    %746 = math.exp %745 : vector<2x32xf32>
    %cst_244 = arith.constant 1.000000e+00 : f32
    %747 = vector.broadcast %cst_244 : f32 to vector<2x32xf32>
    %748 = arith.addf %747, %746 : vector<2x32xf32>
    %749 = arith.divf %747, %748 : vector<2x32xf32>
    %750 = vector.extract_strided_slice %732 {offsets = [0, 64], sizes = [2, 32], strides = [1, 1]} : vector<2x96xf32> to vector<2x32xf32>
    %751 = vector.extract_strided_slice %733 {offsets = [0, 64], sizes = [2, 32], strides = [1, 1]} : vector<2x96xf32> to vector<2x32xf32>
    %752 = vector.broadcast %5 : vector<1x32xf32> to vector<2x32xf32>
    %753 = arith.addf %751, %752 : vector<2x32xf32>
    %754 = arith.mulf %741, %753 : vector<2x32xf32>
    %755 = arith.addf %750, %754 : vector<2x32xf32>
    %756 = math.tanh %755 : vector<2x32xf32>
    %cst_245 = arith.constant 1.000000e+00 : f32
    %757 = vector.broadcast %cst_245 : f32 to vector<2x32xf32>
    %758 = arith.subf %757, %749 : vector<2x32xf32>
    %759 = arith.mulf %758, %756 : vector<2x32xf32>
    %760 = arith.mulf %749, %683 : vector<2x32xf32>
    %761 = arith.addf %759, %760 : vector<2x32xf32>
    %cst_246 = arith.constant dense<0.000000e+00> : vector<2x4xf32>
    %762 = tpu.matmul %761, %6, %cst_246 {dimension_numbers = #tpu.dot_dimension_numbers<[1], [0], [0], [1], [0, 0, 1, 1], [], []>} : vector<2x32xf32>, vector<32x4xf32>, vector<2x4xf32> -> vector<2x4xf32>
    %763 = vector.broadcast %7 : vector<1x4xf32> to vector<2x4xf32>
    %764 = arith.addf %762, %763 : vector<2x4xf32>
    %c2_247 = arith.constant 2 : index
    %c0_248 = arith.constant 0 : index
    %c0_249 = arith.constant 0 : index
    %765 = vector.load %arg9[%c2_247, %c0_248, %c0_249] : memref<4x2x4xf32, #tpu.memory_space<vmem>>, vector<1x2x4xf32>
    %766 = vector.shape_cast %765 : vector<1x2x4xf32> to vector<2x4xf32>
    %767 = vector.shape_cast %764 : vector<2x4xf32> to vector<1x2x4xf32>
    tpu.vector_store %arg9[%c2_247, %c0_248, %c0_249], %767 {strides = array<i32>} : memref<4x2x4xf32, #tpu.memory_space<vmem>>, vector<1x2x4xf32>,
    %c0_250 = arith.constant 0 : index
    %c0_251 = arith.constant 0 : index
    %768 = vector.load %arg10[%c0_250, %c0_251] : memref<2x256xf32, #tpu.memory_space<vmem>>, vector<2x4xf32>
    tpu.vector_store %arg10[%c0_250, %c0_251], %764 {strides = array<i32>} : memref<2x256xf32, #tpu.memory_space<vmem>>, vector<2x4xf32>,
    %c0_252 = arith.constant 0 : index
    %c128_253 = arith.constant 128 : index
    %769 = vector.load %arg10[%c0_252, %c128_253] : memref<2x256xf32, #tpu.memory_space<vmem>>, vector<2x32xf32>
    tpu.vector_store %arg10[%c0_252, %c128_253], %725 {strides = array<i32>} : memref<2x256xf32, #tpu.memory_space<vmem>>, vector<2x32xf32>,
    %c0_254 = arith.constant 0 : index
    %c0_255 = arith.constant 0 : index
    %770 = vector.load %arg10[%c0_254, %c0_255] : memref<2x256xf32, #tpu.memory_space<vmem>>, vector<2x256xf32>
    %cst_256 = arith.constant dense<0.000000e+00> : vector<2x256xf32>
    %771 = tpu.matmul %770, %0, %cst_256 {dimension_numbers = #tpu.dot_dimension_numbers<[1], [0], [0], [1], [0, 0, 1, 1], [], []>} : vector<2x256xf32>, vector<256x256xf32>, vector<2x256xf32> -> vector<2x256xf32>
    %772 = vector.extract_strided_slice %771 {offsets = [0, 0], sizes = [2, 96], strides = [1, 1]} : vector<2x256xf32> to vector<2x96xf32>
    %773 = vector.broadcast %2 : vector<1x96xf32> to vector<2x96xf32>
    %774 = arith.addf %772, %773 : vector<2x96xf32>
    %775 = vector.extract_strided_slice %771 {offsets = [0, 128], sizes = [2, 96], strides = [1, 1]} : vector<2x256xf32> to vector<2x96xf32>
    %776 = vector.extract_strided_slice %774 {offsets = [0, 0], sizes = [2, 32], strides = [1, 1]} : vector<2x96xf32> to vector<2x32xf32>
    %777 = vector.extract_strided_slice %775 {offsets = [0, 0], sizes = [2, 32], strides = [1, 1]} : vector<2x96xf32> to vector<2x32xf32>
    %778 = arith.addf %776, %777 : vector<2x32xf32>
    %779 = arith.negf %778 : vector<2x32xf32>
    %780 = math.exp %779 : vector<2x32xf32>
    %cst_257 = arith.constant 1.000000e+00 : f32
    %781 = vector.broadcast %cst_257 : f32 to vector<2x32xf32>
    %782 = arith.addf %781, %780 : vector<2x32xf32>
    %783 = arith.divf %781, %782 : vector<2x32xf32>
    %784 = vector.extract_strided_slice %774 {offsets = [0, 32], sizes = [2, 32], strides = [1, 1]} : vector<2x96xf32> to vector<2x32xf32>
    %785 = vector.extract_strided_slice %775 {offsets = [0, 32], sizes = [2, 32], strides = [1, 1]} : vector<2x96xf32> to vector<2x32xf32>
    %786 = arith.addf %784, %785 : vector<2x32xf32>
    %787 = arith.negf %786 : vector<2x32xf32>
    %788 = math.exp %787 : vector<2x32xf32>
    %cst_258 = arith.constant 1.000000e+00 : f32
    %789 = vector.broadcast %cst_258 : f32 to vector<2x32xf32>
    %790 = arith.addf %789, %788 : vector<2x32xf32>
    %791 = arith.divf %789, %790 : vector<2x32xf32>
    %792 = vector.extract_strided_slice %774 {offsets = [0, 64], sizes = [2, 32], strides = [1, 1]} : vector<2x96xf32> to vector<2x32xf32>
    %793 = vector.extract_strided_slice %775 {offsets = [0, 64], sizes = [2, 32], strides = [1, 1]} : vector<2x96xf32> to vector<2x32xf32>
    %794 = vector.broadcast %3 : vector<1x32xf32> to vector<2x32xf32>
    %795 = arith.addf %793, %794 : vector<2x32xf32>
    %796 = arith.mulf %783, %795 : vector<2x32xf32>
    %797 = arith.addf %792, %796 : vector<2x32xf32>
    %798 = math.tanh %797 : vector<2x32xf32>
    %cst_259 = arith.constant 1.000000e+00 : f32
    %799 = vector.broadcast %cst_259 : f32 to vector<2x32xf32>
    %800 = arith.subf %799, %791 : vector<2x32xf32>
    %801 = arith.mulf %800, %798 : vector<2x32xf32>
    %802 = arith.mulf %791, %725 : vector<2x32xf32>
    %803 = arith.addf %801, %802 : vector<2x32xf32>
    %c0_260 = arith.constant 0 : index
    %c0_261 = arith.constant 0 : index
    %804 = vector.load %arg11[%c0_260, %c0_261] : memref<2x256xf32, #tpu.memory_space<vmem>>, vector<2x32xf32>
    tpu.vector_store %arg11[%c0_260, %c0_261], %803 {strides = array<i32>} : memref<2x256xf32, #tpu.memory_space<vmem>>, vector<2x32xf32>,
    %c0_262 = arith.constant 0 : index
    %c128_263 = arith.constant 128 : index
    %805 = vector.load %arg11[%c0_262, %c128_263] : memref<2x256xf32, #tpu.memory_space<vmem>>, vector<2x32xf32>
    tpu.vector_store %arg11[%c0_262, %c128_263], %761 {strides = array<i32>} : memref<2x256xf32, #tpu.memory_space<vmem>>, vector<2x32xf32>,
    %c0_264 = arith.constant 0 : index
    %c0_265 = arith.constant 0 : index
    %806 = vector.load %arg11[%c0_264, %c0_265] : memref<2x256xf32, #tpu.memory_space<vmem>>, vector<2x256xf32>
    %cst_266 = arith.constant dense<0.000000e+00> : vector<2x256xf32>
    %807 = tpu.matmul %806, %1, %cst_266 {dimension_numbers = #tpu.dot_dimension_numbers<[1], [0], [0], [1], [0, 0, 1, 1], [], []>} : vector<2x256xf32>, vector<256x256xf32>, vector<2x256xf32> -> vector<2x256xf32>
    %808 = vector.extract_strided_slice %807 {offsets = [0, 0], sizes = [2, 96], strides = [1, 1]} : vector<2x256xf32> to vector<2x96xf32>
    %809 = vector.broadcast %4 : vector<1x96xf32> to vector<2x96xf32>
    %810 = arith.addf %808, %809 : vector<2x96xf32>
    %811 = vector.extract_strided_slice %807 {offsets = [0, 128], sizes = [2, 96], strides = [1, 1]} : vector<2x256xf32> to vector<2x96xf32>
    %812 = vector.extract_strided_slice %810 {offsets = [0, 0], sizes = [2, 32], strides = [1, 1]} : vector<2x96xf32> to vector<2x32xf32>
    %813 = vector.extract_strided_slice %811 {offsets = [0, 0], sizes = [2, 32], strides = [1, 1]} : vector<2x96xf32> to vector<2x32xf32>
    %814 = arith.addf %812, %813 : vector<2x32xf32>
    %815 = arith.negf %814 : vector<2x32xf32>
    %816 = math.exp %815 : vector<2x32xf32>
    %cst_267 = arith.constant 1.000000e+00 : f32
    %817 = vector.broadcast %cst_267 : f32 to vector<2x32xf32>
    %818 = arith.addf %817, %816 : vector<2x32xf32>
    %819 = arith.divf %817, %818 : vector<2x32xf32>
    %820 = vector.extract_strided_slice %810 {offsets = [0, 32], sizes = [2, 32], strides = [1, 1]} : vector<2x96xf32> to vector<2x32xf32>
    %821 = vector.extract_strided_slice %811 {offsets = [0, 32], sizes = [2, 32], strides = [1, 1]} : vector<2x96xf32> to vector<2x32xf32>
    %822 = arith.addf %820, %821 : vector<2x32xf32>
    %823 = arith.negf %822 : vector<2x32xf32>
    %824 = math.exp %823 : vector<2x32xf32>
    %cst_268 = arith.constant 1.000000e+00 : f32
    %825 = vector.broadcast %cst_268 : f32 to vector<2x32xf32>
    %826 = arith.addf %825, %824 : vector<2x32xf32>
    %827 = arith.divf %825, %826 : vector<2x32xf32>
    %828 = vector.extract_strided_slice %810 {offsets = [0, 64], sizes = [2, 32], strides = [1, 1]} : vector<2x96xf32> to vector<2x32xf32>
    %829 = vector.extract_strided_slice %811 {offsets = [0, 64], sizes = [2, 32], strides = [1, 1]} : vector<2x96xf32> to vector<2x32xf32>
    %830 = vector.broadcast %5 : vector<1x32xf32> to vector<2x32xf32>
    %831 = arith.addf %829, %830 : vector<2x32xf32>
    %832 = arith.mulf %819, %831 : vector<2x32xf32>
    %833 = arith.addf %828, %832 : vector<2x32xf32>
    %834 = math.tanh %833 : vector<2x32xf32>
    %cst_269 = arith.constant 1.000000e+00 : f32
    %835 = vector.broadcast %cst_269 : f32 to vector<2x32xf32>
    %836 = arith.subf %835, %827 : vector<2x32xf32>
    %837 = arith.mulf %836, %834 : vector<2x32xf32>
    %838 = arith.mulf %827, %761 : vector<2x32xf32>
    %839 = arith.addf %837, %838 : vector<2x32xf32>
    %cst_270 = arith.constant dense<0.000000e+00> : vector<2x4xf32>
    %840 = tpu.matmul %839, %6, %cst_270 {dimension_numbers = #tpu.dot_dimension_numbers<[1], [0], [0], [1], [0, 0, 1, 1], [], []>} : vector<2x32xf32>, vector<32x4xf32>, vector<2x4xf32> -> vector<2x4xf32>
    %841 = vector.broadcast %7 : vector<1x4xf32> to vector<2x4xf32>
    %842 = arith.addf %840, %841 : vector<2x4xf32>
    %c3_271 = arith.constant 3 : index
    %c0_272 = arith.constant 0 : index
    %c0_273 = arith.constant 0 : index
    %843 = vector.load %arg9[%c3_271, %c0_272, %c0_273] : memref<4x2x4xf32, #tpu.memory_space<vmem>>, vector<1x2x4xf32>
    %844 = vector.shape_cast %843 : vector<1x2x4xf32> to vector<2x4xf32>
    %845 = vector.shape_cast %842 : vector<2x4xf32> to vector<1x2x4xf32>
    tpu.vector_store %arg9[%c3_271, %c0_272, %c0_273], %845 {strides = array<i32>} : memref<4x2x4xf32, #tpu.memory_space<vmem>>, vector<1x2x4xf32>,
    return
  }
}

</mosaic_0001>

<llo_original>
// kernel: tpu_custom_call.1
$region0: #{tpu_custom_call.1}
  #allocation0 [shape = 'u32[]', space=smem, size = 0x4, offset = 0x4, fixed_abs, tag = 'smem constant byte address 0x4 - core index']
  #allocation1 [shape = 'u32[72,128]{1,0:T(1,128)}', space=vmem, size = 0x9000, scoped, tag = 'internal scratch']
  #allocation2 [shape = 'f32[2,256]{1,0:T(2,128)}', space=vmem, size = 0x800, scoped, tag = 'scratch operand']
  #allocation3 [shape = 'f32[2,256]{1,0:T(2,128)}', space=vmem, size = 0x800, scoped, tag = 'scratch operand']
  %s0 = inlined_call_operand.vmem [shape: f32[8,2,4], index: 0, kind: input, shape index: {}]
  %s1 = inlined_call_operand.hbm [shape: f32[256,256], index: 1, kind: input, shape index: {}]
  %s2 = inlined_call_operand.vmem [shape: f32[1,96], index: 2, kind: input, shape index: {}]
  %s3 = inlined_call_operand.vmem [shape: f32[1,32], index: 3, kind: input, shape index: {}]
  %s4 = inlined_call_operand.hbm [shape: f32[256,256], index: 4, kind: input, shape index: {}]
  %s5 = inlined_call_operand.vmem [shape: f32[1,96], index: 5, kind: input, shape index: {}]
  %s6 = inlined_call_operand.vmem [shape: f32[1,32], index: 6, kind: input, shape index: {}]
  %s7 = inlined_call_operand.vmem [shape: f32[32,4], index: 7, kind: input, shape index: {}]
  %s8 = inlined_call_operand.vmem [shape: f32[1,4], index: 8, kind: input, shape index: {}]
  %s9 = inlined_call_operand.hbm [shape: f32[4,2,4], index: 9, kind: output, shape index: {}]
  %s10 = sld [smem:[#allocation0]]
  $region54: #{tpu_custom_call.1} parent=0
    _
  %s12 = ssub.s32 1, %s10
  %s13 = scalar_select 0, %s12, %s10
  $region1: #{tpu_custom_call.1} parent=0
    #allocation4 [shape = 'u8[262144]{0}', space=vmem, size = 0x40000, scoped, tag = 'input window, operand 1, single buffered']
    #allocation5 [shape = 's32[1]{0}', space=sflag, size = 0x4, scoped, tag = 'scoped memory for tpu_custom_call.1']
    #allocation6 [shape = 's32[1]{0}', space=sflag, size = 0x4, scoped, tag = 'scoped memory for tpu_custom_call.1']
    #allocation7 [shape = 'u8[262144]{0}', space=vmem, size = 0x40000, scoped, tag = 'input window, operand 4, single buffered']
    #allocation8 [shape = 's32[1]{0}', space=sflag, size = 0x4, scoped, tag = 'scoped memory for tpu_custom_call.1']
    #allocation9 [shape = 'u8[4096]{0}', space=vmem, size = 0x1000, scoped, tag = 'output window, operand 0, single buffered']
    %14 = vsyncpa [#allocation5], 0
    %15 = vsyncpa [#allocation8], 0
    %16 = vsyncpa [#allocation6], 0
    // Predicated region
    $region2: #{tpu_custom_call.1} parent=1 // pred_check
      _
    $region3: #{tpu_custom_call.1} parent=1 // pred_check_branch
      %18 = sbr.rel (0) target = $region5
    $region4: #{tpu_custom_call.1} parent=1 // pred_region
      _
    $region5: #{tpu_custom_call.1} parent=1 // pred_fallthru
      _
    // Predicated region
    $region6: #{tpu_custom_call.1} parent=1 // pred_check
      _
    $region7: #{tpu_custom_call.1} parent=1 // pred_check_branch
      %20 = sbr.rel (0) target = $region9
    $region8: #{tpu_custom_call.1} parent=1 // pred_region
      %22 = vsyncadd [#allocation5], 0
      %s23 = sshll.u32 %s1, 4
      %s24 = int_to_ptr.hbm [resolvable:$true] %s23
      %s25 = sshll.u32 [#allocation4], 4
      %s26 = int_to_ptr.vmem [resolvable:$true] %s25
      %31 = dma.hbm_to_vmem [thread:$0]  %s24, 8192, %s26, [#allocation5], 256, 256, 16
    $region9: #{tpu_custom_call.1} parent=1 // pred_fallthru
      _
    // Predicated region
    $region10: #{tpu_custom_call.1} parent=1 // pred_check
      _
    $region11: #{tpu_custom_call.1} parent=1 // pred_check_branch
      %33 = sbr.rel (0) target = $region13
    $region12: #{tpu_custom_call.1} parent=1 // pred_region
      _
    $region13: #{tpu_custom_call.1} parent=1 // pred_fallthru
      _
    // Predicated region
    $region14: #{tpu_custom_call.1} parent=1 // pred_check
      _
    $region15: #{tpu_custom_call.1} parent=1 // pred_check_branch
      %35 = sbr.rel (0) target = $region17
    $region16: #{tpu_custom_call.1} parent=1 // pred_region
      _
    $region17: #{tpu_custom_call.1} parent=1 // pred_fallthru
      _
    // Predicated region
    $region18: #{tpu_custom_call.1} parent=1 // pred_check
      _
    $region19: #{tpu_custom_call.1} parent=1 // pred_check_branch
      %37 = sbr.rel (0) target = $region21
    $region20: #{tpu_custom_call.1} parent=1 // pred_region
      %39 = vsyncadd [#allocation8], 0
      %s40 = sshll.u32 %s4, 4
      %s41 = int_to_ptr.hbm [resolvable:$true] %s40
      %s42 = sshll.u32 [#allocation7], 4
      %s43 = int_to_ptr.vmem [resolvable:$true] %s42
      %48 = dma.hbm_to_vmem [thread:$0]  %s41, 8192, %s43, [#allocation8], 256, 256, 16
    $region21: #{tpu_custom_call.1} parent=1 // pred_fallthru
      _
    // Predicated region
    $region22: #{tpu_custom_call.1} parent=1 // pred_check
      _
    $region23: #{tpu_custom_call.1} parent=1 // pred_check_branch
      %50 = sbr.rel (0) target = $region25
    $region24: #{tpu_custom_call.1} parent=1 // pred_region
      _
    $region25: #{tpu_custom_call.1} parent=1 // pred_fallthru
      _
    // Predicated region
    $region26: #{tpu_custom_call.1} parent=1 // pred_check
      _
    $region27: #{tpu_custom_call.1} parent=1 // pred_check_branch
      %52 = sbr.rel (0) target = $region29
    $region28: #{tpu_custom_call.1} parent=1 // pred_region
      _
    $region29: #{tpu_custom_call.1} parent=1 // pred_fallthru
      _
    // Predicated region
    $region30: #{tpu_custom_call.1} parent=1 // pred_check
      _
    $region31: #{tpu_custom_call.1} parent=1 // pred_check_branch
      %54 = sbr.rel (0) target = $region33
    $region32: #{tpu_custom_call.1} parent=1 // pred_region
      _
    $region33: #{tpu_custom_call.1} parent=1 // pred_fallthru
      _
    // Predicated region
    $region34: #{tpu_custom_call.1} parent=1 // pred_check
      _
    $region35: #{tpu_custom_call.1} parent=1 // pred_check_branch
      %56 = sbr.rel (0) target = $region37
    $region36: #{tpu_custom_call.1} parent=1 // pred_region
      _
    $region37: #{tpu_custom_call.1} parent=1 // pred_fallthru
      _
    // Predicated region
    $region38: #{tpu_custom_call.1} parent=1 // pred_check
      _
    $region39: #{tpu_custom_call.1} parent=1 // pred_check_branch
      %58 = sbr.rel (0) target = $region41
    $region40: #{tpu_custom_call.1} parent=1 // pred_region
      %60 = dma.done [#allocation5], 8192
    $region41: #{tpu_custom_call.1} parent=1 // pred_fallthru
      _
    // Predicated region
    $region42: #{tpu_custom_call.1} parent=1 // pred_check
      _
    $region43: #{tpu_custom_call.1} parent=1 // pred_check_branch
      %62 = sbr.rel (0) target = $region45
    $region44: #{tpu_custom_call.1} parent=1 // pred_region
      %64 = dma.done [#allocation8], 8192
    $region45: #{tpu_custom_call.1} parent=1 // pred_fallthru
      _
    %v65 = vld [vmem:[#allocation4] sm:$0xff]
    %v66 = vld [vmem:[#allocation4 + $0x8] sm:$0xff]
    %v67 = vld [vmem:[#allocation4 + $0x10] sm:$0xff]
    %v68 = vld [vmem:[#allocation4 + $0x18] sm:$0xff]
    %v69 = vld [vmem:[#allocation4 + $0x20] sm:$0xff]
    %v70 = vld [vmem:[#allocation4 + $0x28] sm:$0xff]
    %v71 = vld [vmem:[#allocation4 + $0x30] sm:$0xff]
    %v72 = vld [vmem:[#allocation4 + $0x38] sm:$0xff]
    %v73 = vld [vmem:[#allocation4 + $0x40] sm:$0xff]
    %v74 = vld [vmem:[#allocation4 + $0x48] sm:$0xff]
    %v75 = vld [vmem:[#allocation4 + $0x50] sm:$0xff]
    %v76 = vld [vmem:[#allocation4 + $0x58] sm:$0xff]
    %v77 = vld [vmem:[#allocation4 + $0x60] sm:$0xff]
    %v78 = vld [vmem:[#allocation4 + $0x68] sm:$0xff]
    %v79 = vld [vmem:[#allocation4 + $0x70] sm:$0xff]
    %v80 = vld [vmem:[#allocation4 + $0x78] sm:$0xff]
    %v81 = vld [vmem:[#allocation4 + $0x80] sm:$0xff]
    %v82 = vld [vmem:[#allocation4 + $0x88] sm:$0xff]
    %v83 = vld [vmem:[#allocation4 + $0x90] sm:$0xff]
    %v84 = vld [vmem:[#allocation4 + $0x98] sm:$0xff]
    %v85 = vld [vmem:[#allocation4 + $0xa0] sm:$0xff]
    %v86 = vld [vmem:[#allocation4 + $0xa8] sm:$0xff]
    %v87 = vld [vmem:[#allocation4 + $0xb0] sm:$0xff]
    %v88 = vld [vmem:[#allocation4 + $0xb8] sm:$0xff]
    %v89 = vld [vmem:[#allocation4 + $0xc0] sm:$0xff]
    %v90 = vld [vmem:[#allocation4 + $0xc8] sm:$0xff]
    %v91 = vld [vmem:[#allocation4 + $0xd0] sm:$0xff]
    %v92 = vld [vmem:[#allocation4 + $0xd8] sm:$0xff]
    %v93 = vld [vmem:[#allocation4 + $0xe0] sm:$0xff]
    %v94 = vld [vmem:[#allocation4 + $0xe8] sm:$0xff]
    %v95 = vld [vmem:[#allocation4 + $0xf0] sm:$0xff]
    %v96 = vld [vmem:[#allocation4 + $0xf8] sm:$0xff]
    %v97 = vld [vmem:[#allocation4 + $0x100] sm:$0xff]
    %v98 = vld [vmem:[#allocation4 + $0x108] sm:$0xff]
    %v99 = vld [vmem:[#allocation4 + $0x110] sm:$0xff]
    %v100 = vld [vmem:[#allocation4 + $0x118] sm:$0xff]
    %v101 = vld [vmem:[#allocation4 + $0x120] sm:$0xff]
    %v102 = vld [vmem:[#allocation4 + $0x128] sm:$0xff]
    %v103 = vld [vmem:[#allocation4 + $0x130] sm:$0xff]
    %v104 = vld [vmem:[#allocation4 + $0x138] sm:$0xff]
    %v105 = vld [vmem:[#allocation4 + $0x140] sm:$0xff]
    %v106 = vld [vmem:[#allocation4 + $0x148] sm:$0xff]
    %v107 = vld [vmem:[#allocation4 + $0x150] sm:$0xff]
    %v108 = vld [vmem:[#allocation4 + $0x158] sm:$0xff]
    %v109 = vld [vmem:[#allocation4 + $0x160] sm:$0xff]
    %v110 = vld [vmem:[#allocation4 + $0x168] sm:$0xff]
    %v111 = vld [vmem:[#allocation4 + $0x170] sm:$0xff]
    %v112 = vld [vmem:[#allocation4 + $0x178] sm:$0xff]
    %v113 = vld [vmem:[#allocation4 + $0x180] sm:$0xff]
    %v114 = vld [vmem:[#allocation4 + $0x188] sm:$0xff]
    %v115 = vld [vmem:[#allocation4 + $0x190] sm:$0xff]
    %v116 = vld [vmem:[#allocation4 + $0x198] sm:$0xff]
    %v117 = vld [vmem:[#allocation4 + $0x1a0] sm:$0xff]
    %v118 = vld [vmem:[#allocation4 + $0x1a8] sm:$0xff]
    %v119 = vld [vmem:[#allocation4 + $0x1b0] sm:$0xff]
    %v120 = vld [vmem:[#allocation4 + $0x1b8] sm:$0xff]
    %v121 = vld [vmem:[#allocation4 + $0x1c0] sm:$0xff]
    %v122 = vld [vmem:[#allocation4 + $0x1c8] sm:$0xff]
    %v123 = vld [vmem:[#allocation4 + $0x1d0] sm:$0xff]
    %v124 = vld [vmem:[#allocation4 + $0x1d8] sm:$0xff]
    %v125 = vld [vmem:[#allocation4 + $0x1e0] sm:$0xff]
    %v126 = vld [vmem:[#allocation4 + $0x1e8] sm:$0xff]
    %v127 = vld [vmem:[#allocation4 + $0x1f0] sm:$0xff]
    %v128 = vld [vmem:[#allocation4 + $0x1f8] sm:$0xff]
    %v129 = vld [vmem:[#allocation7] sm:$0xff]
    %v130 = vld [vmem:[#allocation7 + $0x8] sm:$0xff]
    %v131 = vld [vmem:[#allocation7 + $0x10] sm:$0xff]
    %v132 = vld [vmem:[#allocation7 + $0x18] sm:$0xff]
    %v133 = vld [vmem:[#allocation7 + $0x20] sm:$0xff]
    %v134 = vld [vmem:[#allocation7 + $0x28] sm:$0xff]
    %v135 = vld [vmem:[#allocation7 + $0x30] sm:$0xff]
    %v136 = vld [vmem:[#allocation7 + $0x38] sm:$0xff]
    %v137 = vld [vmem:[#allocation7 + $0x40] sm:$0xff]
    %v138 = vld [vmem:[#allocation7 + $0x48] sm:$0xff]
    %v139 = vld [vmem:[#allocation7 + $0x50] sm:$0xff]
    %v140 = vld [vmem:[#allocation7 + $0x58] sm:$0xff]
    %v141 = vld [vmem:[#allocation7 + $0x60] sm:$0xff]
    %v142 = vld [vmem:[#allocation7 + $0x68] sm:$0xff]
    %v143 = vld [vmem:[#allocation7 + $0x70] sm:$0xff]
    %v144 = vld [vmem:[#allocation7 + $0x78] sm:$0xff]
    %v145 = vld [vmem:[#allocation7 + $0x80] sm:$0xff]
    %v146 = vld [vmem:[#allocation7 + $0x88] sm:$0xff]
    %v147 = vld [vmem:[#allocation7 + $0x90] sm:$0xff]
    %v148 = vld [vmem:[#allocation7 + $0x98] sm:$0xff]
    %v149 = vld [vmem:[#allocation7 + $0xa0] sm:$0xff]
    %v150 = vld [vmem:[#allocation7 + $0xa8] sm:$0xff]
    %v151 = vld [vmem:[#allocation7 + $0xb0] sm:$0xff]
    %v152 = vld [vmem:[#allocation7 + $0xb8] sm:$0xff]
    %v153 = vld [vmem:[#allocation7 + $0xc0] sm:$0xff]
    %v154 = vld [vmem:[#allocation7 + $0xc8] sm:$0xff]
    %v155 = vld [vmem:[#allocation7 + $0xd0] sm:$0xff]
    %v156 = vld [vmem:[#allocation7 + $0xd8] sm:$0xff]
    %v157 = vld [vmem:[#allocation7 + $0xe0] sm:$0xff]
    %v158 = vld [vmem:[#allocation7 + $0xe8] sm:$0xff]
    %v159 = vld [vmem:[#allocation7 + $0xf0] sm:$0xff]
    %v160 = vld [vmem:[#allocation7 + $0xf8] sm:$0xff]
    %v161 = vld [vmem:[#allocation7 + $0x100] sm:$0xff]
    %v162 = vld [vmem:[#allocation7 + $0x108] sm:$0xff]
    %v163 = vld [vmem:[#allocation7 + $0x110] sm:$0xff]
    %v164 = vld [vmem:[#allocation7 + $0x118] sm:$0xff]
    %v165 = vld [vmem:[#allocation7 + $0x120] sm:$0xff]
    %v166 = vld [vmem:[#allocation7 + $0x128] sm:$0xff]
    %v167 = vld [vmem:[#allocation7 + $0x130] sm:$0xff]
    %v168 = vld [vmem:[#allocation7 + $0x138] sm:$0xff]
    %v169 = vld [vmem:[#allocation7 + $0x140] sm:$0xff]
    %v170 = vld [vmem:[#allocation7 + $0x148] sm:$0xff]
    %v171 = vld [vmem:[#allocation7 + $0x150] sm:$0xff]
    %v172 = vld [vmem:[#allocation7 + $0x158] sm:$0xff]
    %v173 = vld [vmem:[#allocation7 + $0x160] sm:$0xff]
    %v174 = vld [vmem:[#allocation7 + $0x168] sm:$0xff]
    %v175 = vld [vmem:[#allocation7 + $0x170] sm:$0xff]
    %v176 = vld [vmem:[#allocation7 + $0x178] sm:$0xff]
    %v177 = vld [vmem:[#allocation7 + $0x180] sm:$0xff]
    %v178 = vld [vmem:[#allocation7 + $0x188] sm:$0xff]
    %v179 = vld [vmem:[#allocation7 + $0x190] sm:$0xff]
    %v180 = vld [vmem:[#allocation7 + $0x198] sm:$0xff]
    %v181 = vld [vmem:[#allocation7 + $0x1a0] sm:$0xff]
    %v182 = vld [vmem:[#allocation7 + $0x1a8] sm:$0xff]
    %v183 = vld [vmem:[#allocation7 + $0x1b0] sm:$0xff]
    %v184 = vld [vmem:[#allocation7 + $0x1b8] sm:$0xff]
    %v185 = vld [vmem:[#allocation7 + $0x1c0] sm:$0xff]
    %v186 = vld [vmem:[#allocation7 + $0x1c8] sm:$0xff]
    %v187 = vld [vmem:[#allocation7 + $0x1d0] sm:$0xff]
    %v188 = vld [vmem:[#allocation7 + $0x1d8] sm:$0xff]
    %v189 = vld [vmem:[#allocation7 + $0x1e0] sm:$0xff]
    %v190 = vld [vmem:[#allocation7 + $0x1e8] sm:$0xff]
    %v191 = vld [vmem:[#allocation7 + $0x1f0] sm:$0xff]
    %v192 = vld [vmem:[#allocation7 + $0x1f8] sm:$0xff]
    %v193 = vld [vmem:[%s2] sm:$0x1]
    %v194 = vld [vmem:[%s3] sm:$0x1]
    %v195 = vld [vmem:[%s5] sm:$0x1]
    %v196 = vld [vmem:[%s6] sm:$0x1]
    %v197 = vld [vmem:[%s7] sm:$0xff]
    %v198 = vld [vmem:[%s7 + $0x8] sm:$0xff]
    %v199 = vld [vmem:[%s7 + $0x10] sm:$0xff]
    %v200 = vld [vmem:[%s7 + $0x18] sm:$0xff]
    %v201 = vld [vmem:[%s8] sm:$0x1]
    %202 = vst [vmem:[#allocation2] sm:$0xf] 0.0
    %203 = vst [vmem:[#allocation3] sm:$0xf] 0.0
    %v204 = vld [vmem:[%s0] sm:$0x3]
    %vm205 = vcmask 25600
    %206 = vst.msk [vmem:[#allocation2] sm:$0x3] %vm205, %v204
    %vm207 = vcmask 254976
    %208 = vst.msk [vmem:[#allocation2 + $0x2] sm:$0x3] %vm207, 0.0
    %v209 = vld [vmem:[#allocation2] sm:$0xf]
    %211 = vst [vmem:[#allocation1] ss:$4 sm:$0xff] %v209
    %v212 = vld.sshfl [vmem:[#allocation1] sm:$0xff pattern:$0x73625140]
    %v213 = vld.sshfl [vmem:[#allocation1 + $0x8] sm:$0xff pattern:$0x73625140]
    %216 = vmatpush.msra.mxu0 %v95
    %217 = vmatpush.msra.mxu0 %v93
    %218 = vmatpush.msra.mxu0 %v91
    %219 = vmatpush.msra.mxu0 %v89
    %220 = vmatpush.msra.mxu0 %v87
    %221 = vmatpush.msra.mxu0 %v85
    %222 = vmatpush.msra.mxu0 %v83
    %223 = vmatpush.msra.mxu0 %v81
    %224 = vmatpush.msra.mxu0 %v79
    %225 = vmatpush.msra.mxu0 %v77
    %226 = vmatpush.msra.mxu0 %v75
    %227 = vmatpush.msra.mxu0 %v73
    %228 = vmatpush.msra.mxu0 %v71
    %229 = vmatpush.msra.mxu0 %v69
    %230 = vmatpush.msra.mxu0 %v67
    %231 = vmatpush.msra.mxu0 %v65
    %232 = vmatmul.f32.gmra.mxu0 %v212
    %v233 = vpop.f32.mrf.mxu0
    %v234 = vadd.f32 0.0, %v233
    %235 = vdwg.mxu0
    %236 = vmatpush.msra.mxu0 %v127
    %237 = vmatpush.msra.mxu0 %v125
    %238 = vmatpush.msra.mxu0 %v123
    %239 = vmatpush.msra.mxu0 %v121
    %240 = vmatpush.msra.mxu0 %v119
    %241 = vmatpush.msra.mxu0 %v117
    %242 = vmatpush.msra.mxu0 %v115
    %243 = vmatpush.msra.mxu0 %v113
    %244 = vmatpush.msra.mxu0 %v111
    %245 = vmatpush.msra.mxu0 %v109
    %246 = vmatpush.msra.mxu0 %v107
    %247 = vmatpush.msra.mxu0 %v105
    %248 = vmatpush.msra.mxu0 %v103
    %249 = vmatpush.msra.mxu0 %v101
    %250 = vmatpush.msra.mxu0 %v99
    %251 = vmatpush.msra.mxu0 %v97
    %252 = vmatmul.f32.gmra.mxu0 %v213
    %v253 = vpop.f32.mrf.mxu0
    %v254 = vadd.f32 %v234, %v253
    %255 = vdwg.mxu0
    %256 = vmatpush.msra.mxu0 %v96
    %257 = vmatpush.msra.mxu0 %v94
    %258 = vmatpush.msra.mxu0 %v92
    %259 = vmatpush.msra.mxu0 %v90
    %260 = vmatpush.msra.mxu0 %v88
    %261 = vmatpush.msra.mxu0 %v86
    %262 = vmatpush.msra.mxu0 %v84
    %263 = vmatpush.msra.mxu0 %v82
    %264 = vmatpush.msra.mxu0 %v80
    %265 = vmatpush.msra.mxu0 %v78
    %266 = vmatpush.msra.mxu0 %v76
    %267 = vmatpush.msra.mxu0 %v74
    %268 = vmatpush.msra.mxu0 %v72
    %269 = vmatpush.msra.mxu0 %v70
    %270 = vmatpush.msra.mxu0 %v68
    %271 = vmatpush.msra.mxu0 %v66
    %272 = vmatmul.f32.gmra.mxu0 %v212
    %v273 = vpop.f32.mrf.mxu0
    %v274 = vadd.f32 0.0, %v273
    %275 = vdwg.mxu0
    %276 = vmatpush.msra.mxu0 %v128
    %277 = vmatpush.msra.mxu0 %v126
    %278 = vmatpush.msra.mxu0 %v124
    %279 = vmatpush.msra.mxu0 %v122
    %280 = vmatpush.msra.mxu0 %v120
    %281 = vmatpush.msra.mxu0 %v118
    %282 = vmatpush.msra.mxu0 %v116
    %283 = vmatpush.msra.mxu0 %v114
    %284 = vmatpush.msra.mxu0 %v112
    %285 = vmatpush.msra.mxu0 %v110
    %286 = vmatpush.msra.mxu0 %v108
    %287 = vmatpush.msra.mxu0 %v106
    %288 = vmatpush.msra.mxu0 %v104
    %289 = vmatpush.msra.mxu0 %v102
    %290 = vmatpush.msra.mxu0 %v100
    %291 = vmatpush.msra.mxu0 %v98
    %292 = vmatmul.f32.gmra.mxu0 %v213
    %v293 = vpop.f32.mrf.mxu0
    %v294 = vadd.f32 %v274, %v293
    %295 = vdwg.mxu0
    %v297 = vperm.slane %v193, 0
    %v299 = vadd.f32 %v254, %v297
    %v300 = vadd.f32 %v299, %v294
    %v301 = vxor.u32 %v300, 2147483648
    %v302 = vmul.f32 %v301, 1.442695
    %v303 = vpow.pop %v302
    %v304 = vadd.f32 %v303, 1.0
    %v305 = vrcp.pop %v304
    %v306 = vmul.f32 %v304, %v305
    %v307 = vsub.f32 1.0, %v306
    %v308 = vmul.f32 %v305, %v307
    %v309 = vadd.f32 %v305, %v308
    %vm310 = vweird.f32 %v304
    %vm311 = vweird.f32 %v305
    %vm312 = vmor %vm310, %vm311
    %v313 = vsel %vm312, %v305, %v309
    %v314 = vand.u32 2147483647, %v304
    %vm315 = vcmp.eq.f32.partialorder %v314, 8.507059e+37
    %v316 = vand.u32 %v304, 2147483648
    %v317 = vor.u32 1.1754944e-38, %v316
    %v318 = vsel %vm315, %v317, %v313
    %v319 = vmul.f32 1.0, %v318
    %v321 = vperm.slane %v194, 0
    %322 = vrot.lane.b32.xlu0 %v321, 64
    %v323 = vpop.permute.xlu0 %322
    %v325 = vadd.f32 %v294, %v323
    %327 = vrot.lane.b32.xlu0 %v325, 64
    %v328 = vpop.permute.xlu0 %327
    %v330 = vmul.f32 %v319, %v328
    %332 = vrot.lane.b32.xlu0 %v330, 64
    %v333 = vpop.permute.xlu0 %332
    %v335 = vadd.f32 %v299, %v333
    %v336 = vtanh.pop %v335
    %v337 = vsub.f32 1.0, %v319
    %339 = vrot.lane.b32.xlu0 %v336, 96
    %v340 = vpop.permute.xlu0 %339
    %v342 = vmul.f32 %v337, %v340
    %v343 = vmul.f32 %v319, 0.0
    %v344 = vadd.f32 %v342, %v343
    %346 = vrot.lane.b32.xlu0 %v344, 96
    %v347 = vpop.permute.xlu0 %346
    %349 = vst.msk [vmem:[#allocation3] sm:$0x3] %vm207, %v347
    %350 = vst.msk [vmem:[#allocation3 + $0x2] sm:$0x3] %vm207, 0.0
    %v351 = vld [vmem:[#allocation3] sm:$0xf]
    %353 = vst [vmem:[#allocation1] ss:$4 sm:$0xff] %v351
    %v354 = vld.sshfl [vmem:[#allocation1] sm:$0xff pattern:$0x73625140]
    %v355 = vld.sshfl [vmem:[#allocation1 + $0x8] sm:$0xff pattern:$0x73625140]
    %358 = vmatpush.msra.mxu0 %v159
    %359 = vmatpush.msra.mxu0 %v157
    %360 = vmatpush.msra.mxu0 %v155
    %361 = vmatpush.msra.mxu0 %v153
    %362 = vmatpush.msra.mxu0 %v151
    %363 = vmatpush.msra.mxu0 %v149
    %364 = vmatpush.msra.mxu0 %v147
    %365 = vmatpush.msra.mxu0 %v145
    %366 = vmatpush.msra.mxu0 %v143
    %367 = vmatpush.msra.mxu0 %v141
    %368 = vmatpush.msra.mxu0 %v139
    %369 = vmatpush.msra.mxu0 %v137
    %370 = vmatpush.msra.mxu0 %v135
    %371 = vmatpush.msra.mxu0 %v133
    %372 = vmatpush.msra.mxu0 %v131
    %373 = vmatpush.msra.mxu0 %v129
    %374 = vmatmul.f32.gmra.mxu0 %v354
    %v375 = vpop.f32.mrf.mxu0
    %v376 = vadd.f32 0.0, %v375
    %377 = vdwg.mxu0
    %378 = vmatpush.msra.mxu0 %v191
    %379 = vmatpush.msra.mxu0 %v189
    %380 = vmatpush.msra.mxu0 %v187
    %381 = vmatpush.msra.mxu0 %v185
    %382 = vmatpush.msra.mxu0 %v183
    %383 = vmatpush.msra.mxu0 %v181
    %384 = vmatpush.msra.mxu0 %v179
    %385 = vmatpush.msra.mxu0 %v177
    %386 = vmatpush.msra.mxu0 %v175
    %387 = vmatpush.msra.mxu0 %v173
    %388 = vmatpush.msra.mxu0 %v171
    %389 = vmatpush.msra.mxu0 %v169
    %390 = vmatpush.msra.mxu0 %v167
    %391 = vmatpush.msra.mxu0 %v165
    %392 = vmatpush.msra.mxu0 %v163
    %393 = vmatpush.msra.mxu0 %v161
    %394 = vmatmul.f32.gmra.mxu0 %v355
    %v395 = vpop.f32.mrf.mxu0
    %v396 = vadd.f32 %v376, %v395
    %397 = vdwg.mxu0
    %398 = vmatpush.msra.mxu0 %v160
    %399 = vmatpush.msra.mxu0 %v158
    %400 = vmatpush.msra.mxu0 %v156
    %401 = vmatpush.msra.mxu0 %v154
    %402 = vmatpush.msra.mxu0 %v152
    %403 = vmatpush.msra.mxu0 %v150
    %404 = vmatpush.msra.mxu0 %v148
    %405 = vmatpush.msra.mxu0 %v146
    %406 = vmatpush.msra.mxu0 %v144
    %407 = vmatpush.msra.mxu0 %v142
    %408 = vmatpush.msra.mxu0 %v140
    %409 = vmatpush.msra.mxu0 %v138
    %410 = vmatpush.msra.mxu0 %v136
    %411 = vmatpush.msra.mxu0 %v134
    %412 = vmatpush.msra.mxu0 %v132
    %413 = vmatpush.msra.mxu0 %v130
    %414 = vmatmul.f32.gmra.mxu0 %v354
    %v415 = vpop.f32.mrf.mxu0
    %v416 = vadd.f32 0.0, %v415
    %417 = vdwg.mxu0
    %418 = vmatpush.msra.mxu0 %v192
    %419 = vmatpush.msra.mxu0 %v190
    %420 = vmatpush.msra.mxu0 %v188
    %421 = vmatpush.msra.mxu0 %v186
    %422 = vmatpush.msra.mxu0 %v184
    %423 = vmatpush.msra.mxu0 %v182
    %424 = vmatpush.msra.mxu0 %v180
    %425 = vmatpush.msra.mxu0 %v178
    %426 = vmatpush.msra.mxu0 %v176
    %427 = vmatpush.msra.mxu0 %v174
    %428 = vmatpush.msra.mxu0 %v172
    %429 = vmatpush.msra.mxu0 %v170
    %430 = vmatpush.msra.mxu0 %v168
    %431 = vmatpush.msra.mxu0 %v166
    %432 = vmatpush.msra.mxu0 %v164
    %433 = vmatpush.msra.mxu0 %v162
    %434 = vmatmul.f32.gmra.mxu0 %v355
    %v435 = vpop.f32.mrf.mxu0
    %v436 = vadd.f32 %v416, %v435
    %437 = vdwg.mxu0
    %v439 = vperm.slane %v195, 0
    %v441 = vadd.f32 %v396, %v439
    %v442 = vadd.f32 %v441, %v436
    %v443 = vxor.u32 %v442, 2147483648
    %v444 = vmul.f32 %v443, 1.442695
    %v445 = vpow.pop %v444
    %v446 = vadd.f32 %v445, 1.0
    %v447 = vrcp.pop %v446
    %v448 = vmul.f32 %v446, %v447
    %v449 = vsub.f32 1.0, %v448
    %v450 = vmul.f32 %v447, %v449
    %v451 = vadd.f32 %v447, %v450
    %vm452 = vweird.f32 %v446
    %vm453 = vweird.f32 %v447
    %vm454 = vmor %vm452, %vm453
    %v455 = vsel %vm454, %v447, %v451
    %v456 = vand.u32 2147483647, %v446
    %vm457 = vcmp.eq.f32.partialorder %v456, 8.507059e+37
    %v458 = vand.u32 %v446, 2147483648
    %v459 = vor.u32 1.1754944e-38, %v458
    %v460 = vsel %vm457, %v459, %v455
    %v461 = vmul.f32 1.0, %v460
    %v463 = vperm.slane %v196, 0
    %464 = vrot.lane.b32.xlu0 %v463, 64
    %v465 = vpop.permute.xlu0 %464
    %v467 = vadd.f32 %v436, %v465
    %469 = vrot.lane.b32.xlu0 %v467, 64
    %v470 = vpop.permute.xlu0 %469
    %v472 = vmul.f32 %v461, %v470
    %474 = vrot.lane.b32.xlu0 %v472, 64
    %v475 = vpop.permute.xlu0 %474
    %v477 = vadd.f32 %v441, %v475
    %v478 = vtanh.pop %v477
    %v479 = vsub.f32 1.0, %v461
    %481 = vrot.lane.b32.xlu0 %v478, 96
    %v482 = vpop.permute.xlu0 %481
    %v484 = vmul.f32 %v479, %v482
    %v485 = vmul.f32 %v461, 0.0
    %v486 = vadd.f32 %v484, %v485
    %s487 = scalar_lea.vmem %s0, 2
    %v488 = vld [vmem:[%s487] sm:$0x3]
    %489 = vst.msk [vmem:[#allocation2] sm:$0x3] %vm205, %v488
    %490 = vst.msk [vmem:[#allocation2 + $0x2] sm:$0x3] %vm207, %v347
    %v491 = vld [vmem:[#allocation2] sm:$0xf]
    %493 = vst [vmem:[#allocation1] ss:$4 sm:$0xff] %v491
    %v494 = vld.sshfl [vmem:[#allocation1] sm:$0xff pattern:$0x73625140]
    %v495 = vld.sshfl [vmem:[#allocation1 + $0x8] sm:$0xff pattern:$0x73625140]
    %498 = vmatpush.msra.mxu0 %v95
    %499 = vmatpush.msra.mxu0 %v93
    %500 = vmatpush.msra.mxu0 %v91
    %501 = vmatpush.msra.mxu0 %v89
    %502 = vmatpush.msra.mxu0 %v87
    %503 = vmatpush.msra.mxu0 %v85
    %504 = vmatpush.msra.mxu0 %v83
    %505 = vmatpush.msra.mxu0 %v81
    %506 = vmatpush.msra.mxu0 %v79
    %507 = vmatpush.msra.mxu0 %v77
    %508 = vmatpush.msra.mxu0 %v75
    %509 = vmatpush.msra.mxu0 %v73
    %510 = vmatpush.msra.mxu0 %v71
    %511 = vmatpush.msra.mxu0 %v69
    %512 = vmatpush.msra.mxu0 %v67
    %513 = vmatpush.msra.mxu0 %v65
    %514 = vmatmul.f32.gmra.mxu0 %v494
    %v515 = vpop.f32.mrf.mxu0
    %v516 = vadd.f32 0.0, %v515
    %517 = vdwg.mxu0
    %518 = vmatpush.msra.mxu0 %v127
    %519 = vmatpush.msra.mxu0 %v125
    %520 = vmatpush.msra.mxu0 %v123
    %521 = vmatpush.msra.mxu0 %v121
    %522 = vmatpush.msra.mxu0 %v119
    %523 = vmatpush.msra.mxu0 %v117
    %524 = vmatpush.msra.mxu0 %v115
    %525 = vmatpush.msra.mxu0 %v113
    %526 = vmatpush.msra.mxu0 %v111
    %527 = vmatpush.msra.mxu0 %v109
    %528 = vmatpush.msra.mxu0 %v107
    %529 = vmatpush.msra.mxu0 %v105
    %530 = vmatpush.msra.mxu0 %v103
    %531 = vmatpush.msra.mxu0 %v101
    %532 = vmatpush.msra.mxu0 %v99
    %533 = vmatpush.msra.mxu0 %v97
    %534 = vmatmul.f32.gmra.mxu0 %v495
    %v535 = vpop.f32.mrf.mxu0
    %v536 = vadd.f32 %v516, %v535
    %537 = vdwg.mxu0
    %538 = vmatpush.msra.mxu0 %v96
    %539 = vmatpush.msra.mxu0 %v94
    %540 = vmatpush.msra.mxu0 %v92
    %541 = vmatpush.msra.mxu0 %v90
    %542 = vmatpush.msra.mxu0 %v88
    %543 = vmatpush.msra.mxu0 %v86
    %544 = vmatpush.msra.mxu0 %v84
    %545 = vmatpush.msra.mxu0 %v82
    %546 = vmatpush.msra.mxu0 %v80
    %547 = vmatpush.msra.mxu0 %v78
    %548 = vmatpush.msra.mxu0 %v76
    %549 = vmatpush.msra.mxu0 %v74
    %550 = vmatpush.msra.mxu0 %v72
    %551 = vmatpush.msra.mxu0 %v70
    %552 = vmatpush.msra.mxu0 %v68
    %553 = vmatpush.msra.mxu0 %v66
    %554 = vmatmul.f32.gmra.mxu0 %v494
    %v555 = vpop.f32.mrf.mxu0
    %v556 = vadd.f32 0.0, %v555
    %557 = vdwg.mxu0
    %558 = vmatpush.msra.mxu0 %v128
    %559 = vmatpush.msra.mxu0 %v126
    %560 = vmatpush.msra.mxu0 %v124
    %561 = vmatpush.msra.mxu0 %v122
    %562 = vmatpush.msra.mxu0 %v120
    %563 = vmatpush.msra.mxu0 %v118
    %564 = vmatpush.msra.mxu0 %v116
    %565 = vmatpush.msra.mxu0 %v114
    %566 = vmatpush.msra.mxu0 %v112
    %567 = vmatpush.msra.mxu0 %v110
    %568 = vmatpush.msra.mxu0 %v108
    %569 = vmatpush.msra.mxu0 %v106
    %570 = vmatpush.msra.mxu0 %v104
    %571 = vmatpush.msra.mxu0 %v102
    %572 = vmatpush.msra.mxu0 %v100
    %573 = vmatpush.msra.mxu0 %v98
    %574 = vmatmul.f32.gmra.mxu0 %v495
    %v575 = vpop.f32.mrf.mxu0
    %v576 = vadd.f32 %v556, %v575
    %577 = vdwg.mxu0
    %v578 = vadd.f32 %v536, %v297
    %v579 = vadd.f32 %v578, %v576
    %v580 = vxor.u32 %v579, 2147483648
    %v581 = vmul.f32 %v580, 1.442695
    %v582 = vpow.pop %v581
    %v583 = vadd.f32 %v582, 1.0
    %v584 = vrcp.pop %v583
    %v585 = vmul.f32 %v583, %v584
    %v586 = vsub.f32 1.0, %v585
    %v587 = vmul.f32 %v584, %v586
    %v588 = vadd.f32 %v584, %v587
    %vm589 = vweird.f32 %v583
    %vm590 = vweird.f32 %v584
    %vm591 = vmor %vm589, %vm590
    %v592 = vsel %vm591, %v584, %v588
    %v593 = vand.u32 2147483647, %v583
    %vm594 = vcmp.eq.f32.partialorder %v593, 8.507059e+37
    %v595 = vand.u32 %v583, 2147483648
    %v596 = vor.u32 1.1754944e-38, %v595
    %v597 = vsel %vm594, %v596, %v592
    %v598 = vmul.f32 1.0, %v597
    %v599 = vadd.f32 %v576, %v323
    %601 = vrot.lane.b32.xlu0 %v599, 64
    %v602 = vpop.permute.xlu0 %601
    %v604 = vmul.f32 %v598, %v602
    %606 = vrot.lane.b32.xlu0 %v604, 64
    %v607 = vpop.permute.xlu0 %606
    %v609 = vadd.f32 %v578, %v607
    %v610 = vtanh.pop %v609
    %v611 = vsub.f32 1.0, %v598
    %613 = vrot.lane.b32.xlu0 %v610, 96
    %v614 = vpop.permute.xlu0 %613
    %v616 = vmul.f32 %v611, %v614
    %v617 = vmul.f32 %v598, %v344
    %v618 = vadd.f32 %v616, %v617
    %620 = vrot.lane.b32.xlu0 %v618, 96
    %v621 = vpop.permute.xlu0 %620
    %623 = vst.msk [vmem:[#allocation3] sm:$0x3] %vm207, %v621
    %625 = vrot.lane.b32.xlu0 %v486, 96
    %v626 = vpop.permute.xlu0 %625
    %628 = vst.msk [vmem:[#allocation3 + $0x2] sm:$0x3] %vm207, %v626
    %v629 = vld [vmem:[#allocation3] sm:$0xf]
    %631 = vst [vmem:[#allocation1] ss:$4 sm:$0xff] %v629
    %v632 = vld.sshfl [vmem:[#allocation1] sm:$0xff pattern:$0x73625140]
    %v633 = vld.sshfl [vmem:[#allocation1 + $0x8] sm:$0xff pattern:$0x73625140]
    %636 = vmatpush.msra.mxu0 %v159
    %637 = vmatpush.msra.mxu0 %v157
    %638 = vmatpush.msra.mxu0 %v155
    %639 = vmatpush.msra.mxu0 %v153
    %640 = vmatpush.msra.mxu0 %v151
    %641 = vmatpush.msra.mxu0 %v149
    %642 = vmatpush.msra.mxu0 %v147
    %643 = vmatpush.msra.mxu0 %v145
    %644 = vmatpush.msra.mxu0 %v143
    %645 = vmatpush.msra.mxu0 %v141
    %646 = vmatpush.msra.mxu0 %v139
    %647 = vmatpush.msra.mxu0 %v137
    %648 = vmatpush.msra.mxu0 %v135
    %649 = vmatpush.msra.mxu0 %v133
    %650 = vmatpush.msra.mxu0 %v131
    %651 = vmatpush.msra.mxu0 %v129
    %652 = vmatmul.f32.gmra.mxu0 %v632
    %v653 = vpop.f32.mrf.mxu0
    %v654 = vadd.f32 0.0, %v653
    %655 = vdwg.mxu0
    %656 = vmatpush.msra.mxu0 %v191
    %657 = vmatpush.msra.mxu0 %v189
    %658 = vmatpush.msra.mxu0 %v187
    %659 = vmatpush.msra.mxu0 %v185
    %660 = vmatpush.msra.mxu0 %v183
    %661 = vmatpush.msra.mxu0 %v181
    %662 = vmatpush.msra.mxu0 %v179
    %663 = vmatpush.msra.mxu0 %v177
    %664 = vmatpush.msra.mxu0 %v175
    %665 = vmatpush.msra.mxu0 %v173
    %666 = vmatpush.msra.mxu0 %v171
    %667 = vmatpush.msra.mxu0 %v169
    %668 = vmatpush.msra.mxu0 %v167
    %669 = vmatpush.msra.mxu0 %v165
    %670 = vmatpush.msra.mxu0 %v163
    %671 = vmatpush.msra.mxu0 %v161
    %672 = vmatmul.f32.gmra.mxu0 %v633
    %v673 = vpop.f32.mrf.mxu0
    %v674 = vadd.f32 %v654, %v673
    %675 = vdwg.mxu0
    %676 = vmatpush.msra.mxu0 %v160
    %677 = vmatpush.msra.mxu0 %v158
    %678 = vmatpush.msra.mxu0 %v156
    %679 = vmatpush.msra.mxu0 %v154
    %680 = vmatpush.msra.mxu0 %v152
    %681 = vmatpush.msra.mxu0 %v150
    %682 = vmatpush.msra.mxu0 %v148
    %683 = vmatpush.msra.mxu0 %v146
    %684 = vmatpush.msra.mxu0 %v144
    %685 = vmatpush.msra.mxu0 %v142
    %686 = vmatpush.msra.mxu0 %v140
    %687 = vmatpush.msra.mxu0 %v138
    %688 = vmatpush.msra.mxu0 %v136
    %689 = vmatpush.msra.mxu0 %v134
    %690 = vmatpush.msra.mxu0 %v132
    %691 = vmatpush.msra.mxu0 %v130
    %692 = vmatmul.f32.gmra.mxu0 %v632
    %v693 = vpop.f32.mrf.mxu0
    %v694 = vadd.f32 0.0, %v693
    %695 = vdwg.mxu0
    %696 = vmatpush.msra.mxu0 %v192
    %697 = vmatpush.msra.mxu0 %v190
    %698 = vmatpush.msra.mxu0 %v188
    %699 = vmatpush.msra.mxu0 %v186
    %700 = vmatpush.msra.mxu0 %v184
    %701 = vmatpush.msra.mxu0 %v182
    %702 = vmatpush.msra.mxu0 %v180
    %703 = vmatpush.msra.mxu0 %v178
    %704 = vmatpush.msra.mxu0 %v176
    %705 = vmatpush.msra.mxu0 %v174
    %706 = vmatpush.msra.mxu0 %v172
    %707 = vmatpush.msra.mxu0 %v170
    %708 = vmatpush.msra.mxu0 %v168
    %709 = vmatpush.msra.mxu0 %v166
    %710 = vmatpush.msra.mxu0 %v164
    %711 = vmatpush.msra.mxu0 %v162
    %712 = vmatmul.f32.gmra.mxu0 %v633
    %v713 = vpop.f32.mrf.mxu0
    %v714 = vadd.f32 %v694, %v713
    %715 = vdwg.mxu0
    %v716 = vadd.f32 %v674, %v439
    %v717 = vadd.f32 %v716, %v714
    %v718 = vxor.u32 %v717, 2147483648
    %v719 = vmul.f32 %v718, 1.442695
    %v720 = vpow.pop %v719
    %v721 = vadd.f32 %v720, 1.0
    %v722 = vrcp.pop %v721
    %v723 = vmul.f32 %v721, %v722
    %v724 = vsub.f32 1.0, %v723
    %v725 = vmul.f32 %v722, %v724
    %v726 = vadd.f32 %v722, %v725
    %vm727 = vweird.f32 %v721
    %vm728 = vweird.f32 %v722
    %vm729 = vmor %vm727, %vm728
    %v730 = vsel %vm729, %v722, %v726
    %v731 = vand.u32 2147483647, %v721
    %vm732 = vcmp.eq.f32.partialorder %v731, 8.507059e+37
    %v733 = vand.u32 %v721, 2147483648
    %v734 = vor.u32 1.1754944e-38, %v733
    %v735 = vsel %vm732, %v734, %v730
    %v736 = vmul.f32 1.0, %v735
    %v737 = vadd.f32 %v714, %v465
    %739 = vrot.lane.b32.xlu0 %v737, 64
    %v740 = vpop.permute.xlu0 %739
    %v742 = vmul.f32 %v736, %v740
    %744 = vrot.lane.b32.xlu0 %v742, 64
    %v745 = vpop.permute.xlu0 %744
    %v747 = vadd.f32 %v716, %v745
    %v748 = vtanh.pop %v747
    %v749 = vsub.f32 1.0, %v736
    %751 = vrot.lane.b32.xlu0 %v748, 96
    %v752 = vpop.permute.xlu0 %751
    %v754 = vmul.f32 %v749, %v752
    %v755 = vmul.f32 %v736, %v486
    %v756 = vadd.f32 %v754, %v755
    %s757 = scalar_lea.vmem %s0, 4
    %v758 = vld [vmem:[%s757] sm:$0x3]
    %759 = vst.msk [vmem:[#allocation2] sm:$0x3] %vm205, %v758
    %760 = vst.msk [vmem:[#allocation2 + $0x2] sm:$0x3] %vm207, %v621
    %v761 = vld [vmem:[#allocation2] sm:$0xf]
    %763 = vst [vmem:[#allocation1] ss:$4 sm:$0xff] %v761
    %v764 = vld.sshfl [vmem:[#allocation1] sm:$0xff pattern:$0x73625140]
    %v765 = vld.sshfl [vmem:[#allocation1 + $0x8] sm:$0xff pattern:$0x73625140]
    %768 = vmatpush.msra.mxu0 %v95
    %769 = vmatpush.msra.mxu0 %v93
    %770 = vmatpush.msra.mxu0 %v91
    %771 = vmatpush.msra.mxu0 %v89
    %772 = vmatpush.msra.mxu0 %v87
    %773 = vmatpush.msra.mxu0 %v85
    %774 = vmatpush.msra.mxu0 %v83
    %775 = vmatpush.msra.mxu0 %v81
    %776 = vmatpush.msra.mxu0 %v79
    %777 = vmatpush.msra.mxu0 %v77
    %778 = vmatpush.msra.mxu0 %v75
    %779 = vmatpush.msra.mxu0 %v73
    %780 = vmatpush.msra.mxu0 %v71
    %781 = vmatpush.msra.mxu0 %v69
    %782 = vmatpush.msra.mxu0 %v67
    %783 = vmatpush.msra.mxu0 %v65
    %784 = vmatmul.f32.gmra.mxu0 %v764
    %v785 = vpop.f32.mrf.mxu0
    %v786 = vadd.f32 0.0, %v785
    %787 = vdwg.mxu0
    %788 = vmatpush.msra.mxu0 %v127
    %789 = vmatpush.msra.mxu0 %v125
    %790 = vmatpush.msra.mxu0 %v123
    %791 = vmatpush.msra.mxu0 %v121
    %792 = vmatpush.msra.mxu0 %v119
    %793 = vmatpush.msra.mxu0 %v117
    %794 = vmatpush.msra.mxu0 %v115
    %795 = vmatpush.msra.mxu0 %v113
    %796 = vmatpush.msra.mxu0 %v111
    %797 = vmatpush.msra.mxu0 %v109
    %798 = vmatpush.msra.mxu0 %v107
    %799 = vmatpush.msra.mxu0 %v105
    %800 = vmatpush.msra.mxu0 %v103
    %801 = vmatpush.msra.mxu0 %v101
    %802 = vmatpush.msra.mxu0 %v99
    %803 = vmatpush.msra.mxu0 %v97
    %804 = vmatmul.f32.gmra.mxu0 %v765
    %v805 = vpop.f32.mrf.mxu0
    %v806 = vadd.f32 %v786, %v805
    %807 = vdwg.mxu0
    %808 = vmatpush.msra.mxu0 %v96
    %809 = vmatpush.msra.mxu0 %v94
    %810 = vmatpush.msra.mxu0 %v92
    %811 = vmatpush.msra.mxu0 %v90
    %812 = vmatpush.msra.mxu0 %v88
    %813 = vmatpush.msra.mxu0 %v86
    %814 = vmatpush.msra.mxu0 %v84
    %815 = vmatpush.msra.mxu0 %v82
    %816 = vmatpush.msra.mxu0 %v80
    %817 = vmatpush.msra.mxu0 %v78
    %818 = vmatpush.msra.mxu0 %v76
    %819 = vmatpush.msra.mxu0 %v74
    %820 = vmatpush.msra.mxu0 %v72
    %821 = vmatpush.msra.mxu0 %v70
    %822 = vmatpush.msra.mxu0 %v68
    %823 = vmatpush.msra.mxu0 %v66
    %824 = vmatmul.f32.gmra.mxu0 %v764
    %v825 = vpop.f32.mrf.mxu0
    %v826 = vadd.f32 0.0, %v825
    %827 = vdwg.mxu0
    %828 = vmatpush.msra.mxu0 %v128
    %829 = vmatpush.msra.mxu0 %v126
    %830 = vmatpush.msra.mxu0 %v124
    %831 = vmatpush.msra.mxu0 %v122
    %832 = vmatpush.msra.mxu0 %v120
    %833 = vmatpush.msra.mxu0 %v118
    %834 = vmatpush.msra.mxu0 %v116
    %835 = vmatpush.msra.mxu0 %v114
    %836 = vmatpush.msra.mxu0 %v112
    %837 = vmatpush.msra.mxu0 %v110
    %838 = vmatpush.msra.mxu0 %v108
    %839 = vmatpush.msra.mxu0 %v106
    %840 = vmatpush.msra.mxu0 %v104
    %841 = vmatpush.msra.mxu0 %v102
    %842 = vmatpush.msra.mxu0 %v100
    %843 = vmatpush.msra.mxu0 %v98
    %844 = vmatmul.f32.gmra.mxu0 %v765
    %v845 = vpop.f32.mrf.mxu0
    %v846 = vadd.f32 %v826, %v845
    %847 = vdwg.mxu0
    %v848 = vadd.f32 %v806, %v297
    %v849 = vadd.f32 %v848, %v846
    %v850 = vxor.u32 %v849, 2147483648
    %v851 = vmul.f32 %v850, 1.442695
    %v852 = vpow.pop %v851
    %v853 = vadd.f32 %v852, 1.0
    %v854 = vrcp.pop %v853
    %v855 = vmul.f32 %v853, %v854
    %v856 = vsub.f32 1.0, %v855
    %v857 = vmul.f32 %v854, %v856
    %v858 = vadd.f32 %v854, %v857
    %vm859 = vweird.f32 %v853
    %vm860 = vweird.f32 %v854
    %vm861 = vmor %vm859, %vm860
    %v862 = vsel %vm861, %v854, %v858
    %v863 = vand.u32 2147483647, %v853
    %vm864 = vcmp.eq.f32.partialorder %v863, 8.507059e+37
    %v865 = vand.u32 %v853, 2147483648
    %v866 = vor.u32 1.1754944e-38, %v865
    %v867 = vsel %vm864, %v866, %v862
    %v868 = vmul.f32 1.0, %v867
    %v869 = vadd.f32 %v846, %v323
    %871 = vrot.lane.b32.xlu0 %v869, 64
    %v872 = vpop.permute.xlu0 %871
    %v874 = vmul.f32 %v868, %v872
    %876 = vrot.lane.b32.xlu0 %v874, 64
    %v877 = vpop.permute.xlu0 %876
    %v879 = vadd.f32 %v848, %v877
    %v880 = vtanh.pop %v879
    %v881 = vsub.f32 1.0, %v868
    %883 = vrot.lane.b32.xlu0 %v880, 96
    %v884 = vpop.permute.xlu0 %883
    %v886 = vmul.f32 %v881, %v884
    %v887 = vmul.f32 %v868, %v618
    %v888 = vadd.f32 %v886, %v887
    %890 = vrot.lane.b32.xlu0 %v888, 96
    %v891 = vpop.permute.xlu0 %890
    %893 = vst.msk [vmem:[#allocation3] sm:$0x3] %vm207, %v891
    %895 = vrot.lane.b32.xlu0 %v756, 96
    %v896 = vpop.permute.xlu0 %895
    %898 = vst.msk [vmem:[#allocation3 + $0x2] sm:$0x3] %vm207, %v896
    %v899 = vld [vmem:[#allocation3] sm:$0xf]
    %901 = vst [vmem:[#allocation1] ss:$4 sm:$0xff] %v899
    %v902 = vld.sshfl [vmem:[#allocation1] sm:$0xff pattern:$0x73625140]
    %v903 = vld.sshfl [vmem:[#allocation1 + $0x8] sm:$0xff pattern:$0x73625140]
    %906 = vmatpush.msra.mxu0 %v159
    %907 = vmatpush.msra.mxu0 %v157
    %908 = vmatpush.msra.mxu0 %v155
    %909 = vmatpush.msra.mxu0 %v153
    %910 = vmatpush.msra.mxu0 %v151
    %911 = vmatpush.msra.mxu0 %v149
    %912 = vmatpush.msra.mxu0 %v147
    %913 = vmatpush.msra.mxu0 %v145
    %914 = vmatpush.msra.mxu0 %v143
    %915 = vmatpush.msra.mxu0 %v141
    %916 = vmatpush.msra.mxu0 %v139
    %917 = vmatpush.msra.mxu0 %v137
    %918 = vmatpush.msra.mxu0 %v135
    %919 = vmatpush.msra.mxu0 %v133
    %920 = vmatpush.msra.mxu0 %v131
    %921 = vmatpush.msra.mxu0 %v129
    %922 = vmatmul.f32.gmra.mxu0 %v902
    %v923 = vpop.f32.mrf.mxu0
    %v924 = vadd.f32 0.0, %v923
    %925 = vdwg.mxu0
    %926 = vmatpush.msra.mxu0 %v191
    %927 = vmatpush.msra.mxu0 %v189
    %928 = vmatpush.msra.mxu0 %v187
    %929 = vmatpush.msra.mxu0 %v185
    %930 = vmatpush.msra.mxu0 %v183
    %931 = vmatpush.msra.mxu0 %v181
    %932 = vmatpush.msra.mxu0 %v179
    %933 = vmatpush.msra.mxu0 %v177
    %934 = vmatpush.msra.mxu0 %v175
    %935 = vmatpush.msra.mxu0 %v173
    %936 = vmatpush.msra.mxu0 %v171
    %937 = vmatpush.msra.mxu0 %v169
    %938 = vmatpush.msra.mxu0 %v167
    %939 = vmatpush.msra.mxu0 %v165
    %940 = vmatpush.msra.mxu0 %v163
    %941 = vmatpush.msra.mxu0 %v161
    %942 = vmatmul.f32.gmra.mxu0 %v903
    %v943 = vpop.f32.mrf.mxu0
    %v944 = vadd.f32 %v924, %v943
    %945 = vdwg.mxu0
    %946 = vmatpush.msra.mxu0 %v160
    %947 = vmatpush.msra.mxu0 %v158
    %948 = vmatpush.msra.mxu0 %v156
    %949 = vmatpush.msra.mxu0 %v154
    %950 = vmatpush.msra.mxu0 %v152
    %951 = vmatpush.msra.mxu0 %v150
    %952 = vmatpush.msra.mxu0 %v148
    %953 = vmatpush.msra.mxu0 %v146
    %954 = vmatpush.msra.mxu0 %v144
    %955 = vmatpush.msra.mxu0 %v142
    %956 = vmatpush.msra.mxu0 %v140
    %957 = vmatpush.msra.mxu0 %v138
    %958 = vmatpush.msra.mxu0 %v136
    %959 = vmatpush.msra.mxu0 %v134
    %960 = vmatpush.msra.mxu0 %v132
    %961 = vmatpush.msra.mxu0 %v130
    %962 = vmatmul.f32.gmra.mxu0 %v902
    %v963 = vpop.f32.mrf.mxu0
    %v964 = vadd.f32 0.0, %v963
    %965 = vdwg.mxu0
    %966 = vmatpush.msra.mxu0 %v192
    %967 = vmatpush.msra.mxu0 %v190
    %968 = vmatpush.msra.mxu0 %v188
    %969 = vmatpush.msra.mxu0 %v186
    %970 = vmatpush.msra.mxu0 %v184
    %971 = vmatpush.msra.mxu0 %v182
    %972 = vmatpush.msra.mxu0 %v180
    %973 = vmatpush.msra.mxu0 %v178
    %974 = vmatpush.msra.mxu0 %v176
    %975 = vmatpush.msra.mxu0 %v174
    %976 = vmatpush.msra.mxu0 %v172
    %977 = vmatpush.msra.mxu0 %v170
    %978 = vmatpush.msra.mxu0 %v168
    %979 = vmatpush.msra.mxu0 %v166
    %980 = vmatpush.msra.mxu0 %v164
    %981 = vmatpush.msra.mxu0 %v162
    %982 = vmatmul.f32.gmra.mxu0 %v903
    %v983 = vpop.f32.mrf.mxu0
    %v984 = vadd.f32 %v964, %v983
    %985 = vdwg.mxu0
    %v986 = vadd.f32 %v944, %v439
    %v987 = vadd.f32 %v986, %v984
    %v988 = vxor.u32 %v987, 2147483648
    %v989 = vmul.f32 %v988, 1.442695
    %v990 = vpow.pop %v989
    %v991 = vadd.f32 %v990, 1.0
    %v992 = vrcp.pop %v991
    %v993 = vmul.f32 %v991, %v992
    %v994 = vsub.f32 1.0, %v993
    %v995 = vmul.f32 %v992, %v994
    %v996 = vadd.f32 %v992, %v995
    %vm997 = vweird.f32 %v991
    %vm998 = vweird.f32 %v992
    %vm999 = vmor %vm997, %vm998
    %v1000 = vsel %vm999, %v992, %v996
    %v1001 = vand.u32 2147483647, %v991
    %vm1002 = vcmp.eq.f32.partialorder %v1001, 8.507059e+37
    %v1003 = vand.u32 %v991, 2147483648
    %v1004 = vor.u32 1.1754944e-38, %v1003
    %v1005 = vsel %vm1002, %v1004, %v1000
    %v1006 = vmul.f32 1.0, %v1005
    %v1007 = vadd.f32 %v984, %v465
    %1009 = vrot.lane.b32.xlu0 %v1007, 64
    %v1010 = vpop.permute.xlu0 %1009
    %v1012 = vmul.f32 %v1006, %v1010
    %1014 = vrot.lane.b32.xlu0 %v1012, 64
    %v1015 = vpop.permute.xlu0 %1014
    %v1017 = vadd.f32 %v986, %v1015
    %v1018 = vtanh.pop %v1017
    %v1019 = vsub.f32 1.0, %v1006
    %1021 = vrot.lane.b32.xlu0 %v1018, 96
    %v1022 = vpop.permute.xlu0 %1021
    %v1024 = vmul.f32 %v1019, %v1022
    %v1025 = vmul.f32 %v1006, %v756
    %v1026 = vadd.f32 %v1024, %v1025
    %s1027 = scalar_lea.vmem %s0, 6
    %v1028 = vld [vmem:[%s1027] sm:$0x3]
    %1029 = vst.msk [vmem:[#allocation2] sm:$0x3] %vm205, %v1028
    %1030 = vst.msk [vmem:[#allocation2 + $0x2] sm:$0x3] %vm207, %v891
    %v1031 = vld [vmem:[#allocation2] sm:$0xf]
    %1033 = vst [vmem:[#allocation1] ss:$4 sm:$0xff] %v1031
    %v1034 = vld.sshfl [vmem:[#allocation1] sm:$0xff pattern:$0x73625140]
    %v1035 = vld.sshfl [vmem:[#allocation1 + $0x8] sm:$0xff pattern:$0x73625140]
    %1038 = vmatpush.msra.mxu0 %v95
    %1039 = vmatpush.msra.mxu0 %v93
    %1040 = vmatpush.msra.mxu0 %v91
    %1041 = vmatpush.msra.mxu0 %v89
    %1042 = vmatpush.msra.mxu0 %v87
    %1043 = vmatpush.msra.mxu0 %v85
    %1044 = vmatpush.msra.mxu0 %v83
    %1045 = vmatpush.msra.mxu0 %v81
    %1046 = vmatpush.msra.mxu0 %v79
    %1047 = vmatpush.msra.mxu0 %v77
    %1048 = vmatpush.msra.mxu0 %v75
    %1049 = vmatpush.msra.mxu0 %v73
    %1050 = vmatpush.msra.mxu0 %v71
    %1051 = vmatpush.msra.mxu0 %v69
    %1052 = vmatpush.msra.mxu0 %v67
    %1053 = vmatpush.msra.mxu0 %v65
    %1054 = vmatmul.f32.gmra.mxu0 %v1034
    %v1055 = vpop.f32.mrf.mxu0
    %v1056 = vadd.f32 0.0, %v1055
    %1057 = vdwg.mxu0
    %1058 = vmatpush.msra.mxu0 %v127
    %1059 = vmatpush.msra.mxu0 %v125
    %1060 = vmatpush.msra.mxu0 %v123
    %1061 = vmatpush.msra.mxu0 %v121
    %1062 = vmatpush.msra.mxu0 %v119
    %1063 = vmatpush.msra.mxu0 %v117
    %1064 = vmatpush.msra.mxu0 %v115
    %1065 = vmatpush.msra.mxu0 %v113
    %1066 = vmatpush.msra.mxu0 %v111
    %1067 = vmatpush.msra.mxu0 %v109
    %1068 = vmatpush.msra.mxu0 %v107
    %1069 = vmatpush.msra.mxu0 %v105
    %1070 = vmatpush.msra.mxu0 %v103
    %1071 = vmatpush.msra.mxu0 %v101
    %1072 = vmatpush.msra.mxu0 %v99
    %1073 = vmatpush.msra.mxu0 %v97
    %1074 = vmatmul.f32.gmra.mxu0 %v1035
    %v1075 = vpop.f32.mrf.mxu0
    %v1076 = vadd.f32 %v1056, %v1075
    %1077 = vdwg.mxu0
    %1078 = vmatpush.msra.mxu0 %v96
    %1079 = vmatpush.msra.mxu0 %v94
    %1080 = vmatpush.msra.mxu0 %v92
    %1081 = vmatpush.msra.mxu0 %v90
    %1082 = vmatpush.msra.mxu0 %v88
    %1083 = vmatpush.msra.mxu0 %v86
    %1084 = vmatpush.msra.mxu0 %v84
    %1085 = vmatpush.msra.mxu0 %v82
    %1086 = vmatpush.msra.mxu0 %v80
    %1087 = vmatpush.msra.mxu0 %v78
    %1088 = vmatpush.msra.mxu0 %v76
    %1089 = vmatpush.msra.mxu0 %v74
    %1090 = vmatpush.msra.mxu0 %v72
    %1091 = vmatpush.msra.mxu0 %v70
    %1092 = vmatpush.msra.mxu0 %v68
    %1093 = vmatpush.msra.mxu0 %v66
    %1094 = vmatmul.f32.gmra.mxu0 %v1034
    %v1095 = vpop.f32.mrf.mxu0
    %v1096 = vadd.f32 0.0, %v1095
    %1097 = vdwg.mxu0
    %1098 = vmatpush.msra.mxu0 %v128
    %1099 = vmatpush.msra.mxu0 %v126
    %1100 = vmatpush.msra.mxu0 %v124
    %1101 = vmatpush.msra.mxu0 %v122
    %1102 = vmatpush.msra.mxu0 %v120
    %1103 = vmatpush.msra.mxu0 %v118
    %1104 = vmatpush.msra.mxu0 %v116
    %1105 = vmatpush.msra.mxu0 %v114
    %1106 = vmatpush.msra.mxu0 %v112
    %1107 = vmatpush.msra.mxu0 %v110
    %1108 = vmatpush.msra.mxu0 %v108
    %1109 = vmatpush.msra.mxu0 %v106
    %1110 = vmatpush.msra.mxu0 %v104
    %1111 = vmatpush.msra.mxu0 %v102
    %1112 = vmatpush.msra.mxu0 %v100
    %1113 = vmatpush.msra.mxu0 %v98
    %1114 = vmatmul.f32.gmra.mxu0 %v1035
    %v1115 = vpop.f32.mrf.mxu0
    %v1116 = vadd.f32 %v1096, %v1115
    %1117 = vdwg.mxu0
    %v1118 = vadd.f32 %v1076, %v297
    %v1119 = vadd.f32 %v1118, %v1116
    %v1120 = vxor.u32 %v1119, 2147483648
    %v1121 = vmul.f32 %v1120, 1.442695
    %v1122 = vpow.pop %v1121
    %v1123 = vadd.f32 %v1122, 1.0
    %v1124 = vrcp.pop %v1123
    %v1125 = vmul.f32 %v1123, %v1124
    %v1126 = vsub.f32 1.0, %v1125
    %v1127 = vmul.f32 %v1124, %v1126
    %v1128 = vadd.f32 %v1124, %v1127
    %vm1129 = vweird.f32 %v1123
    %vm1130 = vweird.f32 %v1124
    %vm1131 = vmor %vm1129, %vm1130
    %v1132 = vsel %vm1131, %v1124, %v1128
    %v1133 = vand.u32 2147483647, %v1123
    %vm1134 = vcmp.eq.f32.partialorder %v1133, 8.507059e+37
    %v1135 = vand.u32 %v1123, 2147483648
    %v1136 = vor.u32 1.1754944e-38, %v1135
    %v1137 = vsel %vm1134, %v1136, %v1132
    %v1138 = vmul.f32 1.0, %v1137
    %v1139 = vadd.f32 %v1116, %v323
    %1141 = vrot.lane.b32.xlu0 %v1139, 64
    %v1142 = vpop.permute.xlu0 %1141
    %v1144 = vmul.f32 %v1138, %v1142
    %1146 = vrot.lane.b32.xlu0 %v1144, 64
    %v1147 = vpop.permute.xlu0 %1146
    %v1149 = vadd.f32 %v1118, %v1147
    %v1150 = vtanh.pop %v1149
    %v1151 = vsub.f32 1.0, %v1138
    %1153 = vrot.lane.b32.xlu0 %v1150, 96
    %v1154 = vpop.permute.xlu0 %1153
    %v1156 = vmul.f32 %v1151, %v1154
    %v1157 = vmul.f32 %v1138, %v888
    %v1158 = vadd.f32 %v1156, %v1157
    %1160 = vrot.lane.b32.xlu0 %v1158, 96
    %v1161 = vpop.permute.xlu0 %1160
    %1163 = vst.msk [vmem:[#allocation3] sm:$0x3] %vm207, %v1161
    %1165 = vrot.lane.b32.xlu0 %v1026, 96
    %v1166 = vpop.permute.xlu0 %1165
    %1168 = vst.msk [vmem:[#allocation3 + $0x2] sm:$0x3] %vm207, %v1166
    %v1169 = vld [vmem:[#allocation3] sm:$0xf]
    %1171 = vst [vmem:[#allocation1] ss:$4 sm:$0xff] %v1169
    %v1172 = vld.sshfl [vmem:[#allocation1] sm:$0xff pattern:$0x73625140]
    %v1173 = vld.sshfl [vmem:[#allocation1 + $0x8] sm:$0xff pattern:$0x73625140]
    %1176 = vmatpush.msra.mxu0 %v159
    %1177 = vmatpush.msra.mxu0 %v157
    %1178 = vmatpush.msra.mxu0 %v155
    %1179 = vmatpush.msra.mxu0 %v153
    %1180 = vmatpush.msra.mxu0 %v151
    %1181 = vmatpush.msra.mxu0 %v149
    %1182 = vmatpush.msra.mxu0 %v147
    %1183 = vmatpush.msra.mxu0 %v145
    %1184 = vmatpush.msra.mxu0 %v143
    %1185 = vmatpush.msra.mxu0 %v141
    %1186 = vmatpush.msra.mxu0 %v139
    %1187 = vmatpush.msra.mxu0 %v137
    %1188 = vmatpush.msra.mxu0 %v135
    %1189 = vmatpush.msra.mxu0 %v133
    %1190 = vmatpush.msra.mxu0 %v131
    %1191 = vmatpush.msra.mxu0 %v129
    %1192 = vmatmul.f32.gmra.mxu0 %v1172
    %v1193 = vpop.f32.mrf.mxu0
    %v1194 = vadd.f32 0.0, %v1193
    %1195 = vdwg.mxu0
    %1196 = vmatpush.msra.mxu0 %v191
    %1197 = vmatpush.msra.mxu0 %v189
    %1198 = vmatpush.msra.mxu0 %v187
    %1199 = vmatpush.msra.mxu0 %v185
    %1200 = vmatpush.msra.mxu0 %v183
    %1201 = vmatpush.msra.mxu0 %v181
    %1202 = vmatpush.msra.mxu0 %v179
    %1203 = vmatpush.msra.mxu0 %v177
    %1204 = vmatpush.msra.mxu0 %v175
    %1205 = vmatpush.msra.mxu0 %v173
    %1206 = vmatpush.msra.mxu0 %v171
    %1207 = vmatpush.msra.mxu0 %v169
    %1208 = vmatpush.msra.mxu0 %v167
    %1209 = vmatpush.msra.mxu0 %v165
    %1210 = vmatpush.msra.mxu0 %v163
    %1211 = vmatpush.msra.mxu0 %v161
    %1212 = vmatmul.f32.gmra.mxu0 %v1173
    %v1213 = vpop.f32.mrf.mxu0
    %v1214 = vadd.f32 %v1194, %v1213
    %1215 = vdwg.mxu0
    %1216 = vmatpush.msra.mxu0 %v160
    %1217 = vmatpush.msra.mxu0 %v158
    %1218 = vmatpush.msra.mxu0 %v156
    %1219 = vmatpush.msra.mxu0 %v154
    %1220 = vmatpush.msra.mxu0 %v152
    %1221 = vmatpush.msra.mxu0 %v150
    %1222 = vmatpush.msra.mxu0 %v148
    %1223 = vmatpush.msra.mxu0 %v146
    %1224 = vmatpush.msra.mxu0 %v144
    %1225 = vmatpush.msra.mxu0 %v142
    %1226 = vmatpush.msra.mxu0 %v140
    %1227 = vmatpush.msra.mxu0 %v138
    %1228 = vmatpush.msra.mxu0 %v136
    %1229 = vmatpush.msra.mxu0 %v134
    %1230 = vmatpush.msra.mxu0 %v132
    %1231 = vmatpush.msra.mxu0 %v130
    %1232 = vmatmul.f32.gmra.mxu0 %v1172
    %v1233 = vpop.f32.mrf.mxu0
    %v1234 = vadd.f32 0.0, %v1233
    %1235 = vdwg.mxu0
    %1236 = vmatpush.msra.mxu0 %v192
    %1237 = vmatpush.msra.mxu0 %v190
    %1238 = vmatpush.msra.mxu0 %v188
    %1239 = vmatpush.msra.mxu0 %v186
    %1240 = vmatpush.msra.mxu0 %v184
    %1241 = vmatpush.msra.mxu0 %v182
    %1242 = vmatpush.msra.mxu0 %v180
    %1243 = vmatpush.msra.mxu0 %v178
    %1244 = vmatpush.msra.mxu0 %v176
    %1245 = vmatpush.msra.mxu0 %v174
    %1246 = vmatpush.msra.mxu0 %v172
    %1247 = vmatpush.msra.mxu0 %v170
    %1248 = vmatpush.msra.mxu0 %v168
    %1249 = vmatpush.msra.mxu0 %v166
    %1250 = vmatpush.msra.mxu0 %v164
    %1251 = vmatpush.msra.mxu0 %v162
    %1252 = vmatmul.f32.gmra.mxu0 %v1173
    %v1253 = vpop.f32.mrf.mxu0
    %v1254 = vadd.f32 %v1234, %v1253
    %1255 = vdwg.mxu0
    %v1256 = vadd.f32 %v1214, %v439
    %v1257 = vadd.f32 %v1256, %v1254
    %v1258 = vxor.u32 %v1257, 2147483648
    %v1259 = vmul.f32 %v1258, 1.442695
    %v1260 = vpow.pop %v1259
    %v1261 = vadd.f32 %v1260, 1.0
    %v1262 = vrcp.pop %v1261
    %v1263 = vmul.f32 %v1261, %v1262
    %v1264 = vsub.f32 1.0, %v1263
    %v1265 = vmul.f32 %v1262, %v1264
    %v1266 = vadd.f32 %v1262, %v1265
    %vm1267 = vweird.f32 %v1261
    %vm1268 = vweird.f32 %v1262
    %vm1269 = vmor %vm1267, %vm1268
    %v1270 = vsel %vm1269, %v1262, %v1266
    %v1271 = vand.u32 2147483647, %v1261
    %vm1272 = vcmp.eq.f32.partialorder %v1271, 8.507059e+37
    %v1273 = vand.u32 %v1261, 2147483648
    %v1274 = vor.u32 1.1754944e-38, %v1273
    %v1275 = vsel %vm1272, %v1274, %v1270
    %v1276 = vmul.f32 1.0, %v1275
    %v1277 = vadd.f32 %v1254, %v465
    %1279 = vrot.lane.b32.xlu0 %v1277, 64
    %v1280 = vpop.permute.xlu0 %1279
    %v1282 = vmul.f32 %v1276, %v1280
    %1284 = vrot.lane.b32.xlu0 %v1282, 64
    %v1285 = vpop.permute.xlu0 %1284
    %v1287 = vadd.f32 %v1256, %v1285
    %v1288 = vtanh.pop %v1287
    %v1289 = vsub.f32 1.0, %v1276
    %1291 = vrot.lane.b32.xlu0 %v1288, 96
    %v1292 = vpop.permute.xlu0 %1291
    %v1294 = vmul.f32 %v1289, %v1292
    %v1295 = vmul.f32 %v1276, %v1026
    %v1296 = vadd.f32 %v1294, %v1295
    %s1297 = scalar_lea.vmem %s0, 8
    %v1298 = vld [vmem:[%s1297] sm:$0x3]
    %1299 = vst.msk [vmem:[#allocation2] sm:$0x3] %vm205, %v1298
    %1300 = vst.msk [vmem:[#allocation2 + $0x2] sm:$0x3] %vm207, %v1161
    %v1301 = vld [vmem:[#allocation2] sm:$0xf]
    %1303 = vst [vmem:[#allocation1] ss:$4 sm:$0xff] %v1301
    %v1304 = vld.sshfl [vmem:[#allocation1] sm:$0xff pattern:$0x73625140]
    %v1305 = vld.sshfl [vmem:[#allocation1 + $0x8] sm:$0xff pattern:$0x73625140]
    %1308 = vmatpush.msra.mxu0 %v95
    %1309 = vmatpush.msra.mxu0 %v93
    %1310 = vmatpush.msra.mxu0 %v91
    %1311 = vmatpush.msra.mxu0 %v89
    %1312 = vmatpush.msra.mxu0 %v87
    %1313 = vmatpush.msra.mxu0 %v85
    %1314 = vmatpush.msra.mxu0 %v83
    %1315 = vmatpush.msra.mxu0 %v81
    %1316 = vmatpush.msra.mxu0 %v79
    %1317 = vmatpush.msra.mxu0 %v77
    %1318 = vmatpush.msra.mxu0 %v75
    %1319 = vmatpush.msra.mxu0 %v73
    %1320 = vmatpush.msra.mxu0 %v71
    %1321 = vmatpush.msra.mxu0 %v69
    %1322 = vmatpush.msra.mxu0 %v67
    %1323 = vmatpush.msra.mxu0 %v65
    %1324 = vmatmul.f32.gmra.mxu0 %v1304
    %v1325 = vpop.f32.mrf.mxu0
    %v1326 = vadd.f32 0.0, %v1325
    %1327 = vdwg.mxu0
    %1328 = vmatpush.msra.mxu0 %v127
    %1329 = vmatpush.msra.mxu0 %v125
    %1330 = vmatpush.msra.mxu0 %v123
    %1331 = vmatpush.msra.mxu0 %v121
    %1332 = vmatpush.msra.mxu0 %v119
    %1333 = vmatpush.msra.mxu0 %v117
    %1334 = vmatpush.msra.mxu0 %v115
    %1335 = vmatpush.msra.mxu0 %v113
    %1336 = vmatpush.msra.mxu0 %v111
    %1337 = vmatpush.msra.mxu0 %v109
    %1338 = vmatpush.msra.mxu0 %v107
    %1339 = vmatpush.msra.mxu0 %v105
    %1340 = vmatpush.msra.mxu0 %v103
    %1341 = vmatpush.msra.mxu0 %v101
    %1342 = vmatpush.msra.mxu0 %v99
    %1343 = vmatpush.msra.mxu0 %v97
    %1344 = vmatmul.f32.gmra.mxu0 %v1305
    %v1345 = vpop.f32.mrf.mxu0
    %v1346 = vadd.f32 %v1326, %v1345
    %1347 = vdwg.mxu0
    %1348 = vmatpush.msra.mxu0 %v96
    %1349 = vmatpush.msra.mxu0 %v94
    %1350 = vmatpush.msra.mxu0 %v92
    %1351 = vmatpush.msra.mxu0 %v90
    %1352 = vmatpush.msra.mxu0 %v88
    %1353 = vmatpush.msra.mxu0 %v86
    %1354 = vmatpush.msra.mxu0 %v84
    %1355 = vmatpush.msra.mxu0 %v82
    %1356 = vmatpush.msra.mxu0 %v80
    %1357 = vmatpush.msra.mxu0 %v78
    %1358 = vmatpush.msra.mxu0 %v76
    %1359 = vmatpush.msra.mxu0 %v74
    %1360 = vmatpush.msra.mxu0 %v72
    %1361 = vmatpush.msra.mxu0 %v70
    %1362 = vmatpush.msra.mxu0 %v68
    %1363 = vmatpush.msra.mxu0 %v66
    %1364 = vmatmul.f32.gmra.mxu0 %v1304
    %v1365 = vpop.f32.mrf.mxu0
    %v1366 = vadd.f32 0.0, %v1365
    %1367 = vdwg.mxu0
    %1368 = vmatpush.msra.mxu0 %v128
    %1369 = vmatpush.msra.mxu0 %v126
    %1370 = vmatpush.msra.mxu0 %v124
    %1371 = vmatpush.msra.mxu0 %v122
    %1372 = vmatpush.msra.mxu0 %v120
    %1373 = vmatpush.msra.mxu0 %v118
    %1374 = vmatpush.msra.mxu0 %v116
    %1375 = vmatpush.msra.mxu0 %v114
    %1376 = vmatpush.msra.mxu0 %v112
    %1377 = vmatpush.msra.mxu0 %v110
    %1378 = vmatpush.msra.mxu0 %v108
    %1379 = vmatpush.msra.mxu0 %v106
    %1380 = vmatpush.msra.mxu0 %v104
    %1381 = vmatpush.msra.mxu0 %v102
    %1382 = vmatpush.msra.mxu0 %v100
    %1383 = vmatpush.msra.mxu0 %v98
    %1384 = vmatmul.f32.gmra.mxu0 %v1305
    %v1385 = vpop.f32.mrf.mxu0
    %v1386 = vadd.f32 %v1366, %v1385
    %1387 = vdwg.mxu0
    %v1388 = vadd.f32 %v1346, %v297
    %v1389 = vadd.f32 %v1388, %v1386
    %v1390 = vxor.u32 %v1389, 2147483648
    %v1391 = vmul.f32 %v1390, 1.442695
    %v1392 = vpow.pop %v1391
    %v1393 = vadd.f32 %v1392, 1.0
    %v1394 = vrcp.pop %v1393
    %v1395 = vmul.f32 %v1393, %v1394
    %v1396 = vsub.f32 1.0, %v1395
    %v1397 = vmul.f32 %v1394, %v1396
    %v1398 = vadd.f32 %v1394, %v1397
    %vm1399 = vweird.f32 %v1393
    %vm1400 = vweird.f32 %v1394
    %vm1401 = vmor %vm1399, %vm1400
    %v1402 = vsel %vm1401, %v1394, %v1398
    %v1403 = vand.u32 2147483647, %v1393
    %vm1404 = vcmp.eq.f32.partialorder %v1403, 8.507059e+37
    %v1405 = vand.u32 %v1393, 2147483648
    %v1406 = vor.u32 1.1754944e-38, %v1405
    %v1407 = vsel %vm1404, %v1406, %v1402
    %v1408 = vmul.f32 1.0, %v1407
    %v1409 = vadd.f32 %v1386, %v323
    %1411 = vrot.lane.b32.xlu0 %v1409, 64
    %v1412 = vpop.permute.xlu0 %1411
    %v1414 = vmul.f32 %v1408, %v1412
    %1416 = vrot.lane.b32.xlu0 %v1414, 64
    %v1417 = vpop.permute.xlu0 %1416
    %v1419 = vadd.f32 %v1388, %v1417
    %v1420 = vtanh.pop %v1419
    %v1421 = vsub.f32 1.0, %v1408
    %1423 = vrot.lane.b32.xlu0 %v1420, 96
    %v1424 = vpop.permute.xlu0 %1423
    %v1426 = vmul.f32 %v1421, %v1424
    %v1427 = vmul.f32 %v1408, %v1158
    %v1428 = vadd.f32 %v1426, %v1427
    %1430 = vrot.lane.b32.xlu0 %v1428, 96
    %v1431 = vpop.permute.xlu0 %1430
    %1433 = vst.msk [vmem:[#allocation3] sm:$0x3] %vm207, %v1431
    %1435 = vrot.lane.b32.xlu0 %v1296, 96
    %v1436 = vpop.permute.xlu0 %1435
    %1438 = vst.msk [vmem:[#allocation3 + $0x2] sm:$0x3] %vm207, %v1436
    %v1439 = vld [vmem:[#allocation3] sm:$0xf]
    %1441 = vst [vmem:[#allocation1] ss:$4 sm:$0xff] %v1439
    %v1442 = vld.sshfl [vmem:[#allocation1] sm:$0xff pattern:$0x73625140]
    %v1443 = vld.sshfl [vmem:[#allocation1 + $0x8] sm:$0xff pattern:$0x73625140]
    %1446 = vmatpush.msra.mxu0 %v159
    %1447 = vmatpush.msra.mxu0 %v157
    %1448 = vmatpush.msra.mxu0 %v155
    %1449 = vmatpush.msra.mxu0 %v153
    %1450 = vmatpush.msra.mxu0 %v151
    %1451 = vmatpush.msra.mxu0 %v149
    %1452 = vmatpush.msra.mxu0 %v147
    %1453 = vmatpush.msra.mxu0 %v145
    %1454 = vmatpush.msra.mxu0 %v143
    %1455 = vmatpush.msra.mxu0 %v141
    %1456 = vmatpush.msra.mxu0 %v139
    %1457 = vmatpush.msra.mxu0 %v137
    %1458 = vmatpush.msra.mxu0 %v135
    %1459 = vmatpush.msra.mxu0 %v133
    %1460 = vmatpush.msra.mxu0 %v131
    %1461 = vmatpush.msra.mxu0 %v129
    %1462 = vmatmul.f32.gmra.mxu0 %v1442
    %v1463 = vpop.f32.mrf.mxu0
    %v1464 = vadd.f32 0.0, %v1463
    %1465 = vdwg.mxu0
    %1466 = vmatpush.msra.mxu0 %v191
    %1467 = vmatpush.msra.mxu0 %v189
    %1468 = vmatpush.msra.mxu0 %v187
    %1469 = vmatpush.msra.mxu0 %v185
    %1470 = vmatpush.msra.mxu0 %v183
    %1471 = vmatpush.msra.mxu0 %v181
    %1472 = vmatpush.msra.mxu0 %v179
    %1473 = vmatpush.msra.mxu0 %v177
    %1474 = vmatpush.msra.mxu0 %v175
    %1475 = vmatpush.msra.mxu0 %v173
    %1476 = vmatpush.msra.mxu0 %v171
    %1477 = vmatpush.msra.mxu0 %v169
    %1478 = vmatpush.msra.mxu0 %v167
    %1479 = vmatpush.msra.mxu0 %v165
    %1480 = vmatpush.msra.mxu0 %v163
    %1481 = vmatpush.msra.mxu0 %v161
    %1482 = vmatmul.f32.gmra.mxu0 %v1443
    %v1483 = vpop.f32.mrf.mxu0
    %v1484 = vadd.f32 %v1464, %v1483
    %1485 = vdwg.mxu0
    %1486 = vmatpush.msra.mxu0 %v160
    %1487 = vmatpush.msra.mxu0 %v158
    %1488 = vmatpush.msra.mxu0 %v156
    %1489 = vmatpush.msra.mxu0 %v154
    %1490 = vmatpush.msra.mxu0 %v152
    %1491 = vmatpush.msra.mxu0 %v150
    %1492 = vmatpush.msra.mxu0 %v148
    %1493 = vmatpush.msra.mxu0 %v146
    %1494 = vmatpush.msra.mxu0 %v144
    %1495 = vmatpush.msra.mxu0 %v142
    %1496 = vmatpush.msra.mxu0 %v140
    %1497 = vmatpush.msra.mxu0 %v138
    %1498 = vmatpush.msra.mxu0 %v136
    %1499 = vmatpush.msra.mxu0 %v134
    %1500 = vmatpush.msra.mxu0 %v132
    %1501 = vmatpush.msra.mxu0 %v130
    %1502 = vmatmul.f32.gmra.mxu0 %v1442
    %v1503 = vpop.f32.mrf.mxu0
    %v1504 = vadd.f32 0.0, %v1503
    %1505 = vdwg.mxu0
    %1506 = vmatpush.msra.mxu0 %v192
    %1507 = vmatpush.msra.mxu0 %v190
    %1508 = vmatpush.msra.mxu0 %v188
    %1509 = vmatpush.msra.mxu0 %v186
    %1510 = vmatpush.msra.mxu0 %v184
    %1511 = vmatpush.msra.mxu0 %v182
    %1512 = vmatpush.msra.mxu0 %v180
    %1513 = vmatpush.msra.mxu0 %v178
    %1514 = vmatpush.msra.mxu0 %v176
    %1515 = vmatpush.msra.mxu0 %v174
    %1516 = vmatpush.msra.mxu0 %v172
    %1517 = vmatpush.msra.mxu0 %v170
    %1518 = vmatpush.msra.mxu0 %v168
    %1519 = vmatpush.msra.mxu0 %v166
    %1520 = vmatpush.msra.mxu0 %v164
    %1521 = vmatpush.msra.mxu0 %v162
    %1522 = vmatmul.f32.gmra.mxu0 %v1443
    %v1523 = vpop.f32.mrf.mxu0
    %v1524 = vadd.f32 %v1504, %v1523
    %1525 = vdwg.mxu0
    %v1526 = vadd.f32 %v1484, %v439
    %v1527 = vadd.f32 %v1526, %v1524
    %v1528 = vxor.u32 %v1527, 2147483648
    %v1529 = vmul.f32 %v1528, 1.442695
    %v1530 = vpow.pop %v1529
    %v1531 = vadd.f32 %v1530, 1.0
    %v1532 = vrcp.pop %v1531
    %v1533 = vmul.f32 %v1531, %v1532
    %v1534 = vsub.f32 1.0, %v1533
    %v1535 = vmul.f32 %v1532, %v1534
    %v1536 = vadd.f32 %v1532, %v1535
    %vm1537 = vweird.f32 %v1531
    %vm1538 = vweird.f32 %v1532
    %vm1539 = vmor %vm1537, %vm1538
    %v1540 = vsel %vm1539, %v1532, %v1536
    %v1541 = vand.u32 2147483647, %v1531
    %vm1542 = vcmp.eq.f32.partialorder %v1541, 8.507059e+37
    %v1543 = vand.u32 %v1531, 2147483648
    %v1544 = vor.u32 1.1754944e-38, %v1543
    %v1545 = vsel %vm1542, %v1544, %v1540
    %v1546 = vmul.f32 1.0, %v1545
    %v1547 = vadd.f32 %v1524, %v465
    %1549 = vrot.lane.b32.xlu0 %v1547, 64
    %v1550 = vpop.permute.xlu0 %1549
    %v1552 = vmul.f32 %v1546, %v1550
    %1554 = vrot.lane.b32.xlu0 %v1552, 64
    %v1555 = vpop.permute.xlu0 %1554
    %v1557 = vadd.f32 %v1526, %v1555
    %v1558 = vtanh.pop %v1557
    %v1559 = vsub.f32 1.0, %v1546
    %1561 = vrot.lane.b32.xlu0 %v1558, 96
    %v1562 = vpop.permute.xlu0 %1561
    %v1564 = vmul.f32 %v1559, %v1562
    %v1565 = vmul.f32 %v1546, %v1296
    %v1566 = vadd.f32 %v1564, %v1565
    %s1567 = scalar_lea.vmem %s0, 10
    %v1568 = vld [vmem:[%s1567] sm:$0x3]
    %1569 = vst.msk [vmem:[#allocation2] sm:$0x3] %vm205, %v1568
    %1570 = vst.msk [vmem:[#allocation2 + $0x2] sm:$0x3] %vm207, %v1431
    %v1571 = vld [vmem:[#allocation2] sm:$0xf]
    %1573 = vst [vmem:[#allocation1] ss:$4 sm:$0xff] %v1571
    %v1574 = vld.sshfl [vmem:[#allocation1] sm:$0xff pattern:$0x73625140]
    %v1575 = vld.sshfl [vmem:[#allocation1 + $0x8] sm:$0xff pattern:$0x73625140]
    %1578 = vmatpush.msra.mxu0 %v95
    %1579 = vmatpush.msra.mxu0 %v93
    %1580 = vmatpush.msra.mxu0 %v91
    %1581 = vmatpush.msra.mxu0 %v89
    %1582 = vmatpush.msra.mxu0 %v87
    %1583 = vmatpush.msra.mxu0 %v85
    %1584 = vmatpush.msra.mxu0 %v83
    %1585 = vmatpush.msra.mxu0 %v81
    %1586 = vmatpush.msra.mxu0 %v79
    %1587 = vmatpush.msra.mxu0 %v77
    %1588 = vmatpush.msra.mxu0 %v75
    %1589 = vmatpush.msra.mxu0 %v73
    %1590 = vmatpush.msra.mxu0 %v71
    %1591 = vmatpush.msra.mxu0 %v69
    %1592 = vmatpush.msra.mxu0 %v67
    %1593 = vmatpush.msra.mxu0 %v65
    %1594 = vmatmul.f32.gmra.mxu0 %v1574
    %v1595 = vpop.f32.mrf.mxu0
    %v1596 = vadd.f32 0.0, %v1595
    %1597 = vdwg.mxu0
    %1598 = vmatpush.msra.mxu0 %v127
    %1599 = vmatpush.msra.mxu0 %v125
    %1600 = vmatpush.msra.mxu0 %v123
    %1601 = vmatpush.msra.mxu0 %v121
    %1602 = vmatpush.msra.mxu0 %v119
    %1603 = vmatpush.msra.mxu0 %v117
    %1604 = vmatpush.msra.mxu0 %v115
    %1605 = vmatpush.msra.mxu0 %v113
    %1606 = vmatpush.msra.mxu0 %v111
    %1607 = vmatpush.msra.mxu0 %v109
    %1608 = vmatpush.msra.mxu0 %v107
    %1609 = vmatpush.msra.mxu0 %v105
    %1610 = vmatpush.msra.mxu0 %v103
    %1611 = vmatpush.msra.mxu0 %v101
    %1612 = vmatpush.msra.mxu0 %v99
    %1613 = vmatpush.msra.mxu0 %v97
    %1614 = vmatmul.f32.gmra.mxu0 %v1575
    %v1615 = vpop.f32.mrf.mxu0
    %v1616 = vadd.f32 %v1596, %v1615
    %1617 = vdwg.mxu0
    %1618 = vmatpush.msra.mxu0 %v96
    %1619 = vmatpush.msra.mxu0 %v94
    %1620 = vmatpush.msra.mxu0 %v92
    %1621 = vmatpush.msra.mxu0 %v90
    %1622 = vmatpush.msra.mxu0 %v88
    %1623 = vmatpush.msra.mxu0 %v86
    %1624 = vmatpush.msra.mxu0 %v84
    %1625 = vmatpush.msra.mxu0 %v82
    %1626 = vmatpush.msra.mxu0 %v80
    %1627 = vmatpush.msra.mxu0 %v78
    %1628 = vmatpush.msra.mxu0 %v76
    %1629 = vmatpush.msra.mxu0 %v74
    %1630 = vmatpush.msra.mxu0 %v72
    %1631 = vmatpush.msra.mxu0 %v70
    %1632 = vmatpush.msra.mxu0 %v68
    %1633 = vmatpush.msra.mxu0 %v66
    %1634 = vmatmul.f32.gmra.mxu0 %v1574
    %v1635 = vpop.f32.mrf.mxu0
    %v1636 = vadd.f32 0.0, %v1635
    %1637 = vdwg.mxu0
    %1638 = vmatpush.msra.mxu0 %v128
    %1639 = vmatpush.msra.mxu0 %v126
    %1640 = vmatpush.msra.mxu0 %v124
    %1641 = vmatpush.msra.mxu0 %v122
    %1642 = vmatpush.msra.mxu0 %v120
    %1643 = vmatpush.msra.mxu0 %v118
    %1644 = vmatpush.msra.mxu0 %v116
    %1645 = vmatpush.msra.mxu0 %v114
    %1646 = vmatpush.msra.mxu0 %v112
    %1647 = vmatpush.msra.mxu0 %v110
    %1648 = vmatpush.msra.mxu0 %v108
    %1649 = vmatpush.msra.mxu0 %v106
    %1650 = vmatpush.msra.mxu0 %v104
    %1651 = vmatpush.msra.mxu0 %v102
    %1652 = vmatpush.msra.mxu0 %v100
    %1653 = vmatpush.msra.mxu0 %v98
    %1654 = vmatmul.f32.gmra.mxu0 %v1575
    %v1655 = vpop.f32.mrf.mxu0
    %v1656 = vadd.f32 %v1636, %v1655
    %1657 = vdwg.mxu0
    %v1658 = vadd.f32 %v1616, %v297
    %v1659 = vadd.f32 %v1658, %v1656
    %v1660 = vxor.u32 %v1659, 2147483648
    %v1661 = vmul.f32 %v1660, 1.442695
    %v1662 = vpow.pop %v1661
    %v1663 = vadd.f32 %v1662, 1.0
    %v1664 = vrcp.pop %v1663
    %v1665 = vmul.f32 %v1663, %v1664
    %v1666 = vsub.f32 1.0, %v1665
    %v1667 = vmul.f32 %v1664, %v1666
    %v1668 = vadd.f32 %v1664, %v1667
    %vm1669 = vweird.f32 %v1663
    %vm1670 = vweird.f32 %v1664
    %vm1671 = vmor %vm1669, %vm1670
    %v1672 = vsel %vm1671, %v1664, %v1668
    %v1673 = vand.u32 2147483647, %v1663
    %vm1674 = vcmp.eq.f32.partialorder %v1673, 8.507059e+37
    %v1675 = vand.u32 %v1663, 2147483648
    %v1676 = vor.u32 1.1754944e-38, %v1675
    %v1677 = vsel %vm1674, %v1676, %v1672
    %v1678 = vmul.f32 1.0, %v1677
    %v1679 = vadd.f32 %v1656, %v323
    %1681 = vrot.lane.b32.xlu0 %v1679, 64
    %v1682 = vpop.permute.xlu0 %1681
    %v1684 = vmul.f32 %v1678, %v1682
    %1686 = vrot.lane.b32.xlu0 %v1684, 64
    %v1687 = vpop.permute.xlu0 %1686
    %v1689 = vadd.f32 %v1658, %v1687
    %v1690 = vtanh.pop %v1689
    %v1691 = vsub.f32 1.0, %v1678
    %1693 = vrot.lane.b32.xlu0 %v1690, 96
    %v1694 = vpop.permute.xlu0 %1693
    %v1696 = vmul.f32 %v1691, %v1694
    %v1697 = vmul.f32 %v1678, %v1428
    %v1698 = vadd.f32 %v1696, %v1697
    %1700 = vrot.lane.b32.xlu0 %v1698, 96
    %v1701 = vpop.permute.xlu0 %1700
    %1703 = vst.msk [vmem:[#allocation3] sm:$0x3] %vm207, %v1701
    %1705 = vrot.lane.b32.xlu0 %v1566, 96
    %v1706 = vpop.permute.xlu0 %1705
    %1708 = vst.msk [vmem:[#allocation3 + $0x2] sm:$0x3] %vm207, %v1706
    %v1709 = vld [vmem:[#allocation3] sm:$0xf]
    %1711 = vst [vmem:[#allocation1] ss:$4 sm:$0xff] %v1709
    %v1712 = vld.sshfl [vmem:[#allocation1] sm:$0xff pattern:$0x73625140]
    %v1713 = vld.sshfl [vmem:[#allocation1 + $0x8] sm:$0xff pattern:$0x73625140]
    %1716 = vmatpush.msra.mxu0 %v159
    %1717 = vmatpush.msra.mxu0 %v157
    %1718 = vmatpush.msra.mxu0 %v155
    %1719 = vmatpush.msra.mxu0 %v153
    %1720 = vmatpush.msra.mxu0 %v151
    %1721 = vmatpush.msra.mxu0 %v149
    %1722 = vmatpush.msra.mxu0 %v147
    %1723 = vmatpush.msra.mxu0 %v145
    %1724 = vmatpush.msra.mxu0 %v143
    %1725 = vmatpush.msra.mxu0 %v141
    %1726 = vmatpush.msra.mxu0 %v139
    %1727 = vmatpush.msra.mxu0 %v137
    %1728 = vmatpush.msra.mxu0 %v135
    %1729 = vmatpush.msra.mxu0 %v133
    %1730 = vmatpush.msra.mxu0 %v131
    %1731 = vmatpush.msra.mxu0 %v129
    %1732 = vmatmul.f32.gmra.mxu0 %v1712
    %v1733 = vpop.f32.mrf.mxu0
    %v1734 = vadd.f32 0.0, %v1733
    %1735 = vdwg.mxu0
    %1736 = vmatpush.msra.mxu0 %v191
    %1737 = vmatpush.msra.mxu0 %v189
    %1738 = vmatpush.msra.mxu0 %v187
    %1739 = vmatpush.msra.mxu0 %v185
    %1740 = vmatpush.msra.mxu0 %v183
    %1741 = vmatpush.msra.mxu0 %v181
    %1742 = vmatpush.msra.mxu0 %v179
    %1743 = vmatpush.msra.mxu0 %v177
    %1744 = vmatpush.msra.mxu0 %v175
    %1745 = vmatpush.msra.mxu0 %v173
    %1746 = vmatpush.msra.mxu0 %v171
    %1747 = vmatpush.msra.mxu0 %v169
    %1748 = vmatpush.msra.mxu0 %v167
    %1749 = vmatpush.msra.mxu0 %v165
    %1750 = vmatpush.msra.mxu0 %v163
    %1751 = vmatpush.msra.mxu0 %v161
    %1752 = vmatmul.f32.gmra.mxu0 %v1713
    %v1753 = vpop.f32.mrf.mxu0
    %v1754 = vadd.f32 %v1734, %v1753
    %1755 = vdwg.mxu0
    %1756 = vmatpush.msra.mxu0 %v160
    %1757 = vmatpush.msra.mxu0 %v158
    %1758 = vmatpush.msra.mxu0 %v156
    %1759 = vmatpush.msra.mxu0 %v154
    %1760 = vmatpush.msra.mxu0 %v152
    %1761 = vmatpush.msra.mxu0 %v150
    %1762 = vmatpush.msra.mxu0 %v148
    %1763 = vmatpush.msra.mxu0 %v146
    %1764 = vmatpush.msra.mxu0 %v144
    %1765 = vmatpush.msra.mxu0 %v142
    %1766 = vmatpush.msra.mxu0 %v140
    %1767 = vmatpush.msra.mxu0 %v138
    %1768 = vmatpush.msra.mxu0 %v136
    %1769 = vmatpush.msra.mxu0 %v134
    %1770 = vmatpush.msra.mxu0 %v132
    %1771 = vmatpush.msra.mxu0 %v130
    %1772 = vmatmul.f32.gmra.mxu0 %v1712
    %v1773 = vpop.f32.mrf.mxu0
    %v1774 = vadd.f32 0.0, %v1773
    %1775 = vdwg.mxu0
    %1776 = vmatpush.msra.mxu0 %v192
    %1777 = vmatpush.msra.mxu0 %v190
    %1778 = vmatpush.msra.mxu0 %v188
    %1779 = vmatpush.msra.mxu0 %v186
    %1780 = vmatpush.msra.mxu0 %v184
    %1781 = vmatpush.msra.mxu0 %v182
    %1782 = vmatpush.msra.mxu0 %v180
    %1783 = vmatpush.msra.mxu0 %v178
    %1784 = vmatpush.msra.mxu0 %v176
    %1785 = vmatpush.msra.mxu0 %v174
    %1786 = vmatpush.msra.mxu0 %v172
    %1787 = vmatpush.msra.mxu0 %v170
    %1788 = vmatpush.msra.mxu0 %v168
    %1789 = vmatpush.msra.mxu0 %v166
    %1790 = vmatpush.msra.mxu0 %v164
    %1791 = vmatpush.msra.mxu0 %v162
    %1792 = vmatmul.f32.gmra.mxu0 %v1713
    %v1793 = vpop.f32.mrf.mxu0
    %v1794 = vadd.f32 %v1774, %v1793
    %1795 = vdwg.mxu0
    %v1796 = vadd.f32 %v1754, %v439
    %v1797 = vadd.f32 %v1796, %v1794
    %v1798 = vxor.u32 %v1797, 2147483648
    %v1799 = vmul.f32 %v1798, 1.442695
    %v1800 = vpow.pop %v1799
    %v1801 = vadd.f32 %v1800, 1.0
    %v1802 = vrcp.pop %v1801
    %v1803 = vmul.f32 %v1801, %v1802
    %v1804 = vsub.f32 1.0, %v1803
    %v1805 = vmul.f32 %v1802, %v1804
    %v1806 = vadd.f32 %v1802, %v1805
    %vm1807 = vweird.f32 %v1801
    %vm1808 = vweird.f32 %v1802
    %vm1809 = vmor %vm1807, %vm1808
    %v1810 = vsel %vm1809, %v1802, %v1806
    %v1811 = vand.u32 2147483647, %v1801
    %vm1812 = vcmp.eq.f32.partialorder %v1811, 8.507059e+37
    %v1813 = vand.u32 %v1801, 2147483648
    %v1814 = vor.u32 1.1754944e-38, %v1813
    %v1815 = vsel %vm1812, %v1814, %v1810
    %v1816 = vmul.f32 1.0, %v1815
    %v1817 = vadd.f32 %v1794, %v465
    %1819 = vrot.lane.b32.xlu0 %v1817, 64
    %v1820 = vpop.permute.xlu0 %1819
    %v1822 = vmul.f32 %v1816, %v1820
    %1824 = vrot.lane.b32.xlu0 %v1822, 64
    %v1825 = vpop.permute.xlu0 %1824
    %v1827 = vadd.f32 %v1796, %v1825
    %v1828 = vtanh.pop %v1827
    %v1829 = vsub.f32 1.0, %v1816
    %1831 = vrot.lane.b32.xlu0 %v1828, 96
    %v1832 = vpop.permute.xlu0 %1831
    %v1834 = vmul.f32 %v1829, %v1832
    %v1835 = vmul.f32 %v1816, %v1566
    %v1836 = vadd.f32 %v1834, %v1835
    %s1837 = scalar_lea.vmem %s0, 12
    %v1838 = vld [vmem:[%s1837] sm:$0x3]
    %1839 = vst.msk [vmem:[#allocation2] sm:$0x3] %vm205, %v1838
    %1840 = vst.msk [vmem:[#allocation2 + $0x2] sm:$0x3] %vm207, %v1701
    %v1841 = vld [vmem:[#allocation2] sm:$0xf]
    %1843 = vst [vmem:[#allocation1] ss:$4 sm:$0xff] %v1841
    %v1844 = vld.sshfl [vmem:[#allocation1] sm:$0xff pattern:$0x73625140]
    %v1845 = vld.sshfl [vmem:[#allocation1 + $0x8] sm:$0xff pattern:$0x73625140]
    %1848 = vmatpush.msra.mxu0 %v95
    %1849 = vmatpush.msra.mxu0 %v93
    %1850 = vmatpush.msra.mxu0 %v91
    %1851 = vmatpush.msra.mxu0 %v89
    %1852 = vmatpush.msra.mxu0 %v87
    %1853 = vmatpush.msra.mxu0 %v85
    %1854 = vmatpush.msra.mxu0 %v83
    %1855 = vmatpush.msra.mxu0 %v81
    %1856 = vmatpush.msra.mxu0 %v79
    %1857 = vmatpush.msra.mxu0 %v77
    %1858 = vmatpush.msra.mxu0 %v75
    %1859 = vmatpush.msra.mxu0 %v73
    %1860 = vmatpush.msra.mxu0 %v71
    %1861 = vmatpush.msra.mxu0 %v69
    %1862 = vmatpush.msra.mxu0 %v67
    %1863 = vmatpush.msra.mxu0 %v65
    %1864 = vmatmul.f32.gmra.mxu0 %v1844
    %v1865 = vpop.f32.mrf.mxu0
    %v1866 = vadd.f32 0.0, %v1865
    %1867 = vdwg.mxu0
    %1868 = vmatpush.msra.mxu0 %v127
    %1869 = vmatpush.msra.mxu0 %v125
    %1870 = vmatpush.msra.mxu0 %v123
    %1871 = vmatpush.msra.mxu0 %v121
    %1872 = vmatpush.msra.mxu0 %v119
    %1873 = vmatpush.msra.mxu0 %v117
    %1874 = vmatpush.msra.mxu0 %v115
    %1875 = vmatpush.msra.mxu0 %v113
    %1876 = vmatpush.msra.mxu0 %v111
    %1877 = vmatpush.msra.mxu0 %v109
    %1878 = vmatpush.msra.mxu0 %v107
    %1879 = vmatpush.msra.mxu0 %v105
    %1880 = vmatpush.msra.mxu0 %v103
    %1881 = vmatpush.msra.mxu0 %v101
    %1882 = vmatpush.msra.mxu0 %v99
    %1883 = vmatpush.msra.mxu0 %v97
    %1884 = vmatmul.f32.gmra.mxu0 %v1845
    %v1885 = vpop.f32.mrf.mxu0
    %v1886 = vadd.f32 %v1866, %v1885
    %1887 = vdwg.mxu0
    %1888 = vmatpush.msra.mxu0 %v96
    %1889 = vmatpush.msra.mxu0 %v94
    %1890 = vmatpush.msra.mxu0 %v92
    %1891 = vmatpush.msra.mxu0 %v90
    %1892 = vmatpush.msra.mxu0 %v88
    %1893 = vmatpush.msra.mxu0 %v86
    %1894 = vmatpush.msra.mxu0 %v84
    %1895 = vmatpush.msra.mxu0 %v82
    %1896 = vmatpush.msra.mxu0 %v80
    %1897 = vmatpush.msra.mxu0 %v78
    %1898 = vmatpush.msra.mxu0 %v76
    %1899 = vmatpush.msra.mxu0 %v74
    %1900 = vmatpush.msra.mxu0 %v72
    %1901 = vmatpush.msra.mxu0 %v70
    %1902 = vmatpush.msra.mxu0 %v68
    %1903 = vmatpush.msra.mxu0 %v66
    %1904 = vmatmul.f32.gmra.mxu0 %v1844
    %v1905 = vpop.f32.mrf.mxu0
    %v1906 = vadd.f32 0.0, %v1905
    %1907 = vdwg.mxu0
    %1908 = vmatpush.msra.mxu0 %v128
    %1909 = vmatpush.msra.mxu0 %v126
    %1910 = vmatpush.msra.mxu0 %v124
    %1911 = vmatpush.msra.mxu0 %v122
    %1912 = vmatpush.msra.mxu0 %v120
    %1913 = vmatpush.msra.mxu0 %v118
    %1914 = vmatpush.msra.mxu0 %v116
    %1915 = vmatpush.msra.mxu0 %v114
    %1916 = vmatpush.msra.mxu0 %v112
    %1917 = vmatpush.msra.mxu0 %v110
    %1918 = vmatpush.msra.mxu0 %v108
    %1919 = vmatpush.msra.mxu0 %v106
    %1920 = vmatpush.msra.mxu0 %v104
    %1921 = vmatpush.msra.mxu0 %v102
    %1922 = vmatpush.msra.mxu0 %v100
    %1923 = vmatpush.msra.mxu0 %v98
    %1924 = vmatmul.f32.gmra.mxu0 %v1845
    %v1925 = vpop.f32.mrf.mxu0
    %v1926 = vadd.f32 %v1906, %v1925
    %1927 = vdwg.mxu0
    %v1928 = vadd.f32 %v1886, %v297
    %v1929 = vadd.f32 %v1928, %v1926
    %v1930 = vxor.u32 %v1929, 2147483648
    %v1931 = vmul.f32 %v1930, 1.442695
    %v1932 = vpow.pop %v1931
    %v1933 = vadd.f32 %v1932, 1.0
    %v1934 = vrcp.pop %v1933
    %v1935 = vmul.f32 %v1933, %v1934
    %v1936 = vsub.f32 1.0, %v1935
    %v1937 = vmul.f32 %v1934, %v1936
    %v1938 = vadd.f32 %v1934, %v1937
    %vm1939 = vweird.f32 %v1933
    %vm1940 = vweird.f32 %v1934
    %vm1941 = vmor %vm1939, %vm1940
    %v1942 = vsel %vm1941, %v1934, %v1938
    %v1943 = vand.u32 2147483647, %v1933
    %vm1944 = vcmp.eq.f32.partialorder %v1943, 8.507059e+37
    %v1945 = vand.u32 %v1933, 2147483648
    %v1946 = vor.u32 1.1754944e-38, %v1945
    %v1947 = vsel %vm1944, %v1946, %v1942
    %v1948 = vmul.f32 1.0, %v1947
    %v1949 = vadd.f32 %v1926, %v323
    %1951 = vrot.lane.b32.xlu0 %v1949, 64
    %v1952 = vpop.permute.xlu0 %1951
    %v1954 = vmul.f32 %v1948, %v1952
    %1956 = vrot.lane.b32.xlu0 %v1954, 64
    %v1957 = vpop.permute.xlu0 %1956
    %v1959 = vadd.f32 %v1928, %v1957
    %v1960 = vtanh.pop %v1959
    %v1961 = vsub.f32 1.0, %v1948
    %1963 = vrot.lane.b32.xlu0 %v1960, 96
    %v1964 = vpop.permute.xlu0 %1963
    %v1966 = vmul.f32 %v1961, %v1964
    %v1967 = vmul.f32 %v1948, %v1698
    %v1968 = vadd.f32 %v1966, %v1967
    %1970 = vrot.lane.b32.xlu0 %v1968, 96
    %v1971 = vpop.permute.xlu0 %1970
    %1973 = vst.msk [vmem:[#allocation3] sm:$0x3] %vm207, %v1971
    %1975 = vrot.lane.b32.xlu0 %v1836, 96
    %v1976 = vpop.permute.xlu0 %1975
    %1978 = vst.msk [vmem:[#allocation3 + $0x2] sm:$0x3] %vm207, %v1976
    %v1979 = vld [vmem:[#allocation3] sm:$0xf]
    %1981 = vst [vmem:[#allocation1] ss:$4 sm:$0xff] %v1979
    %v1982 = vld.sshfl [vmem:[#allocation1] sm:$0xff pattern:$0x73625140]
    %v1983 = vld.sshfl [vmem:[#allocation1 + $0x8] sm:$0xff pattern:$0x73625140]
    %1986 = vmatpush.msra.mxu0 %v159
    %1987 = vmatpush.msra.mxu0 %v157
    %1988 = vmatpush.msra.mxu0 %v155
    %1989 = vmatpush.msra.mxu0 %v153
    %1990 = vmatpush.msra.mxu0 %v151
    %1991 = vmatpush.msra.mxu0 %v149
    %1992 = vmatpush.msra.mxu0 %v147
    %1993 = vmatpush.msra.mxu0 %v145
    %1994 = vmatpush.msra.mxu0 %v143
    %1995 = vmatpush.msra.mxu0 %v141
    %1996 = vmatpush.msra.mxu0 %v139
    %1997 = vmatpush.msra.mxu0 %v137
    %1998 = vmatpush.msra.mxu0 %v135
    %1999 = vmatpush.msra.mxu0 %v133
    %2000 = vmatpush.msra.mxu0 %v131
    %2001 = vmatpush.msra.mxu0 %v129
    %2002 = vmatmul.f32.gmra.mxu0 %v1982
    %v2003 = vpop.f32.mrf.mxu0
    %v2004 = vadd.f32 0.0, %v2003
    %2005 = vdwg.mxu0
    %2006 = vmatpush.msra.mxu0 %v191
    %2007 = vmatpush.msra.mxu0 %v189
    %2008 = vmatpush.msra.mxu0 %v187
    %2009 = vmatpush.msra.mxu0 %v185
    %2010 = vmatpush.msra.mxu0 %v183
    %2011 = vmatpush.msra.mxu0 %v181
    %2012 = vmatpush.msra.mxu0 %v179
    %2013 = vmatpush.msra.mxu0 %v177
    %2014 = vmatpush.msra.mxu0 %v175
    %2015 = vmatpush.msra.mxu0 %v173
    %2016 = vmatpush.msra.mxu0 %v171
    %2017 = vmatpush.msra.mxu0 %v169
    %2018 = vmatpush.msra.mxu0 %v167
    %2019 = vmatpush.msra.mxu0 %v165
    %2020 = vmatpush.msra.mxu0 %v163
    %2021 = vmatpush.msra.mxu0 %v161
    %2022 = vmatmul.f32.gmra.mxu0 %v1983
    %v2023 = vpop.f32.mrf.mxu0
    %v2024 = vadd.f32 %v2004, %v2023
    %2025 = vdwg.mxu0
    %2026 = vmatpush.msra.mxu0 %v160
    %2027 = vmatpush.msra.mxu0 %v158
    %2028 = vmatpush.msra.mxu0 %v156
    %2029 = vmatpush.msra.mxu0 %v154
    %2030 = vmatpush.msra.mxu0 %v152
    %2031 = vmatpush.msra.mxu0 %v150
    %2032 = vmatpush.msra.mxu0 %v148
    %2033 = vmatpush.msra.mxu0 %v146
    %2034 = vmatpush.msra.mxu0 %v144
    %2035 = vmatpush.msra.mxu0 %v142
    %2036 = vmatpush.msra.mxu0 %v140
    %2037 = vmatpush.msra.mxu0 %v138
    %2038 = vmatpush.msra.mxu0 %v136
    %2039 = vmatpush.msra.mxu0 %v134
    %2040 = vmatpush.msra.mxu0 %v132
    %2041 = vmatpush.msra.mxu0 %v130
    %2042 = vmatmul.f32.gmra.mxu0 %v1982
    %v2043 = vpop.f32.mrf.mxu0
    %v2044 = vadd.f32 0.0, %v2043
    %2045 = vdwg.mxu0
    %2046 = vmatpush.msra.mxu0 %v192
    %2047 = vmatpush.msra.mxu0 %v190
    %2048 = vmatpush.msra.mxu0 %v188
    %2049 = vmatpush.msra.mxu0 %v186
    %2050 = vmatpush.msra.mxu0 %v184
    %2051 = vmatpush.msra.mxu0 %v182
    %2052 = vmatpush.msra.mxu0 %v180
    %2053 = vmatpush.msra.mxu0 %v178
    %2054 = vmatpush.msra.mxu0 %v176
    %2055 = vmatpush.msra.mxu0 %v174
    %2056 = vmatpush.msra.mxu0 %v172
    %2057 = vmatpush.msra.mxu0 %v170
    %2058 = vmatpush.msra.mxu0 %v168
    %2059 = vmatpush.msra.mxu0 %v166
    %2060 = vmatpush.msra.mxu0 %v164
    %2061 = vmatpush.msra.mxu0 %v162
    %2062 = vmatmul.f32.gmra.mxu0 %v1983
    %v2063 = vpop.f32.mrf.mxu0
    %v2064 = vadd.f32 %v2044, %v2063
    %2065 = vdwg.mxu0
    %v2066 = vadd.f32 %v2024, %v439
    %v2067 = vadd.f32 %v2066, %v2064
    %v2068 = vxor.u32 %v2067, 2147483648
    %v2069 = vmul.f32 %v2068, 1.442695
    %v2070 = vpow.pop %v2069
    %v2071 = vadd.f32 %v2070, 1.0
    %v2072 = vrcp.pop %v2071
    %v2073 = vmul.f32 %v2071, %v2072
    %v2074 = vsub.f32 1.0, %v2073
    %v2075 = vmul.f32 %v2072, %v2074
    %v2076 = vadd.f32 %v2072, %v2075
    %vm2077 = vweird.f32 %v2071
    %vm2078 = vweird.f32 %v2072
    %vm2079 = vmor %vm2077, %vm2078
    %v2080 = vsel %vm2079, %v2072, %v2076
    %v2081 = vand.u32 2147483647, %v2071
    %vm2082 = vcmp.eq.f32.partialorder %v2081, 8.507059e+37
    %v2083 = vand.u32 %v2071, 2147483648
    %v2084 = vor.u32 1.1754944e-38, %v2083
    %v2085 = vsel %vm2082, %v2084, %v2080
    %v2086 = vmul.f32 1.0, %v2085
    %v2087 = vadd.f32 %v2064, %v465
    %2089 = vrot.lane.b32.xlu0 %v2087, 64
    %v2090 = vpop.permute.xlu0 %2089
    %v2092 = vmul.f32 %v2086, %v2090
    %2094 = vrot.lane.b32.xlu0 %v2092, 64
    %v2095 = vpop.permute.xlu0 %2094
    %v2097 = vadd.f32 %v2066, %v2095
    %v2098 = vtanh.pop %v2097
    %v2099 = vsub.f32 1.0, %v2086
    %2101 = vrot.lane.b32.xlu0 %v2098, 96
    %v2102 = vpop.permute.xlu0 %2101
    %v2104 = vmul.f32 %v2099, %v2102
    %v2105 = vmul.f32 %v2086, %v1836
    %v2106 = vadd.f32 %v2104, %v2105
    %s2107 = scalar_lea.vmem %s0, 14
    %v2108 = vld [vmem:[%s2107] sm:$0x3]
    %2109 = vst.msk [vmem:[#allocation2] sm:$0x3] %vm205, %v2108
    %2110 = vst.msk [vmem:[#allocation2 + $0x2] sm:$0x3] %vm207, %v1971
    %v2111 = vld [vmem:[#allocation2] sm:$0xf]
    %2113 = vst [vmem:[#allocation1] ss:$4 sm:$0xff] %v2111
    %v2114 = vld.sshfl [vmem:[#allocation1] sm:$0xff pattern:$0x73625140]
    %v2115 = vld.sshfl [vmem:[#allocation1 + $0x8] sm:$0xff pattern:$0x73625140]
    %2118 = vmatpush.msra.mxu0 %v95
    %2119 = vmatpush.msra.mxu0 %v93
    %2120 = vmatpush.msra.mxu0 %v91
    %2121 = vmatpush.msra.mxu0 %v89
    %2122 = vmatpush.msra.mxu0 %v87
    %2123 = vmatpush.msra.mxu0 %v85
    %2124 = vmatpush.msra.mxu0 %v83
    %2125 = vmatpush.msra.mxu0 %v81
    %2126 = vmatpush.msra.mxu0 %v79
    %2127 = vmatpush.msra.mxu0 %v77
    %2128 = vmatpush.msra.mxu0 %v75
    %2129 = vmatpush.msra.mxu0 %v73
    %2130 = vmatpush.msra.mxu0 %v71
    %2131 = vmatpush.msra.mxu0 %v69
    %2132 = vmatpush.msra.mxu0 %v67
    %2133 = vmatpush.msra.mxu0 %v65
    %2134 = vmatmul.f32.gmra.mxu0 %v2114
    %v2135 = vpop.f32.mrf.mxu0
    %v2136 = vadd.f32 0.0, %v2135
    %2137 = vdwg.mxu0
    %2138 = vmatpush.msra.mxu0 %v127
    %2139 = vmatpush.msra.mxu0 %v125
    %2140 = vmatpush.msra.mxu0 %v123
    %2141 = vmatpush.msra.mxu0 %v121
    %2142 = vmatpush.msra.mxu0 %v119
    %2143 = vmatpush.msra.mxu0 %v117
    %2144 = vmatpush.msra.mxu0 %v115
    %2145 = vmatpush.msra.mxu0 %v113
    %2146 = vmatpush.msra.mxu0 %v111
    %2147 = vmatpush.msra.mxu0 %v109
    %2148 = vmatpush.msra.mxu0 %v107
    %2149 = vmatpush.msra.mxu0 %v105
    %2150 = vmatpush.msra.mxu0 %v103
    %2151 = vmatpush.msra.mxu0 %v101
    %2152 = vmatpush.msra.mxu0 %v99
    %2153 = vmatpush.msra.mxu0 %v97
    %2154 = vmatmul.f32.gmra.mxu0 %v2115
    %v2155 = vpop.f32.mrf.mxu0
    %v2156 = vadd.f32 %v2136, %v2155
    %2157 = vdwg.mxu0
    %2158 = vmatpush.msra.mxu0 %v96
    %2159 = vmatpush.msra.mxu0 %v94
    %2160 = vmatpush.msra.mxu0 %v92
    %2161 = vmatpush.msra.mxu0 %v90
    %2162 = vmatpush.msra.mxu0 %v88
    %2163 = vmatpush.msra.mxu0 %v86
    %2164 = vmatpush.msra.mxu0 %v84
    %2165 = vmatpush.msra.mxu0 %v82
    %2166 = vmatpush.msra.mxu0 %v80
    %2167 = vmatpush.msra.mxu0 %v78
    %2168 = vmatpush.msra.mxu0 %v76
    %2169 = vmatpush.msra.mxu0 %v74
    %2170 = vmatpush.msra.mxu0 %v72
    %2171 = vmatpush.msra.mxu0 %v70
    %2172 = vmatpush.msra.mxu0 %v68
    %2173 = vmatpush.msra.mxu0 %v66
    %2174 = vmatmul.f32.gmra.mxu0 %v2114
    %v2175 = vpop.f32.mrf.mxu0
    %v2176 = vadd.f32 0.0, %v2175
    %2177 = vdwg.mxu0
    %2178 = vmatpush.msra.mxu0 %v128
    %2179 = vmatpush.msra.mxu0 %v126
    %2180 = vmatpush.msra.mxu0 %v124
    %2181 = vmatpush.msra.mxu0 %v122
    %2182 = vmatpush.msra.mxu0 %v120
    %2183 = vmatpush.msra.mxu0 %v118
    %2184 = vmatpush.msra.mxu0 %v116
    %2185 = vmatpush.msra.mxu0 %v114
    %2186 = vmatpush.msra.mxu0 %v112
    %2187 = vmatpush.msra.mxu0 %v110
    %2188 = vmatpush.msra.mxu0 %v108
    %2189 = vmatpush.msra.mxu0 %v106
    %2190 = vmatpush.msra.mxu0 %v104
    %2191 = vmatpush.msra.mxu0 %v102
    %2192 = vmatpush.msra.mxu0 %v100
    %2193 = vmatpush.msra.mxu0 %v98
    %2194 = vmatmul.f32.gmra.mxu0 %v2115
    %v2195 = vpop.f32.mrf.mxu0
    %v2196 = vadd.f32 %v2176, %v2195
    %2197 = vdwg.mxu0
    %v2198 = vadd.f32 %v2156, %v297
    %v2199 = vadd.f32 %v2198, %v2196
    %v2200 = vxor.u32 %v2199, 2147483648
    %v2201 = vmul.f32 %v2200, 1.442695
    %v2202 = vpow.pop %v2201
    %v2203 = vadd.f32 %v2202, 1.0
    %v2204 = vrcp.pop %v2203
    %v2205 = vmul.f32 %v2203, %v2204
    %v2206 = vsub.f32 1.0, %v2205
    %v2207 = vmul.f32 %v2204, %v2206
    %v2208 = vadd.f32 %v2204, %v2207
    %vm2209 = vweird.f32 %v2203
    %vm2210 = vweird.f32 %v2204
    %vm2211 = vmor %vm2209, %vm2210
    %v2212 = vsel %vm2211, %v2204, %v2208
    %v2213 = vand.u32 2147483647, %v2203
    %vm2214 = vcmp.eq.f32.partialorder %v2213, 8.507059e+37
    %v2215 = vand.u32 %v2203, 2147483648
    %v2216 = vor.u32 1.1754944e-38, %v2215
    %v2217 = vsel %vm2214, %v2216, %v2212
    %v2218 = vmul.f32 1.0, %v2217
    %v2219 = vadd.f32 %v2196, %v323
    %2221 = vrot.lane.b32.xlu0 %v2219, 64
    %v2222 = vpop.permute.xlu0 %2221
    %v2224 = vmul.f32 %v2218, %v2222
    %2226 = vrot.lane.b32.xlu0 %v2224, 64
    %v2227 = vpop.permute.xlu0 %2226
    %v2229 = vadd.f32 %v2198, %v2227
    %v2230 = vtanh.pop %v2229
    %v2231 = vsub.f32 1.0, %v2218
    %2233 = vrot.lane.b32.xlu0 %v2230, 96
    %v2234 = vpop.permute.xlu0 %2233
    %v2236 = vmul.f32 %v2231, %v2234
    %v2237 = vmul.f32 %v2218, %v1968
    %v2238 = vadd.f32 %v2236, %v2237
    %2240 = vrot.lane.b32.xlu0 %v2238, 96
    %v2241 = vpop.permute.xlu0 %2240
    %2243 = vst.msk [vmem:[#allocation3] sm:$0x3] %vm207, %v2241
    %2245 = vrot.lane.b32.xlu0 %v2106, 96
    %v2246 = vpop.permute.xlu0 %2245
    %2248 = vst.msk [vmem:[#allocation3 + $0x2] sm:$0x3] %vm207, %v2246
    %v2249 = vld [vmem:[#allocation3] sm:$0xf]
    %2251 = vst [vmem:[#allocation1] ss:$4 sm:$0xff] %v2249
    %v2252 = vld.sshfl [vmem:[#allocation1] sm:$0xff pattern:$0x73625140]
    %v2253 = vld.sshfl [vmem:[#allocation1 + $0x8] sm:$0xff pattern:$0x73625140]
    %2256 = vmatpush.msra.mxu0 %v159
    %2257 = vmatpush.msra.mxu0 %v157
    %2258 = vmatpush.msra.mxu0 %v155
    %2259 = vmatpush.msra.mxu0 %v153
    %2260 = vmatpush.msra.mxu0 %v151
    %2261 = vmatpush.msra.mxu0 %v149
    %2262 = vmatpush.msra.mxu0 %v147
    %2263 = vmatpush.msra.mxu0 %v145
    %2264 = vmatpush.msra.mxu0 %v143
    %2265 = vmatpush.msra.mxu0 %v141
    %2266 = vmatpush.msra.mxu0 %v139
    %2267 = vmatpush.msra.mxu0 %v137
    %2268 = vmatpush.msra.mxu0 %v135
    %2269 = vmatpush.msra.mxu0 %v133
    %2270 = vmatpush.msra.mxu0 %v131
    %2271 = vmatpush.msra.mxu0 %v129
    %2272 = vmatmul.f32.gmra.mxu0 %v2252
    %v2273 = vpop.f32.mrf.mxu0
    %v2274 = vadd.f32 0.0, %v2273
    %2275 = vdwg.mxu0
    %2276 = vmatpush.msra.mxu0 %v191
    %2277 = vmatpush.msra.mxu0 %v189
    %2278 = vmatpush.msra.mxu0 %v187
    %2279 = vmatpush.msra.mxu0 %v185
    %2280 = vmatpush.msra.mxu0 %v183
    %2281 = vmatpush.msra.mxu0 %v181
    %2282 = vmatpush.msra.mxu0 %v179
    %2283 = vmatpush.msra.mxu0 %v177
    %2284 = vmatpush.msra.mxu0 %v175
    %2285 = vmatpush.msra.mxu0 %v173
    %2286 = vmatpush.msra.mxu0 %v171
    %2287 = vmatpush.msra.mxu0 %v169
    %2288 = vmatpush.msra.mxu0 %v167
    %2289 = vmatpush.msra.mxu0 %v165
    %2290 = vmatpush.msra.mxu0 %v163
    %2291 = vmatpush.msra.mxu0 %v161
    %2292 = vmatmul.f32.gmra.mxu0 %v2253
    %v2293 = vpop.f32.mrf.mxu0
    %v2294 = vadd.f32 %v2274, %v2293
    %2295 = vdwg.mxu0
    %2296 = vmatpush.msra.mxu0 %v160
    %2297 = vmatpush.msra.mxu0 %v158
    %2298 = vmatpush.msra.mxu0 %v156
    %2299 = vmatpush.msra.mxu0 %v154
    %2300 = vmatpush.msra.mxu0 %v152
    %2301 = vmatpush.msra.mxu0 %v150
    %2302 = vmatpush.msra.mxu0 %v148
    %2303 = vmatpush.msra.mxu0 %v146
    %2304 = vmatpush.msra.mxu0 %v144
    %2305 = vmatpush.msra.mxu0 %v142
    %2306 = vmatpush.msra.mxu0 %v140
    %2307 = vmatpush.msra.mxu0 %v138
    %2308 = vmatpush.msra.mxu0 %v136
    %2309 = vmatpush.msra.mxu0 %v134
    %2310 = vmatpush.msra.mxu0 %v132
    %2311 = vmatpush.msra.mxu0 %v130
    %2312 = vmatmul.f32.gmra.mxu0 %v2252
    %v2313 = vpop.f32.mrf.mxu0
    %v2314 = vadd.f32 0.0, %v2313
    %2315 = vdwg.mxu0
    %2316 = vmatpush.msra.mxu0 %v192
    %2317 = vmatpush.msra.mxu0 %v190
    %2318 = vmatpush.msra.mxu0 %v188
    %2319 = vmatpush.msra.mxu0 %v186
    %2320 = vmatpush.msra.mxu0 %v184
    %2321 = vmatpush.msra.mxu0 %v182
    %2322 = vmatpush.msra.mxu0 %v180
    %2323 = vmatpush.msra.mxu0 %v178
    %2324 = vmatpush.msra.mxu0 %v176
    %2325 = vmatpush.msra.mxu0 %v174
    %2326 = vmatpush.msra.mxu0 %v172
    %2327 = vmatpush.msra.mxu0 %v170
    %2328 = vmatpush.msra.mxu0 %v168
    %2329 = vmatpush.msra.mxu0 %v166
    %2330 = vmatpush.msra.mxu0 %v164
    %2331 = vmatpush.msra.mxu0 %v162
    %2332 = vmatmul.f32.gmra.mxu0 %v2253
    %v2333 = vpop.f32.mrf.mxu0
    %v2334 = vadd.f32 %v2314, %v2333
    %2335 = vdwg.mxu0
    %v2336 = vadd.f32 %v2294, %v439
    %v2337 = vadd.f32 %v2336, %v2334
    %v2338 = vxor.u32 %v2337, 2147483648
    %v2339 = vmul.f32 %v2338, 1.442695
    %v2340 = vpow.pop %v2339
    %v2341 = vadd.f32 %v2340, 1.0
    %v2342 = vrcp.pop %v2341
    %v2343 = vmul.f32 %v2341, %v2342
    %v2344 = vsub.f32 1.0, %v2343
    %v2345 = vmul.f32 %v2342, %v2344
    %v2346 = vadd.f32 %v2342, %v2345
    %vm2347 = vweird.f32 %v2341
    %vm2348 = vweird.f32 %v2342
    %vm2349 = vmor %vm2347, %vm2348
    %v2350 = vsel %vm2349, %v2342, %v2346
    %v2351 = vand.u32 2147483647, %v2341
    %vm2352 = vcmp.eq.f32.partialorder %v2351, 8.507059e+37
    %v2353 = vand.u32 %v2341, 2147483648
    %v2354 = vor.u32 1.1754944e-38, %v2353
    %v2355 = vsel %vm2352, %v2354, %v2350
    %v2356 = vmul.f32 1.0, %v2355
    %v2357 = vadd.f32 %v2334, %v465
    %2359 = vrot.lane.b32.xlu0 %v2357, 64
    %v2360 = vpop.permute.xlu0 %2359
    %v2362 = vmul.f32 %v2356, %v2360
    %2364 = vrot.lane.b32.xlu0 %v2362, 64
    %v2365 = vpop.permute.xlu0 %2364
    %v2367 = vadd.f32 %v2336, %v2365
    %v2368 = vtanh.pop %v2367
    %v2369 = vsub.f32 1.0, %v2356
    %2371 = vrot.lane.b32.xlu0 %v2368, 96
    %v2372 = vpop.permute.xlu0 %2371
    %v2374 = vmul.f32 %v2369, %v2372
    %v2375 = vmul.f32 %v2356, %v2106
    %v2376 = vadd.f32 %v2374, %v2375
    %v2378 = vperm.slane %v201, 0
    %2381 = vrot.lane.b32.xlu0 %v2376, 96
    %v2382 = vpop.permute.xlu0 %2381
    %vm2383 = vcmask 261120
    %v2384 = vsel %vm2383, %v2382, 0
    %2386 = vmatpush.msra.mxu0 0.0
    %2387 = vmatpush.msra.mxu0 0.0
    %2388 = vmatpush.msra.mxu0 0.0
    %2389 = vmatpush.msra.mxu0 0.0
    %2390 = vmatpush.msra.mxu0 0.0
    %2391 = vmatpush.msra.mxu0 0.0
    %2392 = vmatpush.msra.mxu0 0.0
    %2393 = vmatpush.msra.mxu0 0.0
    %2394 = vmatpush.msra.mxu0 0.0
    %2395 = vmatpush.msra.mxu0 0.0
    %2396 = vmatpush.msra.mxu0 0.0
    %2397 = vmatpush.msra.mxu0 0.0
    %2398 = vmatpush.msra.mxu0 %v200
    %2399 = vmatpush.msra.mxu0 %v199
    %2400 = vmatpush.msra.mxu0 %v198
    %2401 = vmatpush.msra.mxu0 %v197
    %2402 = vmatmul.f32.gmra.mxu0 %v2384
    %v2403 = vpop.f32.mrf.mxu0
    %v2404 = vadd.f32 %v2378, %v2403
    %2405 = vdwg.mxu0
    %2406 = vst.msk [vmem:[#allocation9] sm:$0x3] %vm205, %v2404
    %2407 = vst.msk [vmem:[#allocation2] sm:$0x3] %vm205, %v2404
    %2408 = vst.msk [vmem:[#allocation2 + $0x2] sm:$0x3] %vm207, %v2241
    %v2409 = vld [vmem:[#allocation2] sm:$0xf]
    %2411 = vst [vmem:[#allocation1] ss:$4 sm:$0xff] %v2409
    %v2412 = vld.sshfl [vmem:[#allocation1] sm:$0xff pattern:$0x73625140]
    %v2413 = vld.sshfl [vmem:[#allocation1 + $0x8] sm:$0xff pattern:$0x73625140]
    %2416 = vmatpush.msra.mxu0 %v95
    %2417 = vmatpush.msra.mxu0 %v93
    %2418 = vmatpush.msra.mxu0 %v91
    %2419 = vmatpush.msra.mxu0 %v89
    %2420 = vmatpush.msra.mxu0 %v87
    %2421 = vmatpush.msra.mxu0 %v85
    %2422 = vmatpush.msra.mxu0 %v83
    %2423 = vmatpush.msra.mxu0 %v81
    %2424 = vmatpush.msra.mxu0 %v79
    %2425 = vmatpush.msra.mxu0 %v77
    %2426 = vmatpush.msra.mxu0 %v75
    %2427 = vmatpush.msra.mxu0 %v73
    %2428 = vmatpush.msra.mxu0 %v71
    %2429 = vmatpush.msra.mxu0 %v69
    %2430 = vmatpush.msra.mxu0 %v67
    %2431 = vmatpush.msra.mxu0 %v65
    %2432 = vmatmul.f32.gmra.mxu0 %v2412
    %v2433 = vpop.f32.mrf.mxu0
    %v2434 = vadd.f32 0.0, %v2433
    %2435 = vdwg.mxu0
    %2436 = vmatpush.msra.mxu0 %v127
    %2437 = vmatpush.msra.mxu0 %v125
    %2438 = vmatpush.msra.mxu0 %v123
    %2439 = vmatpush.msra.mxu0 %v121
    %2440 = vmatpush.msra.mxu0 %v119
    %2441 = vmatpush.msra.mxu0 %v117
    %2442 = vmatpush.msra.mxu0 %v115
    %2443 = vmatpush.msra.mxu0 %v113
    %2444 = vmatpush.msra.mxu0 %v111
    %2445 = vmatpush.msra.mxu0 %v109
    %2446 = vmatpush.msra.mxu0 %v107
    %2447 = vmatpush.msra.mxu0 %v105
    %2448 = vmatpush.msra.mxu0 %v103
    %2449 = vmatpush.msra.mxu0 %v101
    %2450 = vmatpush.msra.mxu0 %v99
    %2451 = vmatpush.msra.mxu0 %v97
    %2452 = vmatmul.f32.gmra.mxu0 %v2413
    %v2453 = vpop.f32.mrf.mxu0
    %v2454 = vadd.f32 %v2434, %v2453
    %2455 = vdwg.mxu0
    %2456 = vmatpush.msra.mxu0 %v96
    %2457 = vmatpush.msra.mxu0 %v94
    %2458 = vmatpush.msra.mxu0 %v92
    %2459 = vmatpush.msra.mxu0 %v90
    %2460 = vmatpush.msra.mxu0 %v88
    %2461 = vmatpush.msra.mxu0 %v86
    %2462 = vmatpush.msra.mxu0 %v84
    %2463 = vmatpush.msra.mxu0 %v82
    %2464 = vmatpush.msra.mxu0 %v80
    %2465 = vmatpush.msra.mxu0 %v78
    %2466 = vmatpush.msra.mxu0 %v76
    %2467 = vmatpush.msra.mxu0 %v74
    %2468 = vmatpush.msra.mxu0 %v72
    %2469 = vmatpush.msra.mxu0 %v70
    %2470 = vmatpush.msra.mxu0 %v68
    %2471 = vmatpush.msra.mxu0 %v66
    %2472 = vmatmul.f32.gmra.mxu0 %v2412
    %v2473 = vpop.f32.mrf.mxu0
    %v2474 = vadd.f32 0.0, %v2473
    %2475 = vdwg.mxu0
    %2476 = vmatpush.msra.mxu0 %v128
    %2477 = vmatpush.msra.mxu0 %v126
    %2478 = vmatpush.msra.mxu0 %v124
    %2479 = vmatpush.msra.mxu0 %v122
    %2480 = vmatpush.msra.mxu0 %v120
    %2481 = vmatpush.msra.mxu0 %v118
    %2482 = vmatpush.msra.mxu0 %v116
    %2483 = vmatpush.msra.mxu0 %v114
    %2484 = vmatpush.msra.mxu0 %v112
    %2485 = vmatpush.msra.mxu0 %v110
    %2486 = vmatpush.msra.mxu0 %v108
    %2487 = vmatpush.msra.mxu0 %v106
    %2488 = vmatpush.msra.mxu0 %v104
    %2489 = vmatpush.msra.mxu0 %v102
    %2490 = vmatpush.msra.mxu0 %v100
    %2491 = vmatpush.msra.mxu0 %v98
    %2492 = vmatmul.f32.gmra.mxu0 %v2413
    %v2493 = vpop.f32.mrf.mxu0
    %v2494 = vadd.f32 %v2474, %v2493
    %2495 = vdwg.mxu0
    %v2496 = vadd.f32 %v2454, %v297
    %v2497 = vadd.f32 %v2496, %v2494
    %v2498 = vxor.u32 %v2497, 2147483648
    %v2499 = vmul.f32 %v2498, 1.442695
    %v2500 = vpow.pop %v2499
    %v2501 = vadd.f32 %v2500, 1.0
    %v2502 = vrcp.pop %v2501
    %v2503 = vmul.f32 %v2501, %v2502
    %v2504 = vsub.f32 1.0, %v2503
    %v2505 = vmul.f32 %v2502, %v2504
    %v2506 = vadd.f32 %v2502, %v2505
    %vm2507 = vweird.f32 %v2501
    %vm2508 = vweird.f32 %v2502
    %vm2509 = vmor %vm2507, %vm2508
    %v2510 = vsel %vm2509, %v2502, %v2506
    %v2511 = vand.u32 2147483647, %v2501
    %vm2512 = vcmp.eq.f32.partialorder %v2511, 8.507059e+37
    %v2513 = vand.u32 %v2501, 2147483648
    %v2514 = vor.u32 1.1754944e-38, %v2513
    %v2515 = vsel %vm2512, %v2514, %v2510
    %v2516 = vmul.f32 1.0, %v2515
    %v2517 = vadd.f32 %v2494, %v323
    %2519 = vrot.lane.b32.xlu0 %v2517, 64
    %v2520 = vpop.permute.xlu0 %2519
    %v2522 = vmul.f32 %v2516, %v2520
    %2524 = vrot.lane.b32.xlu0 %v2522, 64
    %v2525 = vpop.permute.xlu0 %2524
    %v2527 = vadd.f32 %v2496, %v2525
    %v2528 = vtanh.pop %v2527
    %v2529 = vsub.f32 1.0, %v2516
    %2531 = vrot.lane.b32.xlu0 %v2528, 96
    %v2532 = vpop.permute.xlu0 %2531
    %v2534 = vmul.f32 %v2529, %v2532
    %v2535 = vmul.f32 %v2516, %v2238
    %v2536 = vadd.f32 %v2534, %v2535
    %2538 = vrot.lane.b32.xlu0 %v2536, 96
    %v2539 = vpop.permute.xlu0 %2538
    %2541 = vst.msk [vmem:[#allocation3] sm:$0x3] %vm207, %v2539
    %2543 = vst.msk [vmem:[#allocation3 + $0x2] sm:$0x3] %vm207, %v2382
    %v2544 = vld [vmem:[#allocation3] sm:$0xf]
    %2546 = vst [vmem:[#allocation1] ss:$4 sm:$0xff] %v2544
    %v2547 = vld.sshfl [vmem:[#allocation1] sm:$0xff pattern:$0x73625140]
    %v2548 = vld.sshfl [vmem:[#allocation1 + $0x8] sm:$0xff pattern:$0x73625140]
    %2551 = vmatpush.msra.mxu0 %v159
    %2552 = vmatpush.msra.mxu0 %v157
    %2553 = vmatpush.msra.mxu0 %v155
    %2554 = vmatpush.msra.mxu0 %v153
    %2555 = vmatpush.msra.mxu0 %v151
    %2556 = vmatpush.msra.mxu0 %v149
    %2557 = vmatpush.msra.mxu0 %v147
    %2558 = vmatpush.msra.mxu0 %v145
    %2559 = vmatpush.msra.mxu0 %v143
    %2560 = vmatpush.msra.mxu0 %v141
    %2561 = vmatpush.msra.mxu0 %v139
    %2562 = vmatpush.msra.mxu0 %v137
    %2563 = vmatpush.msra.mxu0 %v135
    %2564 = vmatpush.msra.mxu0 %v133
    %2565 = vmatpush.msra.mxu0 %v131
    %2566 = vmatpush.msra.mxu0 %v129
    %2567 = vmatmul.f32.gmra.mxu0 %v2547
    %v2568 = vpop.f32.mrf.mxu0
    %v2569 = vadd.f32 0.0, %v2568
    %2570 = vdwg.mxu0
    %2571 = vmatpush.msra.mxu0 %v191
    %2572 = vmatpush.msra.mxu0 %v189
    %2573 = vmatpush.msra.mxu0 %v187
    %2574 = vmatpush.msra.mxu0 %v185
    %2575 = vmatpush.msra.mxu0 %v183
    %2576 = vmatpush.msra.mxu0 %v181
    %2577 = vmatpush.msra.mxu0 %v179
    %2578 = vmatpush.msra.mxu0 %v177
    %2579 = vmatpush.msra.mxu0 %v175
    %2580 = vmatpush.msra.mxu0 %v173
    %2581 = vmatpush.msra.mxu0 %v171
    %2582 = vmatpush.msra.mxu0 %v169
    %2583 = vmatpush.msra.mxu0 %v167
    %2584 = vmatpush.msra.mxu0 %v165
    %2585 = vmatpush.msra.mxu0 %v163
    %2586 = vmatpush.msra.mxu0 %v161
    %2587 = vmatmul.f32.gmra.mxu0 %v2548
    %v2588 = vpop.f32.mrf.mxu0
    %v2589 = vadd.f32 %v2569, %v2588
    %2590 = vdwg.mxu0
    %2591 = vmatpush.msra.mxu0 %v160
    %2592 = vmatpush.msra.mxu0 %v158
    %2593 = vmatpush.msra.mxu0 %v156
    %2594 = vmatpush.msra.mxu0 %v154
    %2595 = vmatpush.msra.mxu0 %v152
    %2596 = vmatpush.msra.mxu0 %v150
    %2597 = vmatpush.msra.mxu0 %v148
    %2598 = vmatpush.msra.mxu0 %v146
    %2599 = vmatpush.msra.mxu0 %v144
    %2600 = vmatpush.msra.mxu0 %v142
    %2601 = vmatpush.msra.mxu0 %v140
    %2602 = vmatpush.msra.mxu0 %v138
    %2603 = vmatpush.msra.mxu0 %v136
    %2604 = vmatpush.msra.mxu0 %v134
    %2605 = vmatpush.msra.mxu0 %v132
    %2606 = vmatpush.msra.mxu0 %v130
    %2607 = vmatmul.f32.gmra.mxu0 %v2547
    %v2608 = vpop.f32.mrf.mxu0
    %v2609 = vadd.f32 0.0, %v2608
    %2610 = vdwg.mxu0
    %2611 = vmatpush.msra.mxu0 %v192
    %2612 = vmatpush.msra.mxu0 %v190
    %2613 = vmatpush.msra.mxu0 %v188
    %2614 = vmatpush.msra.mxu0 %v186
    %2615 = vmatpush.msra.mxu0 %v184
    %2616 = vmatpush.msra.mxu0 %v182
    %2617 = vmatpush.msra.mxu0 %v180
    %2618 = vmatpush.msra.mxu0 %v178
    %2619 = vmatpush.msra.mxu0 %v176
    %2620 = vmatpush.msra.mxu0 %v174
    %2621 = vmatpush.msra.mxu0 %v172
    %2622 = vmatpush.msra.mxu0 %v170
    %2623 = vmatpush.msra.mxu0 %v168
    %2624 = vmatpush.msra.mxu0 %v166
    %2625 = vmatpush.msra.mxu0 %v164
    %2626 = vmatpush.msra.mxu0 %v162
    %2627 = vmatmul.f32.gmra.mxu0 %v2548
    %v2628 = vpop.f32.mrf.mxu0
    %v2629 = vadd.f32 %v2609, %v2628
    %2630 = vdwg.mxu0
    %v2631 = vadd.f32 %v2589, %v439
    %v2632 = vadd.f32 %v2631, %v2629
    %v2633 = vxor.u32 %v2632, 2147483648
    %v2634 = vmul.f32 %v2633, 1.442695
    %v2635 = vpow.pop %v2634
    %v2636 = vadd.f32 %v2635, 1.0
    %v2637 = vrcp.pop %v2636
    %v2638 = vmul.f32 %v2636, %v2637
    %v2639 = vsub.f32 1.0, %v2638
    %v2640 = vmul.f32 %v2637, %v2639
    %v2641 = vadd.f32 %v2637, %v2640
    %vm2642 = vweird.f32 %v2636
    %vm2643 = vweird.f32 %v2637
    %vm2644 = vmor %vm2642, %vm2643
    %v2645 = vsel %vm2644, %v2637, %v2641
    %v2646 = vand.u32 2147483647, %v2636
    %vm2647 = vcmp.eq.f32.partialorder %v2646, 8.507059e+37
    %v2648 = vand.u32 %v2636, 2147483648
    %v2649 = vor.u32 1.1754944e-38, %v2648
    %v2650 = vsel %vm2647, %v2649, %v2645
    %v2651 = vmul.f32 1.0, %v2650
    %v2652 = vadd.f32 %v2629, %v465
    %2654 = vrot.lane.b32.xlu0 %v2652, 64
    %v2655 = vpop.permute.xlu0 %2654
    %v2657 = vmul.f32 %v2651, %v2655
    %2659 = vrot.lane.b32.xlu0 %v2657, 64
    %v2660 = vpop.permute.xlu0 %2659
    %v2662 = vadd.f32 %v2631, %v2660
    %v2663 = vtanh.pop %v2662
    %v2664 = vsub.f32 1.0, %v2651
    %2666 = vrot.lane.b32.xlu0 %v2663, 96
    %v2667 = vpop.permute.xlu0 %2666
    %v2669 = vmul.f32 %v2664, %v2667
    %v2670 = vmul.f32 %v2651, %v2376
    %v2671 = vadd.f32 %v2669, %v2670
    %2673 = vrot.lane.b32.xlu0 %v2671, 96
    %v2674 = vpop.permute.xlu0 %2673
    %v2675 = vsel %vm2383, %v2674, 0
    %2677 = vmatpush.msra.mxu0 0.0
    %2678 = vmatpush.msra.mxu0 0.0
    %2679 = vmatpush.msra.mxu0 0.0
    %2680 = vmatpush.msra.mxu0 0.0
    %2681 = vmatpush.msra.mxu0 0.0
    %2682 = vmatpush.msra.mxu0 0.0
    %2683 = vmatpush.msra.mxu0 0.0
    %2684 = vmatpush.msra.mxu0 0.0
    %2685 = vmatpush.msra.mxu0 0.0
    %2686 = vmatpush.msra.mxu0 0.0
    %2687 = vmatpush.msra.mxu0 0.0
    %2688 = vmatpush.msra.mxu0 0.0
    %2689 = vmatpush.msra.mxu0 %v200
    %2690 = vmatpush.msra.mxu0 %v199
    %2691 = vmatpush.msra.mxu0 %v198
    %2692 = vmatpush.msra.mxu0 %v197
    %2693 = vmatmul.f32.gmra.mxu0 %v2675
    %v2694 = vpop.f32.mrf.mxu0
    %v2695 = vadd.f32 %v2378, %v2694
    %2696 = vdwg.mxu0
    %s2697 = scalar_lea.vmem [#allocation9], 2
    %2698 = vst.msk [vmem:[%s2697] sm:$0x3] %vm205, %v2695
    %2699 = vst.msk [vmem:[#allocation2] sm:$0x3] %vm205, %v2695
    %2700 = vst.msk [vmem:[#allocation2 + $0x2] sm:$0x3] %vm207, %v2539
    %v2701 = vld [vmem:[#allocation2] sm:$0xf]
    %2703 = vst [vmem:[#allocation1] ss:$4 sm:$0xff] %v2701
    %v2704 = vld.sshfl [vmem:[#allocation1] sm:$0xff pattern:$0x73625140]
    %v2705 = vld.sshfl [vmem:[#allocation1 + $0x8] sm:$0xff pattern:$0x73625140]
    %2708 = vmatpush.msra.mxu0 %v95
    %2709 = vmatpush.msra.mxu0 %v93
    %2710 = vmatpush.msra.mxu0 %v91
    %2711 = vmatpush.msra.mxu0 %v89
    %2712 = vmatpush.msra.mxu0 %v87
    %2713 = vmatpush.msra.mxu0 %v85
    %2714 = vmatpush.msra.mxu0 %v83
    %2715 = vmatpush.msra.mxu0 %v81
    %2716 = vmatpush.msra.mxu0 %v79
    %2717 = vmatpush.msra.mxu0 %v77
    %2718 = vmatpush.msra.mxu0 %v75
    %2719 = vmatpush.msra.mxu0 %v73
    %2720 = vmatpush.msra.mxu0 %v71
    %2721 = vmatpush.msra.mxu0 %v69
    %2722 = vmatpush.msra.mxu0 %v67
    %2723 = vmatpush.msra.mxu0 %v65
    %2724 = vmatmul.f32.gmra.mxu0 %v2704
    %v2725 = vpop.f32.mrf.mxu0
    %v2726 = vadd.f32 0.0, %v2725
    %2727 = vdwg.mxu0
    %2728 = vmatpush.msra.mxu0 %v127
    %2729 = vmatpush.msra.mxu0 %v125
    %2730 = vmatpush.msra.mxu0 %v123
    %2731 = vmatpush.msra.mxu0 %v121
    %2732 = vmatpush.msra.mxu0 %v119
    %2733 = vmatpush.msra.mxu0 %v117
    %2734 = vmatpush.msra.mxu0 %v115
    %2735 = vmatpush.msra.mxu0 %v113
    %2736 = vmatpush.msra.mxu0 %v111
    %2737 = vmatpush.msra.mxu0 %v109
    %2738 = vmatpush.msra.mxu0 %v107
    %2739 = vmatpush.msra.mxu0 %v105
    %2740 = vmatpush.msra.mxu0 %v103
    %2741 = vmatpush.msra.mxu0 %v101
    %2742 = vmatpush.msra.mxu0 %v99
    %2743 = vmatpush.msra.mxu0 %v97
    %2744 = vmatmul.f32.gmra.mxu0 %v2705
    %v2745 = vpop.f32.mrf.mxu0
    %v2746 = vadd.f32 %v2726, %v2745
    %2747 = vdwg.mxu0
    %2748 = vmatpush.msra.mxu0 %v96
    %2749 = vmatpush.msra.mxu0 %v94
    %2750 = vmatpush.msra.mxu0 %v92
    %2751 = vmatpush.msra.mxu0 %v90
    %2752 = vmatpush.msra.mxu0 %v88
    %2753 = vmatpush.msra.mxu0 %v86
    %2754 = vmatpush.msra.mxu0 %v84
    %2755 = vmatpush.msra.mxu0 %v82
    %2756 = vmatpush.msra.mxu0 %v80
    %2757 = vmatpush.msra.mxu0 %v78
    %2758 = vmatpush.msra.mxu0 %v76
    %2759 = vmatpush.msra.mxu0 %v74
    %2760 = vmatpush.msra.mxu0 %v72
    %2761 = vmatpush.msra.mxu0 %v70
    %2762 = vmatpush.msra.mxu0 %v68
    %2763 = vmatpush.msra.mxu0 %v66
    %2764 = vmatmul.f32.gmra.mxu0 %v2704
    %v2765 = vpop.f32.mrf.mxu0
    %v2766 = vadd.f32 0.0, %v2765
    %2767 = vdwg.mxu0
    %2768 = vmatpush.msra.mxu0 %v128
    %2769 = vmatpush.msra.mxu0 %v126
    %2770 = vmatpush.msra.mxu0 %v124
    %2771 = vmatpush.msra.mxu0 %v122
    %2772 = vmatpush.msra.mxu0 %v120
    %2773 = vmatpush.msra.mxu0 %v118
    %2774 = vmatpush.msra.mxu0 %v116
    %2775 = vmatpush.msra.mxu0 %v114
    %2776 = vmatpush.msra.mxu0 %v112
    %2777 = vmatpush.msra.mxu0 %v110
    %2778 = vmatpush.msra.mxu0 %v108
    %2779 = vmatpush.msra.mxu0 %v106
    %2780 = vmatpush.msra.mxu0 %v104
    %2781 = vmatpush.msra.mxu0 %v102
    %2782 = vmatpush.msra.mxu0 %v100
    %2783 = vmatpush.msra.mxu0 %v98
    %2784 = vmatmul.f32.gmra.mxu0 %v2705
    %v2785 = vpop.f32.mrf.mxu0
    %v2786 = vadd.f32 %v2766, %v2785
    %2787 = vdwg.mxu0
    %v2788 = vadd.f32 %v2746, %v297
    %v2789 = vadd.f32 %v2788, %v2786
    %v2790 = vxor.u32 %v2789, 2147483648
    %v2791 = vmul.f32 %v2790, 1.442695
    %v2792 = vpow.pop %v2791
    %v2793 = vadd.f32 %v2792, 1.0
    %v2794 = vrcp.pop %v2793
    %v2795 = vmul.f32 %v2793, %v2794
    %v2796 = vsub.f32 1.0, %v2795
    %v2797 = vmul.f32 %v2794, %v2796
    %v2798 = vadd.f32 %v2794, %v2797
    %vm2799 = vweird.f32 %v2793
    %vm2800 = vweird.f32 %v2794
    %vm2801 = vmor %vm2799, %vm2800
    %v2802 = vsel %vm2801, %v2794, %v2798
    %v2803 = vand.u32 2147483647, %v2793
    %vm2804 = vcmp.eq.f32.partialorder %v2803, 8.507059e+37
    %v2805 = vand.u32 %v2793, 2147483648
    %v2806 = vor.u32 1.1754944e-38, %v2805
    %v2807 = vsel %vm2804, %v2806, %v2802
    %v2808 = vmul.f32 1.0, %v2807
    %v2809 = vadd.f32 %v2786, %v323
    %2811 = vrot.lane.b32.xlu0 %v2809, 64
    %v2812 = vpop.permute.xlu0 %2811
    %v2814 = vmul.f32 %v2808, %v2812
    %2816 = vrot.lane.b32.xlu0 %v2814, 64
    %v2817 = vpop.permute.xlu0 %2816
    %v2819 = vadd.f32 %v2788, %v2817
    %v2820 = vtanh.pop %v2819
    %v2821 = vsub.f32 1.0, %v2808
    %2823 = vrot.lane.b32.xlu0 %v2820, 96
    %v2824 = vpop.permute.xlu0 %2823
    %v2826 = vmul.f32 %v2821, %v2824
    %v2827 = vmul.f32 %v2808, %v2536
    %v2828 = vadd.f32 %v2826, %v2827
    %2830 = vrot.lane.b32.xlu0 %v2828, 96
    %v2831 = vpop.permute.xlu0 %2830
    %2833 = vst.msk [vmem:[#allocation3] sm:$0x3] %vm207, %v2831
    %2835 = vst.msk [vmem:[#allocation3 + $0x2] sm:$0x3] %vm207, %v2674
    %v2836 = vld [vmem:[#allocation3] sm:$0xf]
    %2838 = vst [vmem:[#allocation1] ss:$4 sm:$0xff] %v2836
    %v2839 = vld.sshfl [vmem:[#allocation1] sm:$0xff pattern:$0x73625140]
    %v2840 = vld.sshfl [vmem:[#allocation1 + $0x8] sm:$0xff pattern:$0x73625140]
    %2843 = vmatpush.msra.mxu0 %v159
    %2844 = vmatpush.msra.mxu0 %v157
    %2845 = vmatpush.msra.mxu0 %v155
    %2846 = vmatpush.msra.mxu0 %v153
    %2847 = vmatpush.msra.mxu0 %v151
    %2848 = vmatpush.msra.mxu0 %v149
    %2849 = vmatpush.msra.mxu0 %v147
    %2850 = vmatpush.msra.mxu0 %v145
    %2851 = vmatpush.msra.mxu0 %v143
    %2852 = vmatpush.msra.mxu0 %v141
    %2853 = vmatpush.msra.mxu0 %v139
    %2854 = vmatpush.msra.mxu0 %v137
    %2855 = vmatpush.msra.mxu0 %v135
    %2856 = vmatpush.msra.mxu0 %v133
    %2857 = vmatpush.msra.mxu0 %v131
    %2858 = vmatpush.msra.mxu0 %v129
    %2859 = vmatmul.f32.gmra.mxu0 %v2839
    %v2860 = vpop.f32.mrf.mxu0
    %v2861 = vadd.f32 0.0, %v2860
    %2862 = vdwg.mxu0
    %2863 = vmatpush.msra.mxu0 %v191
    %2864 = vmatpush.msra.mxu0 %v189
    %2865 = vmatpush.msra.mxu0 %v187
    %2866 = vmatpush.msra.mxu0 %v185
    %2867 = vmatpush.msra.mxu0 %v183
    %2868 = vmatpush.msra.mxu0 %v181
    %2869 = vmatpush.msra.mxu0 %v179
    %2870 = vmatpush.msra.mxu0 %v177
    %2871 = vmatpush.msra.mxu0 %v175
    %2872 = vmatpush.msra.mxu0 %v173
    %2873 = vmatpush.msra.mxu0 %v171
    %2874 = vmatpush.msra.mxu0 %v169
    %2875 = vmatpush.msra.mxu0 %v167
    %2876 = vmatpush.msra.mxu0 %v165
    %2877 = vmatpush.msra.mxu0 %v163
    %2878 = vmatpush.msra.mxu0 %v161
    %2879 = vmatmul.f32.gmra.mxu0 %v2840
    %v2880 = vpop.f32.mrf.mxu0
    %v2881 = vadd.f32 %v2861, %v2880
    %2882 = vdwg.mxu0
    %2883 = vmatpush.msra.mxu0 %v160
    %2884 = vmatpush.msra.mxu0 %v158
    %2885 = vmatpush.msra.mxu0 %v156
    %2886 = vmatpush.msra.mxu0 %v154
    %2887 = vmatpush.msra.mxu0 %v152
    %2888 = vmatpush.msra.mxu0 %v150
    %2889 = vmatpush.msra.mxu0 %v148
    %2890 = vmatpush.msra.mxu0 %v146
    %2891 = vmatpush.msra.mxu0 %v144
    %2892 = vmatpush.msra.mxu0 %v142
    %2893 = vmatpush.msra.mxu0 %v140
    %2894 = vmatpush.msra.mxu0 %v138
    %2895 = vmatpush.msra.mxu0 %v136
    %2896 = vmatpush.msra.mxu0 %v134
    %2897 = vmatpush.msra.mxu0 %v132
    %2898 = vmatpush.msra.mxu0 %v130
    %2899 = vmatmul.f32.gmra.mxu0 %v2839
    %v2900 = vpop.f32.mrf.mxu0
    %v2901 = vadd.f32 0.0, %v2900
    %2902 = vdwg.mxu0
    %2903 = vmatpush.msra.mxu0 %v192
    %2904 = vmatpush.msra.mxu0 %v190
    %2905 = vmatpush.msra.mxu0 %v188
    %2906 = vmatpush.msra.mxu0 %v186
    %2907 = vmatpush.msra.mxu0 %v184
    %2908 = vmatpush.msra.mxu0 %v182
    %2909 = vmatpush.msra.mxu0 %v180
    %2910 = vmatpush.msra.mxu0 %v178
    %2911 = vmatpush.msra.mxu0 %v176
    %2912 = vmatpush.msra.mxu0 %v174
    %2913 = vmatpush.msra.mxu0 %v172
    %2914 = vmatpush.msra.mxu0 %v170
    %2915 = vmatpush.msra.mxu0 %v168
    %2916 = vmatpush.msra.mxu0 %v166
    %2917 = vmatpush.msra.mxu0 %v164
    %2918 = vmatpush.msra.mxu0 %v162
    %2919 = vmatmul.f32.gmra.mxu0 %v2840
    %v2920 = vpop.f32.mrf.mxu0
    %v2921 = vadd.f32 %v2901, %v2920
    %2922 = vdwg.mxu0
    %v2923 = vadd.f32 %v2881, %v439
    %v2924 = vadd.f32 %v2923, %v2921
    %v2925 = vxor.u32 %v2924, 2147483648
    %v2926 = vmul.f32 %v2925, 1.442695
    %v2927 = vpow.pop %v2926
    %v2928 = vadd.f32 %v2927, 1.0
    %v2929 = vrcp.pop %v2928
    %v2930 = vmul.f32 %v2928, %v2929
    %v2931 = vsub.f32 1.0, %v2930
    %v2932 = vmul.f32 %v2929, %v2931
    %v2933 = vadd.f32 %v2929, %v2932
    %vm2934 = vweird.f32 %v2928
    %vm2935 = vweird.f32 %v2929
    %vm2936 = vmor %vm2934, %vm2935
    %v2937 = vsel %vm2936, %v2929, %v2933
    %v2938 = vand.u32 2147483647, %v2928
    %vm2939 = vcmp.eq.f32.partialorder %v2938, 8.507059e+37
    %v2940 = vand.u32 %v2928, 2147483648
    %v2941 = vor.u32 1.1754944e-38, %v2940
    %v2942 = vsel %vm2939, %v2941, %v2937
    %v2943 = vmul.f32 1.0, %v2942
    %v2944 = vadd.f32 %v2921, %v465
    %2946 = vrot.lane.b32.xlu0 %v2944, 64
    %v2947 = vpop.permute.xlu0 %2946
    %v2949 = vmul.f32 %v2943, %v2947
    %2951 = vrot.lane.b32.xlu0 %v2949, 64
    %v2952 = vpop.permute.xlu0 %2951
    %v2954 = vadd.f32 %v2923, %v2952
    %v2955 = vtanh.pop %v2954
    %v2956 = vsub.f32 1.0, %v2943
    %2958 = vrot.lane.b32.xlu0 %v2955, 96
    %v2959 = vpop.permute.xlu0 %2958
    %v2961 = vmul.f32 %v2956, %v2959
    %v2962 = vmul.f32 %v2943, %v2671
    %v2963 = vadd.f32 %v2961, %v2962
    %2965 = vrot.lane.b32.xlu0 %v2963, 96
    %v2966 = vpop.permute.xlu0 %2965
    %v2967 = vsel %vm2383, %v2966, 0
    %2969 = vmatpush.msra.mxu0 0.0
    %2970 = vmatpush.msra.mxu0 0.0
    %2971 = vmatpush.msra.mxu0 0.0
    %2972 = vmatpush.msra.mxu0 0.0
    %2973 = vmatpush.msra.mxu0 0.0
    %2974 = vmatpush.msra.mxu0 0.0
    %2975 = vmatpush.msra.mxu0 0.0
    %2976 = vmatpush.msra.mxu0 0.0
    %2977 = vmatpush.msra.mxu0 0.0
    %2978 = vmatpush.msra.mxu0 0.0
    %2979 = vmatpush.msra.mxu0 0.0
    %2980 = vmatpush.msra.mxu0 0.0
    %2981 = vmatpush.msra.mxu0 %v200
    %2982 = vmatpush.msra.mxu0 %v199
    %2983 = vmatpush.msra.mxu0 %v198
    %2984 = vmatpush.msra.mxu0 %v197
    %2985 = vmatmul.f32.gmra.mxu0 %v2967
    %v2986 = vpop.f32.mrf.mxu0
    %v2987 = vadd.f32 %v2378, %v2986
    %2988 = vdwg.mxu0
    %s2989 = scalar_lea.vmem [#allocation9], 4
    %2990 = vst.msk [vmem:[%s2989] sm:$0x3] %vm205, %v2987
    %2991 = vst.msk [vmem:[#allocation2] sm:$0x3] %vm205, %v2987
    %2992 = vst.msk [vmem:[#allocation2 + $0x2] sm:$0x3] %vm207, %v2831
    %v2993 = vld [vmem:[#allocation2] sm:$0xf]
    %2995 = vst [vmem:[#allocation1] ss:$4 sm:$0xff] %v2993
    %v2996 = vld.sshfl [vmem:[#allocation1] sm:$0xff pattern:$0x73625140]
    %v2997 = vld.sshfl [vmem:[#allocation1 + $0x8] sm:$0xff pattern:$0x73625140]
    %3000 = vmatpush.msra.mxu0 %v95
    %3001 = vmatpush.msra.mxu0 %v93
    %3002 = vmatpush.msra.mxu0 %v91
    %3003 = vmatpush.msra.mxu0 %v89
    %3004 = vmatpush.msra.mxu0 %v87
    %3005 = vmatpush.msra.mxu0 %v85
    %3006 = vmatpush.msra.mxu0 %v83
    %3007 = vmatpush.msra.mxu0 %v81
    %3008 = vmatpush.msra.mxu0 %v79
    %3009 = vmatpush.msra.mxu0 %v77
    %3010 = vmatpush.msra.mxu0 %v75
    %3011 = vmatpush.msra.mxu0 %v73
    %3012 = vmatpush.msra.mxu0 %v71
    %3013 = vmatpush.msra.mxu0 %v69
    %3014 = vmatpush.msra.mxu0 %v67
    %3015 = vmatpush.msra.mxu0 %v65
    %3016 = vmatmul.f32.gmra.mxu0 %v2996
    %v3017 = vpop.f32.mrf.mxu0
    %v3018 = vadd.f32 0.0, %v3017
    %3019 = vdwg.mxu0
    %3020 = vmatpush.msra.mxu0 %v127
    %3021 = vmatpush.msra.mxu0 %v125
    %3022 = vmatpush.msra.mxu0 %v123
    %3023 = vmatpush.msra.mxu0 %v121
    %3024 = vmatpush.msra.mxu0 %v119
    %3025 = vmatpush.msra.mxu0 %v117
    %3026 = vmatpush.msra.mxu0 %v115
    %3027 = vmatpush.msra.mxu0 %v113
    %3028 = vmatpush.msra.mxu0 %v111
    %3029 = vmatpush.msra.mxu0 %v109
    %3030 = vmatpush.msra.mxu0 %v107
    %3031 = vmatpush.msra.mxu0 %v105
    %3032 = vmatpush.msra.mxu0 %v103
    %3033 = vmatpush.msra.mxu0 %v101
    %3034 = vmatpush.msra.mxu0 %v99
    %3035 = vmatpush.msra.mxu0 %v97
    %3036 = vmatmul.f32.gmra.mxu0 %v2997
    %v3037 = vpop.f32.mrf.mxu0
    %v3038 = vadd.f32 %v3018, %v3037
    %3039 = vdwg.mxu0
    %3040 = vmatpush.msra.mxu0 %v96
    %3041 = vmatpush.msra.mxu0 %v94
    %3042 = vmatpush.msra.mxu0 %v92
    %3043 = vmatpush.msra.mxu0 %v90
    %3044 = vmatpush.msra.mxu0 %v88
    %3045 = vmatpush.msra.mxu0 %v86
    %3046 = vmatpush.msra.mxu0 %v84
    %3047 = vmatpush.msra.mxu0 %v82
    %3048 = vmatpush.msra.mxu0 %v80
    %3049 = vmatpush.msra.mxu0 %v78
    %3050 = vmatpush.msra.mxu0 %v76
    %3051 = vmatpush.msra.mxu0 %v74
    %3052 = vmatpush.msra.mxu0 %v72
    %3053 = vmatpush.msra.mxu0 %v70
    %3054 = vmatpush.msra.mxu0 %v68
    %3055 = vmatpush.msra.mxu0 %v66
    %3056 = vmatmul.f32.gmra.mxu0 %v2996
    %v3057 = vpop.f32.mrf.mxu0
    %v3058 = vadd.f32 0.0, %v3057
    %3059 = vdwg.mxu0
    %3060 = vmatpush.msra.mxu0 %v128
    %3061 = vmatpush.msra.mxu0 %v126
    %3062 = vmatpush.msra.mxu0 %v124
    %3063 = vmatpush.msra.mxu0 %v122
    %3064 = vmatpush.msra.mxu0 %v120
    %3065 = vmatpush.msra.mxu0 %v118
    %3066 = vmatpush.msra.mxu0 %v116
    %3067 = vmatpush.msra.mxu0 %v114
    %3068 = vmatpush.msra.mxu0 %v112
    %3069 = vmatpush.msra.mxu0 %v110
    %3070 = vmatpush.msra.mxu0 %v108
    %3071 = vmatpush.msra.mxu0 %v106
    %3072 = vmatpush.msra.mxu0 %v104
    %3073 = vmatpush.msra.mxu0 %v102
    %3074 = vmatpush.msra.mxu0 %v100
    %3075 = vmatpush.msra.mxu0 %v98
    %3076 = vmatmul.f32.gmra.mxu0 %v2997
    %v3077 = vpop.f32.mrf.mxu0
    %v3078 = vadd.f32 %v3058, %v3077
    %3079 = vdwg.mxu0
    %v3080 = vadd.f32 %v3038, %v297
    %v3081 = vadd.f32 %v3080, %v3078
    %v3082 = vxor.u32 %v3081, 2147483648
    %v3083 = vmul.f32 %v3082, 1.442695
    %v3084 = vpow.pop %v3083
    %v3085 = vadd.f32 %v3084, 1.0
    %v3086 = vrcp.pop %v3085
    %v3087 = vmul.f32 %v3085, %v3086
    %v3088 = vsub.f32 1.0, %v3087
    %v3089 = vmul.f32 %v3086, %v3088
    %v3090 = vadd.f32 %v3086, %v3089
    %vm3091 = vweird.f32 %v3085
    %vm3092 = vweird.f32 %v3086
    %vm3093 = vmor %vm3091, %vm3092
    %v3094 = vsel %vm3093, %v3086, %v3090
    %v3095 = vand.u32 2147483647, %v3085
    %vm3096 = vcmp.eq.f32.partialorder %v3095, 8.507059e+37
    %v3097 = vand.u32 %v3085, 2147483648
    %v3098 = vor.u32 1.1754944e-38, %v3097
    %v3099 = vsel %vm3096, %v3098, %v3094
    %v3100 = vmul.f32 1.0, %v3099
    %v3101 = vadd.f32 %v3078, %v323
    %3103 = vrot.lane.b32.xlu0 %v3101, 64
    %v3104 = vpop.permute.xlu0 %3103
    %v3106 = vmul.f32 %v3100, %v3104
    %3108 = vrot.lane.b32.xlu0 %v3106, 64
    %v3109 = vpop.permute.xlu0 %3108
    %v3111 = vadd.f32 %v3080, %v3109
    %v3112 = vtanh.pop %v3111
    %v3113 = vsub.f32 1.0, %v3100
    %3115 = vrot.lane.b32.xlu0 %v3112, 96
    %v3116 = vpop.permute.xlu0 %3115
    %v3118 = vmul.f32 %v3113, %v3116
    %v3119 = vmul.f32 %v3100, %v2828
    %v3120 = vadd.f32 %v3118, %v3119
    %3122 = vrot.lane.b32.xlu0 %v3120, 96
    %v3123 = vpop.permute.xlu0 %3122
    %3125 = vst.msk [vmem:[#allocation3] sm:$0x3] %vm207, %v3123
    %3127 = vst.msk [vmem:[#allocation3 + $0x2] sm:$0x3] %vm207, %v2966
    %v3128 = vld [vmem:[#allocation3] sm:$0xf]
    %3130 = vst [vmem:[#allocation1] ss:$4 sm:$0xff] %v3128
    %v3131 = vld.sshfl [vmem:[#allocation1] sm:$0xff pattern:$0x73625140]
    %v3132 = vld.sshfl [vmem:[#allocation1 + $0x8] sm:$0xff pattern:$0x73625140]
    %3135 = vmatpush.msra.mxu0 %v159
    %3136 = vmatpush.msra.mxu0 %v157
    %3137 = vmatpush.msra.mxu0 %v155
    %3138 = vmatpush.msra.mxu0 %v153
    %3139 = vmatpush.msra.mxu0 %v151
    %3140 = vmatpush.msra.mxu0 %v149
    %3141 = vmatpush.msra.mxu0 %v147
    %3142 = vmatpush.msra.mxu0 %v145
    %3143 = vmatpush.msra.mxu0 %v143
    %3144 = vmatpush.msra.mxu0 %v141
    %3145 = vmatpush.msra.mxu0 %v139
    %3146 = vmatpush.msra.mxu0 %v137
    %3147 = vmatpush.msra.mxu0 %v135
    %3148 = vmatpush.msra.mxu0 %v133
    %3149 = vmatpush.msra.mxu0 %v131
    %3150 = vmatpush.msra.mxu0 %v129
    %3151 = vmatmul.f32.gmra.mxu0 %v3131
    %v3152 = vpop.f32.mrf.mxu0
    %v3153 = vadd.f32 0.0, %v3152
    %3154 = vdwg.mxu0
    %3155 = vmatpush.msra.mxu0 %v191
    %3156 = vmatpush.msra.mxu0 %v189
    %3157 = vmatpush.msra.mxu0 %v187
    %3158 = vmatpush.msra.mxu0 %v185
    %3159 = vmatpush.msra.mxu0 %v183
    %3160 = vmatpush.msra.mxu0 %v181
    %3161 = vmatpush.msra.mxu0 %v179
    %3162 = vmatpush.msra.mxu0 %v177
    %3163 = vmatpush.msra.mxu0 %v175
    %3164 = vmatpush.msra.mxu0 %v173
    %3165 = vmatpush.msra.mxu0 %v171
    %3166 = vmatpush.msra.mxu0 %v169
    %3167 = vmatpush.msra.mxu0 %v167
    %3168 = vmatpush.msra.mxu0 %v165
    %3169 = vmatpush.msra.mxu0 %v163
    %3170 = vmatpush.msra.mxu0 %v161
    %3171 = vmatmul.f32.gmra.mxu0 %v3132
    %v3172 = vpop.f32.mrf.mxu0
    %v3173 = vadd.f32 %v3153, %v3172
    %3174 = vdwg.mxu0
    %3175 = vmatpush.msra.mxu0 %v160
    %3176 = vmatpush.msra.mxu0 %v158
    %3177 = vmatpush.msra.mxu0 %v156
    %3178 = vmatpush.msra.mxu0 %v154
    %3179 = vmatpush.msra.mxu0 %v152
    %3180 = vmatpush.msra.mxu0 %v150
    %3181 = vmatpush.msra.mxu0 %v148
    %3182 = vmatpush.msra.mxu0 %v146
    %3183 = vmatpush.msra.mxu0 %v144
    %3184 = vmatpush.msra.mxu0 %v142
    %3185 = vmatpush.msra.mxu0 %v140
    %3186 = vmatpush.msra.mxu0 %v138
    %3187 = vmatpush.msra.mxu0 %v136
    %3188 = vmatpush.msra.mxu0 %v134
    %3189 = vmatpush.msra.mxu0 %v132
    %3190 = vmatpush.msra.mxu0 %v130
    %3191 = vmatmul.f32.gmra.mxu0 %v3131
    %v3192 = vpop.f32.mrf.mxu0
    %v3193 = vadd.f32 0.0, %v3192
    %3194 = vdwg.mxu0
    %3195 = vmatpush.msra.mxu0 %v192
    %3196 = vmatpush.msra.mxu0 %v190
    %3197 = vmatpush.msra.mxu0 %v188
    %3198 = vmatpush.msra.mxu0 %v186
    %3199 = vmatpush.msra.mxu0 %v184
    %3200 = vmatpush.msra.mxu0 %v182
    %3201 = vmatpush.msra.mxu0 %v180
    %3202 = vmatpush.msra.mxu0 %v178
    %3203 = vmatpush.msra.mxu0 %v176
    %3204 = vmatpush.msra.mxu0 %v174
    %3205 = vmatpush.msra.mxu0 %v172
    %3206 = vmatpush.msra.mxu0 %v170
    %3207 = vmatpush.msra.mxu0 %v168
    %3208 = vmatpush.msra.mxu0 %v166
    %3209 = vmatpush.msra.mxu0 %v164
    %3210 = vmatpush.msra.mxu0 %v162
    %3211 = vmatmul.f32.gmra.mxu0 %v3132
    %v3212 = vpop.f32.mrf.mxu0
    %v3213 = vadd.f32 %v3193, %v3212
    %3214 = vdwg.mxu0
    %v3215 = vadd.f32 %v3173, %v439
    %v3216 = vadd.f32 %v3215, %v3213
    %v3217 = vxor.u32 %v3216, 2147483648
    %v3218 = vmul.f32 %v3217, 1.442695
    %v3219 = vpow.pop %v3218
    %v3220 = vadd.f32 %v3219, 1.0
    %v3221 = vrcp.pop %v3220
    %v3222 = vmul.f32 %v3220, %v3221
    %v3223 = vsub.f32 1.0, %v3222
    %v3224 = vmul.f32 %v3221, %v3223
    %v3225 = vadd.f32 %v3221, %v3224
    %vm3226 = vweird.f32 %v3220
    %vm3227 = vweird.f32 %v3221
    %vm3228 = vmor %vm3226, %vm3227
    %v3229 = vsel %vm3228, %v3221, %v3225
    %v3230 = vand.u32 2147483647, %v3220
    %vm3231 = vcmp.eq.f32.partialorder %v3230, 8.507059e+37
    %v3232 = vand.u32 %v3220, 2147483648
    %v3233 = vor.u32 1.1754944e-38, %v3232
    %v3234 = vsel %vm3231, %v3233, %v3229
    %v3235 = vmul.f32 1.0, %v3234
    %v3236 = vadd.f32 %v3213, %v465
    %3238 = vrot.lane.b32.xlu0 %v3236, 64
    %v3239 = vpop.permute.xlu0 %3238
    %v3241 = vmul.f32 %v3235, %v3239
    %3243 = vrot.lane.b32.xlu0 %v3241, 64
    %v3244 = vpop.permute.xlu0 %3243
    %v3246 = vadd.f32 %v3215, %v3244
    %v3247 = vtanh.pop %v3246
    %v3248 = vsub.f32 1.0, %v3235
    %3250 = vrot.lane.b32.xlu0 %v3247, 96
    %v3251 = vpop.permute.xlu0 %3250
    %v3253 = vmul.f32 %v3248, %v3251
    %v3254 = vmul.f32 %v3235, %v2963
    %v3255 = vadd.f32 %v3253, %v3254
    %3257 = vrot.lane.b32.xlu0 %v3255, 96
    %v3258 = vpop.permute.xlu0 %3257
    %v3259 = vsel %vm2383, %v3258, 0
    %3261 = vmatpush.msra.mxu0 0.0
    %3262 = vmatpush.msra.mxu0 0.0
    %3263 = vmatpush.msra.mxu0 0.0
    %3264 = vmatpush.msra.mxu0 0.0
    %3265 = vmatpush.msra.mxu0 0.0
    %3266 = vmatpush.msra.mxu0 0.0
    %3267 = vmatpush.msra.mxu0 0.0
    %3268 = vmatpush.msra.mxu0 0.0
    %3269 = vmatpush.msra.mxu0 0.0
    %3270 = vmatpush.msra.mxu0 0.0
    %3271 = vmatpush.msra.mxu0 0.0
    %3272 = vmatpush.msra.mxu0 0.0
    %3273 = vmatpush.msra.mxu0 %v200
    %3274 = vmatpush.msra.mxu0 %v199
    %3275 = vmatpush.msra.mxu0 %v198
    %3276 = vmatpush.msra.mxu0 %v197
    %3277 = vmatmul.f32.gmra.mxu0 %v3259
    %v3278 = vpop.f32.mrf.mxu0
    %v3279 = vadd.f32 %v2378, %v3278
    %3280 = vdwg.mxu0
    %s3281 = scalar_lea.vmem [#allocation9], 6
    %3282 = vst.msk [vmem:[%s3281] sm:$0x3] %vm205, %v3279
    // Predicated region
    $region46: #{tpu_custom_call.1} parent=1 // pred_check
      _
    $region47: #{tpu_custom_call.1} parent=1 // pred_check_branch
      %3284 = sbr.rel (0) target = $region49
    $region48: #{tpu_custom_call.1} parent=1 // pred_region
      %3286 = vsyncadd [#allocation6], 0
      %s3287 = sshll.u32 [#allocation9], 4
      %s3288 = int_to_ptr.vmem [resolvable:$true] %s3287
      %s3289 = sshll.u32 %s9, 4
      %s3290 = int_to_ptr.hbm [resolvable:$true] %s3289
      %3295 = dma.vmem_to_hbm [thread:$0]  %s3288, 128, %s3290, [#allocation6], 32, 32, 2
    $region49: #{tpu_custom_call.1} parent=1 // pred_fallthru
      _
    // Predicated region
    $region50: #{tpu_custom_call.1} parent=1 // pred_check
      _
    $region51: #{tpu_custom_call.1} parent=1 // pred_check_branch
      %3297 = sbr.rel (0) target = $region53
    $region52: #{tpu_custom_call.1} parent=1 // pred_region
      %3299 = dma.done [#allocation6], 128
    $region53: #{tpu_custom_call.1} parent=1 // pred_fallthru
      _
    %3300 = vsyncpa [#allocation5], 1
    %3301 = vsyncpa [#allocation8], 1
    %3302 = vsyncpa [#allocation6], 1

</llo_original>
